<compile_context>
chip_gen: v7x
topology: tpu7x:2x2x1
jax: 0.10.0
libtpu: 0.0.40
codegen_flags: <defaults>
</compile_context>

<pallas_src>
import functools
import math

import jax
import jax.numpy as jnp
from jax.experimental import pallas as pl
from jax.experimental.pallas import tpu as pltpu


# ----------------------------------------------------------------------------
# Fused kernel: one encoder layer per grid step (depth = inner grid axis),
# B_BLK batch elements (M = B_BLK*S rows) per step, activations carried in
# a VMEM scratch across layers; cls activations written at the last layer.
# ----------------------------------------------------------------------------
def _encoder_layer_kernel(x_ref, wqkv_ref, wo_ref, w1_ref, w2_ref,
                          bqkv_ref, b1_ref, vecs_ref,
                          hmask_ref, bias_ref, sel_ref,
                          out_ref, x_sc, *, n_head, eps=1e-5):
    d = pl.program_id(1)

    @pl.when(d == 0)
    def _():
        x_sc[...] = x_ref[...]                       # load activations once per batch block

    x = x_sc[...]                                    # (M, E) f32, resident across layers
    M, E = x.shape

    wqkv = wqkv_ref[0]                               # (E, 3E) bf16, this layer only
    wo = wo_ref[0]                                   # (E, E)  bf16
    w1 = w1_ref[0]                                   # (E, F)  bf16
    w2 = w2_ref[0]                                   # (F, E)  bf16  ('nn' contraction, no hidden transpose)
    bqkv = bqkv_ref[0]                               # (1, 3E) f32 (Q slice pre-scaled)
    b1 = b1_ref[0]                                   # (1, F)  f32
    vec = vecs_ref[0]                                # (6, E)  f32 packed small params
    bo, ln1g, ln1b = vec[0:1], vec[1:2], vec[2:3]
    b2, ln2g, ln2b = vec[3:4], vec[4:5], vec[5:6]

    def layer_norm(u, g, b):
        mu = jnp.mean(u, axis=-1, keepdims=True)
        var = jnp.mean(jnp.square(u - mu), axis=-1, keepdims=True)
        return (u - mu) * jax.lax.rsqrt(var + eps) * g + b

    # --- self attention (head-lane-masked, no reshapes / transposes) ---------
    qkv = jnp.dot(x.astype(jnp.bfloat16), wqkv,
                  preferred_element_type=jnp.float32) + bqkv          # (M, 3E) f32
    q = qkv[:, 0 * E:1 * E]                          # 1/sqrt(dh) folded into wqkv/bqkv
    k = qkv[:, 1 * E:2 * E]
    v = qkv[:, 2 * E:3 * E]

    bias = bias_ref[...]                             # (M, M): 0 same-batch / -1e30 cross-batch
    qb = q.astype(jnp.bfloat16)
    ctx = jnp.zeros((M, E), jnp.float32)
    for h in range(n_head):                          # static unroll; all tensors lane-dense
        hm = hmask_ref[h:h + 1, :]                   # (1, E) 0/1 head-lane mask
        kh = (k * hm).astype(jnp.bfloat16)
        vh = (v * hm).astype(jnp.bfloat16)
        s = jax.lax.dot_general(qb, kh, (((1,), (1,)), ((), ())),
                                preferred_element_type=jnp.float32) + bias   # (M, M)
        s = s - jnp.max(s, axis=-1, keepdims=True)
        p = jnp.exp(s)
        p = p * pl.reciprocal(jnp.sum(p, axis=-1, keepdims=True), approx=True)
        # v is masked to head-h lanes, so this lands head h's output in its own
        # lanes and the accumulation across heads is an exact concatenation.
        ctx = ctx + jax.lax.dot_general(p.astype(jnp.bfloat16), vh,
                                        (((1,), (0,)), ((), ())),
                                        preferred_element_type=jnp.float32)  # (M, E)
    attn = jnp.dot(ctx.astype(jnp.bfloat16), wo,
                   preferred_element_type=jnp.float32) + bo

    # --- residual + norm1, FFN (ReLU), residual + norm2 ------------------------
    y = layer_norm(x + attn, ln1g, ln1b)
    h1 = jnp.maximum(jnp.dot(y.astype(jnp.bfloat16), w1,
                             preferred_element_type=jnp.float32) + b1, 0.0)  # (M, F)
    h2 = jnp.dot(h1.astype(jnp.bfloat16), w2,
                 preferred_element_type=jnp.float32) + b2                    # (M, E)
    xo = layer_norm(y + h2, ln2g, ln2b)
    x_sc[...] = xo                                   # carry to next layer

    # --- last layer: emit cls-token activations (rows 0, S, 2S, ...) ----------
    @pl.when(d == pl.num_programs(1) - 1)
    def _():
        # exact 0/1 selection matmul (f32), lane-dense (B_BLK, E) output block
        out_ref[...] = jnp.dot(sel_ref[...], xo, preferred_element_type=jnp.float32)


# ----------------------------------------------------------------------------
# pallas_call wrapper: returns the cls-token activations (B, E).
# ----------------------------------------------------------------------------
def fused_encoder_cls(x, kp, *, n_head, b_blk=None):
    B, S, E = x.shape
    depth = kp["wqkv"].shape[0]
    F = kp["w1"].shape[2]

    # Pick/normalize the batch block so that M = b_blk*S is a multiple of 8
    # (sublane constraint) and M ~ 256 rows by default (fills v6e/v7x MXU,
    # fine on v5e too).
    unit = 8 // math.gcd(S, 8)
    if b_blk is None:
        b_blk = max(256 // S, 1)
    b_blk = max(unit, (b_blk // unit) * unit)
    b_blk = min(b_blk, ((B + unit - 1) // unit) * unit)
    nb = -(-B // b_blk)
    B_pad = nb * b_blk
    if B_pad != B:
        x = jnp.concatenate([x, jnp.zeros((B_pad - B, S, E), x.dtype)], axis=0)
    M = b_blk * S

    x_flat = x.reshape(B_pad * S, E).astype(jnp.float32)     # batch-major flatten (XLA-side)

    # Small constant helpers (built in XLA, DMA'd once, constant index_map):
    dh = E // n_head
    head_mask = (jnp.arange(E)[None, :] // dh
                 == jnp.arange(n_head)[:, None]).astype(jnp.float32)            # (H, E)
    rb = jnp.arange(M) // S
    attn_bias = jnp.where(rb[:, None] == rb[None, :], 0.0, -1e30
                          ).astype(jnp.float32)                                  # (M, M)
    sel = (jnp.arange(M)[None, :]
           == (jnp.arange(b_blk) * S)[:, None]).astype(jnp.float32)              # (B_BLK, M)

    weights = (kp["wqkv"], kp["wo"], kp["w1"], kp["w2"],
               kp["bqkv"], kp["b1"], kp["vecs"])
    w_specs = [pl.BlockSpec((1,) + w.shape[1:], lambda b, d: (d, 0, 0))
               for w in weights]

    # Advisory cost estimate + explicit VMEM budget (review items).
    flops = 2 * nb * depth * (M * E * 3 * E + 2 * n_head * M * M * E
                              + M * E * E + 2 * M * E * F)
    transcendentals = nb * depth * n_head * M * M
    w_bytes = sum(int(w.size) * w.dtype.itemsize for w in weights)
    bytes_accessed = (int(x_flat.size) * 4 + B_pad * E * 4 + nb * w_bytes
                      + (int(head_mask.size) + int(attn_bias.size) + int(sel.size)) * 4)
    per_layer_w = w_bytes // depth
    est = (2 * 2 * per_layer_w                                     # double-buffered layer weights
           + (int(attn_bias.size) + int(sel.size) + int(head_mask.size)) * 4
           + M * (3 * E + F + 4 * E + M) * 4                       # qkv / h1 / temps / scores (f32)
           + 4 * M * E * 4)                                        # x block, scratch, slack
    vmem_limit = int(min(max(2 * est, 20 * 2 ** 20), 48 * 2 ** 20))

    kernel = functools.partial(_encoder_layer_kernel, n_head=n_head)
    out = pl.pallas_call(
        kernel,
        out_shape=jax.ShapeDtypeStruct((B_pad, E), jnp.float32),
        grid=(nb, depth),
        in_specs=[pl.BlockSpec((M, E), lambda b, d: (b, 0))] + w_specs + [
            pl.BlockSpec(head_mask.shape, lambda b, d: (0, 0)),
            pl.BlockSpec(attn_bias.shape, lambda b, d: (0, 0)),
            pl.BlockSpec(sel.shape, lambda b, d: (0, 0)),
        ],
        out_specs=pl.BlockSpec((b_blk, E), lambda b, d: (b, 0)),
        scratch_shapes=[pltpu.VMEM((M, E), jnp.float32)],
        compiler_params=pltpu.CompilerParams(
            dimension_semantics=("parallel", "arbitrary"),
            vmem_limit_bytes=vmem_limit),
        cost_estimate=pl.CostEstimate(flops=int(flops),
                                      transcendentals=int(transcendentals),
                                      bytes_accessed=int(bytes_accessed)),
    )(x_flat, *weights, head_mask, attn_bias, sel)
    return out[:B]                                   # (B, E) cls activations


# ----------------------------------------------------------------------------
# Parameter setup (deterministic, synthetic) + kernel packing
# ----------------------------------------------------------------------------
def _positional_encoding(d_model, max_len=31):
    position = jnp.arange(max_len, dtype=jnp.float32)[:, None]
    div_term = jnp.exp(jnp.arange(0, d_model, 2, dtype=jnp.float32)
                       * (-math.log(10000.0) / d_model))
    pe = jnp.zeros((max_len, d_model), jnp.float32)
    pe = pe.at[:, 0::2].set(jnp.sin(position * div_term))
    pe = pe.at[:, 1::2].set(jnp.cos(position * div_term))
    return pe[None]


def _pack_kernel_params(layers, n_head):
    """Torch-like per-layer params -> stacked, kernel-friendly layouts."""
    E = layers[0]["wq"].shape[0]
    dh = E // n_head
    scale = 1.0 / math.sqrt(dh)

    def stack(fn):
        return jnp.stack([fn(l) for l in layers])

    return dict(
        # fold 1/sqrt(dh) into the Q projection (weight AND bias)
        wqkv=stack(lambda l: jnp.concatenate([l["wq"] * scale, l["wk"], l["wv"]],
                                             axis=1)).astype(jnp.bfloat16),        # (D,E,3E)
        bqkv=stack(lambda l: jnp.concatenate([l["bq"] * scale, l["bk"], l["bv"]])[None, :]),  # (D,1,3E)
        wo=stack(lambda l: l["wo"]).astype(jnp.bfloat16),                           # (D,E,E)
        w1=stack(lambda l: l["w1"]).astype(jnp.bfloat16),                           # (D,E,F)
        w2=stack(lambda l: l["w2"]).astype(jnp.bfloat16),                           # (D,F,E)
        b1=stack(lambda l: l["b1"][None, :]),                                       # (D,1,F)
        vecs=stack(lambda l: jnp.stack([l["bo"], l["ln1_g"], l["ln1_b"],
                                        l["b2"], l["ln2_g"], l["ln2_b"]])),         # (D,6,E)
    )


def init_params(key, embedding_dim, n_head, depth, output_dim,
                dim_feedforward=2048, use_pe=False, pre_ffn=False, input_dim=0):
    E, F = embedding_dim, dim_feedforward
    keys = iter(jax.random.split(key, depth * 16 + 8))

    def nrm(shape, std):
        return std * jax.random.normal(next(keys), shape, dtype=jnp.float32)

    def bf16_rt(w):  # round-trip big weights through bf16 so kernel & reference share them
        return w.astype(jnp.bfloat16).astype(jnp.float32)

    layers = []
    for _ in range(depth):
        layers.append(dict(
            wq=bf16_rt(nrm((E, E), 0.05)), wk=bf16_rt(nrm((E, E), 0.05)),
            wv=bf16_rt(nrm((E, E), 0.05)), wo=bf16_rt(nrm((E, E), 0.05)),
            bq=nrm((E,), 0.05), bk=nrm((E,), 0.05), bv=nrm((E,), 0.05), bo=nrm((E,), 0.05),
            w1=bf16_rt(nrm((E, F), 0.05)), b1=nrm((F,), 0.05),
            w2=bf16_rt(nrm((F, E), 0.02)), b2=nrm((E,), 0.05),
            ln1_g=1.0 + nrm((E,), 0.1), ln1_b=nrm((E,), 0.05),
            ln2_g=1.0 + nrm((E,), 0.1), ln2_b=nrm((E,), 0.05)))

    params = dict(
        layers=layers,
        cls_token=0.02 * jax.random.normal(next(keys), (1, 1, E), dtype=jnp.float32),
        proj_w=nrm((E, output_dim), 0.05),
        proj_b=nrm((output_dim,), 0.05),
    )
    if use_pe:
        params["pe"] = _positional_encoding(E, max_len=31)
    if pre_ffn:
        params["ffn_w"] = nrm((input_dim, E), 0.05)
        params["ffn_b"] = jnp.zeros((E,), jnp.float32)
    params["kernel"] = _pack_kernel_params(layers, n_head)
    return params


# ----------------------------------------------------------------------------
# Forward pass (mirrors TemporalTransformer.forward, eval mode)
# ----------------------------------------------------------------------------
def temporal_transformer_forward(params, x, *, n_head, use_pe=False, pre_ffn=False,
                                 b_blk=None):
    if pre_ffn:
        # tiny pre-projection (Linear + ReLU): plain-JAX glue
        x = jnp.maximum(jnp.dot(x, params["ffn_w"]) + params["ffn_b"], 0.0)
    B = x.shape[0]
    E = params["cls_token"].shape[-1]
    # torch.column_stack on 3-D tensors == concat along dim 1 (prepend cls token)
    cls = jnp.broadcast_to(params["cls_token"].astype(jnp.float32), (B, 1, E))
    h = jnp.concatenate([cls, x.astype(jnp.float32)], axis=1)        # (B, 1+T, E)
    if use_pe:
        h = h + params["pe"][:, :h.shape[1]]
    # one fused Pallas kernel: all encoder layers; returns cls activations (B, E)
    cls_act = fused_encoder_cls(h, params["kernel"], n_head=n_head, b_blk=b_blk)
    # low_dim_proj: tiny (B,E)@(E,O) done in plain XLA (lane-dense, no M=1 MXU matmuls)
    return jnp.dot(cls_act, params["proj_w"],
                   precision=jax.lax.Precision.HIGHEST) + params["proj_b"]


# ----------------------------------------------------------------------------
# Pure-JAX f32 reference (PyTorch nn.TransformerEncoderLayer semantics)
# ----------------------------------------------------------------------------
def _layer_norm_ref(u, g, b, eps=1e-5):
    mu = jnp.mean(u, axis=-1, keepdims=True)
    var = jnp.mean(jnp.square(u - mu), axis=-1, keepdims=True)
    return (u - mu) * jax.lax.rsqrt(var + eps) * g + b


def reference_forward(params, x, *, n_head, use_pe=False, pre_ffn=False):
    hp = jax.lax.Precision.HIGHEST
    if pre_ffn:
        x = jnp.maximum(jnp.dot(x, params["ffn_w"], precision=hp) + params["ffn_b"], 0.0)
    B = x.shape[0]
    E = params["cls_token"].shape[-1]
    h = jnp.concatenate([jnp.broadcast_to(params["cls_token"], (B, 1, E)),
                         x.astype(jnp.float32)], axis=1)
    if use_pe:
        h = h + params["pe"][:, :h.shape[1]]
    S = h.shape[1]
    dh = E // n_head
    for l in params["layers"]:
        q = jnp.dot(h, l["wq"], precision=hp) + l["bq"]
        k = jnp.dot(h, l["wk"], precision=hp) + l["bk"]
        v = jnp.dot(h, l["wv"], precision=hp) + l["bv"]
        qh = q.reshape(B, S, n_head, dh).transpose(0, 2, 1, 3)
        kh = k.reshape(B, S, n_head, dh).transpose(0, 2, 1, 3)
        vh = v.reshape(B, S, n_head, dh).transpose(0, 2, 1, 3)
        s = jnp.einsum('bhqd,bhkd->bhqk', qh, kh, precision=hp) / math.sqrt(dh)
        p = jax.nn.softmax(s, axis=-1)
        ctx = jnp.einsum('bhqk,bhkd->bhqd', p, vh, precision=hp)
        ctx = ctx.transpose(0, 2, 1, 3).reshape(B, S, E)
        attn = jnp.dot(ctx, l["wo"], precision=hp) + l["bo"]
        h = _layer_norm_ref(h + attn, l["ln1_g"], l["ln1_b"])
        ff = jnp.dot(jnp.maximum(jnp.dot(h, l["w1"], precision=hp) + l["b1"], 0.0),
                     l["w2"], precision=hp) + l["b2"]
        h = _layer_norm_ref(h + ff, l["ln2_g"], l["ln2_b"])
    cls = h[:, 0, :]
    return jnp.dot(cls, params["proj_w"], precision=hp) + params["proj_b"]


# ----------------------------------------------------------------------------
if __name__ == "__main__":
    key = jax.random.PRNGKey(0)
    B, T = 16, 8                                  # batch, input sequence length (S = T+1 = 9)
    E, H, DEPTH, OUT = 32, 4, 2, 16               # embedding_dim, n_head, depth, output_dim

    pkey, xkey = jax.random.split(key)
    params = init_params(pkey, E, H, DEPTH, OUT)  # use_pe=False, pre_ffn=False (defaults)
    x = jax.random.normal(xkey, (B, T, E), dtype=jnp.float32)

    fwd = jax.jit(functools.partial(temporal_transformer_forward, n_head=H, b_blk=8))
    y = jax.block_until_ready(fwd(params, x))
    assert y.shape == (B, OUT) and y.dtype == jnp.float32

    # tolerance check vs. pure-JAX f32 reference (bf16 matmul inputs + approx
    # softmax reciprocal in the kernel => small, bounded deviation)
    y_ref = reference_forward(params, x, n_head=H)
    err = float(jnp.max(jnp.abs(y - y_ref)))
    assert err < 5e-2, f"kernel vs reference max abs error too large: {err}"
    print("KERNEL_OK")
</pallas_src>

<mosaic_0001>
module attributes {stable_mosaic.version = 11 : i64} {
  func.func @_encoder_layer_kernel(%arg0: i32, %arg1: i32, %arg2: memref<72x32xf32, #tpu.memory_space<vmem>>, %arg3: memref<1x32x96xbf16, #tpu.memory_space<vmem>>, %arg4: memref<1x32x32xbf16, #tpu.memory_space<vmem>>, %arg5: memref<1x32x2048xbf16, #tpu.memory_space<vmem>>, %arg6: memref<1x2048x32xbf16, #tpu.memory_space<vmem>>, %arg7: memref<1x1x96xf32, #tpu.memory_space<vmem>>, %arg8: memref<1x1x2048xf32, #tpu.memory_space<vmem>>, %arg9: memref<1x6x32xf32, #tpu.memory_space<vmem>>, %arg10: memref<4x32xf32, #tpu.memory_space<vmem>>, %arg11: memref<72x72xf32, #tpu.memory_space<vmem>>, %arg12: memref<8x72xf32, #tpu.memory_space<vmem>>, %arg13: memref<8x32xf32, #tpu.memory_space<vmem>>, %arg14: memref<72x32xf32, #tpu.memory_space<vmem>>) attributes {dimension_semantics = [#tpu.dimension_semantics<parallel>, #tpu.dimension_semantics<arbitrary>], iteration_bounds = array<i64: 2, 2>, scalar_prefetch = 0 : i64, scratch_operands = 1 : i64, tpu.core_type = #tpu.core_type<tc>, window_params = [{transform_indices = @transform_0, window_bounds = array<i64: 72, 32>}, {transform_indices = @transform_1, window_bounds = array<i64: 1, 32, 96>}, {transform_indices = @transform_2, window_bounds = array<i64: 1, 32, 32>}, {transform_indices = @transform_3, window_bounds = array<i64: 1, 32, 2048>}, {transform_indices = @transform_4, window_bounds = array<i64: 1, 2048, 32>}, {transform_indices = @transform_5, window_bounds = array<i64: 1, 1, 96>}, {transform_indices = @transform_6, window_bounds = array<i64: 1, 1, 2048>}, {transform_indices = @transform_7, window_bounds = array<i64: 1, 6, 32>}, {pipeline_mode = #tpu.pipeline_mode<synchronous>, transform_indices = @transform_8, window_bounds = array<i64: 4, 32>}, {pipeline_mode = #tpu.pipeline_mode<synchronous>, transform_indices = @transform_9, window_bounds = array<i64: 72, 72>}, {pipeline_mode = #tpu.pipeline_mode<synchronous>, transform_indices = @transform_10, window_bounds = array<i64: 8, 72>}, {transform_indices = @transform_11, window_bounds = array<i64: 8, 32>}]} {
    %c0_i32 = arith.constant 0 : i32
    %0 = arith.cmpi eq, %arg1, %c0_i32 : i32
    %1 = arith.extui %0 : i1 to i32
    %c0_i32_0 = arith.constant 0 : i32
    %2 = arith.cmpi ne, %1, %c0_i32_0 : i32
    scf.if %2 {
      %c0_64 = arith.constant 0 : index
      %c0_65 = arith.constant 0 : index
      %186 = vector.load %arg2[%c0_64, %c0_65] : memref<72x32xf32, #tpu.memory_space<vmem>>, vector<72x32xf32>
      %c0_66 = arith.constant 0 : index
      %c0_67 = arith.constant 0 : index
      %187 = vector.load %arg14[%c0_66, %c0_67] : memref<72x32xf32, #tpu.memory_space<vmem>>, vector<72x32xf32>
      tpu.vector_store %arg14[%c0_66, %c0_67], %186 {strides = array<i32>} : memref<72x32xf32, #tpu.memory_space<vmem>>, vector<72x32xf32>,
    } else {
    }
    %c0 = arith.constant 0 : index
    %c0_1 = arith.constant 0 : index
    %3 = vector.load %arg14[%c0, %c0_1] : memref<72x32xf32, #tpu.memory_space<vmem>>, vector<72x32xf32>
    %c0_2 = arith.constant 0 : index
    %c0_3 = arith.constant 0 : index
    %c0_4 = arith.constant 0 : index
    %4 = vector.load %arg3[%c0_2, %c0_3, %c0_4] : memref<1x32x96xbf16, #tpu.memory_space<vmem>>, vector<1x32x96xbf16>
    %5 = vector.shape_cast %4 : vector<1x32x96xbf16> to vector<32x96xbf16>
    %c0_5 = arith.constant 0 : index
    %c0_6 = arith.constant 0 : index
    %c0_7 = arith.constant 0 : index
    %6 = vector.load %arg4[%c0_5, %c0_6, %c0_7] : memref<1x32x32xbf16, #tpu.memory_space<vmem>>, vector<1x32x32xbf16>
    %7 = vector.shape_cast %6 : vector<1x32x32xbf16> to vector<32x32xbf16>
    %c0_8 = arith.constant 0 : index
    %c0_9 = arith.constant 0 : index
    %c0_10 = arith.constant 0 : index
    %8 = vector.load %arg5[%c0_8, %c0_9, %c0_10] : memref<1x32x2048xbf16, #tpu.memory_space<vmem>>, vector<1x32x2048xbf16>
    %9 = vector.shape_cast %8 : vector<1x32x2048xbf16> to vector<32x2048xbf16>
    %c0_11 = arith.constant 0 : index
    %c0_12 = arith.constant 0 : index
    %c0_13 = arith.constant 0 : index
    %10 = vector.load %arg6[%c0_11, %c0_12, %c0_13] : memref<1x2048x32xbf16, #tpu.memory_space<vmem>>, vector<1x2048x32xbf16>
    %11 = vector.shape_cast %10 : vector<1x2048x32xbf16> to vector<2048x32xbf16>
    %c0_14 = arith.constant 0 : index
    %c0_15 = arith.constant 0 : index
    %c0_16 = arith.constant 0 : index
    %12 = vector.load %arg7[%c0_14, %c0_15, %c0_16] : memref<1x1x96xf32, #tpu.memory_space<vmem>>, vector<1x1x96xf32>
    %13 = vector.shape_cast %12 : vector<1x1x96xf32> to vector<1x96xf32>
    %c0_17 = arith.constant 0 : index
    %c0_18 = arith.constant 0 : index
    %c0_19 = arith.constant 0 : index
    %14 = vector.load %arg8[%c0_17, %c0_18, %c0_19] : memref<1x1x2048xf32, #tpu.memory_space<vmem>>, vector<1x1x2048xf32>
    %15 = vector.shape_cast %14 : vector<1x1x2048xf32> to vector<1x2048xf32>
    %c0_20 = arith.constant 0 : index
    %c0_21 = arith.constant 0 : index
    %c0_22 = arith.constant 0 : index
    %16 = vector.load %arg9[%c0_20, %c0_21, %c0_22] : memref<1x6x32xf32, #tpu.memory_space<vmem>>, vector<1x6x32xf32>
    %17 = vector.shape_cast %16 : vector<1x6x32xf32> to vector<6x32xf32>
    %18 = vector.extract_strided_slice %17 {offsets = [0, 0], sizes = [1, 32], strides = [1, 1]} : vector<6x32xf32> to vector<1x32xf32>
    %19 = vector.extract_strided_slice %17 {offsets = [1, 0], sizes = [1, 32], strides = [1, 1]} : vector<6x32xf32> to vector<1x32xf32>
    %20 = vector.extract_strided_slice %17 {offsets = [2, 0], sizes = [1, 32], strides = [1, 1]} : vector<6x32xf32> to vector<1x32xf32>
    %21 = vector.extract_strided_slice %17 {offsets = [3, 0], sizes = [1, 32], strides = [1, 1]} : vector<6x32xf32> to vector<1x32xf32>
    %22 = vector.extract_strided_slice %17 {offsets = [4, 0], sizes = [1, 32], strides = [1, 1]} : vector<6x32xf32> to vector<1x32xf32>
    %23 = vector.extract_strided_slice %17 {offsets = [5, 0], sizes = [1, 32], strides = [1, 1]} : vector<6x32xf32> to vector<1x32xf32>
    %24 = arith.truncf %3 : vector<72x32xf32> to vector<72x32xbf16>
    %cst = arith.constant dense<0.000000e+00> : vector<72x96xf32>
    %25 = tpu.matmul %24, %5, %cst {dimension_numbers = #tpu.dot_dimension_numbers<[1], [0], [0], [1], [0, 0, 1, 1], [], []>} : vector<72x32xbf16>, vector<32x96xbf16>, vector<72x96xf32> -> vector<72x96xf32>
    %26 = vector.broadcast %13 : vector<1x96xf32> to vector<72x96xf32>
    %27 = arith.addf %25, %26 : vector<72x96xf32>
    %28 = vector.extract_strided_slice %27 {offsets = [0, 0], sizes = [72, 32], strides = [1, 1]} : vector<72x96xf32> to vector<72x32xf32>
    %29 = vector.extract_strided_slice %27 {offsets = [0, 32], sizes = [72, 32], strides = [1, 1]} : vector<72x96xf32> to vector<72x32xf32>
    %30 = vector.extract_strided_slice %27 {offsets = [0, 64], sizes = [72, 32], strides = [1, 1]} : vector<72x96xf32> to vector<72x32xf32>
    %c0_23 = arith.constant 0 : index
    %c0_24 = arith.constant 0 : index
    %31 = vector.load %arg11[%c0_23, %c0_24] : memref<72x72xf32, #tpu.memory_space<vmem>>, vector<72x72xf32>
    %32 = arith.truncf %28 : vector<72x32xf32> to vector<72x32xbf16>
    %cst_25 = arith.constant 0.000000e+00 : f32
    %33 = vector.broadcast %cst_25 : f32 to vector<72x32xf32>
    %c0_26 = arith.constant 0 : index
    %c0_27 = arith.constant 0 : index
    %34 = vector.load %arg10[%c0_26, %c0_27] : memref<4x32xf32, #tpu.memory_space<vmem>>, vector<1x32xf32>
    %35 = vector.broadcast %34 : vector<1x32xf32> to vector<72x32xf32>
    %36 = arith.mulf %29, %35 : vector<72x32xf32>
    %37 = arith.truncf %36 : vector<72x32xf32> to vector<72x32xbf16>
    %38 = vector.broadcast %34 : vector<1x32xf32> to vector<72x32xf32>
    %39 = arith.mulf %30, %38 : vector<72x32xf32>
    %40 = arith.truncf %39 : vector<72x32xf32> to vector<72x32xbf16>
    %cst_28 = arith.constant dense<0.000000e+00> : vector<72x72xf32>
    %41 = tpu.matmul %32, %37, %cst_28 {dimension_numbers = #tpu.dot_dimension_numbers<[1], [1], [0], [0], [0, 0, 1, 0], [], []>} : vector<72x32xbf16>, vector<72x32xbf16>, vector<72x72xf32> -> vector<72x72xf32>
    %42 = arith.addf %41, %31 : vector<72x72xf32>
    %cst_29 = arith.constant dense<0xFF800000> : vector<72xf32>
    %43 = vector.multi_reduction <maximumf>, %42, %cst_29 [1] : vector<72x72xf32> to vector<72xf32>
    %44 = vector.shape_cast %43 : vector<72xf32> to vector<72x1xf32>
    %45 = vector.broadcast %44 : vector<72x1xf32> to vector<72x72xf32>
    %46 = arith.subf %42, %45 : vector<72x72xf32>
    %47 = math.exp %46 : vector<72x72xf32>
    %cst_30 = arith.constant dense<0.000000e+00> : vector<72xf32>
    %48 = vector.multi_reduction <add>, %47, %cst_30 [1] : vector<72x72xf32> to vector<72xf32>
    %49 = vector.shape_cast %48 : vector<72xf32> to vector<72x1xf32>
    %50 = tpu.reciprocal %49 {approx = true} : vector<72x1xf32> -> vector<72x1xf32>
    %51 = vector.broadcast %50 : vector<72x1xf32> to vector<72x72xf32>
    %52 = arith.mulf %47, %51 : vector<72x72xf32>
    %53 = arith.truncf %52 : vector<72x72xf32> to vector<72x72xbf16>
    %cst_31 = arith.constant dense<0.000000e+00> : vector<72x32xf32>
    %54 = tpu.matmul %53, %40, %cst_31 {dimension_numbers = #tpu.dot_dimension_numbers<[1], [0], [0], [1], [0, 0, 1, 1], [], []>} : vector<72x72xbf16>, vector<72x32xbf16>, vector<72x32xf32> -> vector<72x32xf32>
    %55 = arith.addf %33, %54 : vector<72x32xf32>
    %c1 = arith.constant 1 : index
    %c0_32 = arith.constant 0 : index
    %56 = vector.load %arg10[%c1, %c0_32] : memref<4x32xf32, #tpu.memory_space<vmem>>, vector<1x32xf32>
    %57 = vector.broadcast %56 : vector<1x32xf32> to vector<72x32xf32>
    %58 = arith.mulf %29, %57 : vector<72x32xf32>
    %59 = arith.truncf %58 : vector<72x32xf32> to vector<72x32xbf16>
    %60 = vector.broadcast %56 : vector<1x32xf32> to vector<72x32xf32>
    %61 = arith.mulf %30, %60 : vector<72x32xf32>
    %62 = arith.truncf %61 : vector<72x32xf32> to vector<72x32xbf16>
    %cst_33 = arith.constant dense<0.000000e+00> : vector<72x72xf32>
    %63 = tpu.matmul %32, %59, %cst_33 {dimension_numbers = #tpu.dot_dimension_numbers<[1], [1], [0], [0], [0, 0, 1, 0], [], []>} : vector<72x32xbf16>, vector<72x32xbf16>, vector<72x72xf32> -> vector<72x72xf32>
    %64 = arith.addf %63, %31 : vector<72x72xf32>
    %cst_34 = arith.constant dense<0xFF800000> : vector<72xf32>
    %65 = vector.multi_reduction <maximumf>, %64, %cst_34 [1] : vector<72x72xf32> to vector<72xf32>
    %66 = vector.shape_cast %65 : vector<72xf32> to vector<72x1xf32>
    %67 = vector.broadcast %66 : vector<72x1xf32> to vector<72x72xf32>
    %68 = arith.subf %64, %67 : vector<72x72xf32>
    %69 = math.exp %68 : vector<72x72xf32>
    %cst_35 = arith.constant dense<0.000000e+00> : vector<72xf32>
    %70 = vector.multi_reduction <add>, %69, %cst_35 [1] : vector<72x72xf32> to vector<72xf32>
    %71 = vector.shape_cast %70 : vector<72xf32> to vector<72x1xf32>
    %72 = tpu.reciprocal %71 {approx = true} : vector<72x1xf32> -> vector<72x1xf32>
    %73 = vector.broadcast %72 : vector<72x1xf32> to vector<72x72xf32>
    %74 = arith.mulf %69, %73 : vector<72x72xf32>
    %75 = arith.truncf %74 : vector<72x72xf32> to vector<72x72xbf16>
    %cst_36 = arith.constant dense<0.000000e+00> : vector<72x32xf32>
    %76 = tpu.matmul %75, %62, %cst_36 {dimension_numbers = #tpu.dot_dimension_numbers<[1], [0], [0], [1], [0, 0, 1, 1], [], []>} : vector<72x72xbf16>, vector<72x32xbf16>, vector<72x32xf32> -> vector<72x32xf32>
    %77 = arith.addf %55, %76 : vector<72x32xf32>
    %c2 = arith.constant 2 : index
    %c0_37 = arith.constant 0 : index
    %78 = vector.load %arg10[%c2, %c0_37] : memref<4x32xf32, #tpu.memory_space<vmem>>, vector<1x32xf32>
    %79 = vector.broadcast %78 : vector<1x32xf32> to vector<72x32xf32>
    %80 = arith.mulf %29, %79 : vector<72x32xf32>
    %81 = arith.truncf %80 : vector<72x32xf32> to vector<72x32xbf16>
    %82 = vector.broadcast %78 : vector<1x32xf32> to vector<72x32xf32>
    %83 = arith.mulf %30, %82 : vector<72x32xf32>
    %84 = arith.truncf %83 : vector<72x32xf32> to vector<72x32xbf16>
    %cst_38 = arith.constant dense<0.000000e+00> : vector<72x72xf32>
    %85 = tpu.matmul %32, %81, %cst_38 {dimension_numbers = #tpu.dot_dimension_numbers<[1], [1], [0], [0], [0, 0, 1, 0], [], []>} : vector<72x32xbf16>, vector<72x32xbf16>, vector<72x72xf32> -> vector<72x72xf32>
    %86 = arith.addf %85, %31 : vector<72x72xf32>
    %cst_39 = arith.constant dense<0xFF800000> : vector<72xf32>
    %87 = vector.multi_reduction <maximumf>, %86, %cst_39 [1] : vector<72x72xf32> to vector<72xf32>
    %88 = vector.shape_cast %87 : vector<72xf32> to vector<72x1xf32>
    %89 = vector.broadcast %88 : vector<72x1xf32> to vector<72x72xf32>
    %90 = arith.subf %86, %89 : vector<72x72xf32>
    %91 = math.exp %90 : vector<72x72xf32>
    %cst_40 = arith.constant dense<0.000000e+00> : vector<72xf32>
    %92 = vector.multi_reduction <add>, %91, %cst_40 [1] : vector<72x72xf32> to vector<72xf32>
    %93 = vector.shape_cast %92 : vector<72xf32> to vector<72x1xf32>
    %94 = tpu.reciprocal %93 {approx = true} : vector<72x1xf32> -> vector<72x1xf32>
    %95 = vector.broadcast %94 : vector<72x1xf32> to vector<72x72xf32>
    %96 = arith.mulf %91, %95 : vector<72x72xf32>
    %97 = arith.truncf %96 : vector<72x72xf32> to vector<72x72xbf16>
    %cst_41 = arith.constant dense<0.000000e+00> : vector<72x32xf32>
    %98 = tpu.matmul %97, %84, %cst_41 {dimension_numbers = #tpu.dot_dimension_numbers<[1], [0], [0], [1], [0, 0, 1, 1], [], []>} : vector<72x72xbf16>, vector<72x32xbf16>, vector<72x32xf32> -> vector<72x32xf32>
    %99 = arith.addf %77, %98 : vector<72x32xf32>
    %c3 = arith.constant 3 : index
    %c0_42 = arith.constant 0 : index
    %100 = vector.load %arg10[%c3, %c0_42] : memref<4x32xf32, #tpu.memory_space<vmem>>, vector<1x32xf32>
    %101 = vector.broadcast %100 : vector<1x32xf32> to vector<72x32xf32>
    %102 = arith.mulf %29, %101 : vector<72x32xf32>
    %103 = arith.truncf %102 : vector<72x32xf32> to vector<72x32xbf16>
    %104 = vector.broadcast %100 : vector<1x32xf32> to vector<72x32xf32>
    %105 = arith.mulf %30, %104 : vector<72x32xf32>
    %106 = arith.truncf %105 : vector<72x32xf32> to vector<72x32xbf16>
    %cst_43 = arith.constant dense<0.000000e+00> : vector<72x72xf32>
    %107 = tpu.matmul %32, %103, %cst_43 {dimension_numbers = #tpu.dot_dimension_numbers<[1], [1], [0], [0], [0, 0, 1, 0], [], []>} : vector<72x32xbf16>, vector<72x32xbf16>, vector<72x72xf32> -> vector<72x72xf32>
    %108 = arith.addf %107, %31 : vector<72x72xf32>
    %cst_44 = arith.constant dense<0xFF800000> : vector<72xf32>
    %109 = vector.multi_reduction <maximumf>, %108, %cst_44 [1] : vector<72x72xf32> to vector<72xf32>
    %110 = vector.shape_cast %109 : vector<72xf32> to vector<72x1xf32>
    %111 = vector.broadcast %110 : vector<72x1xf32> to vector<72x72xf32>
    %112 = arith.subf %108, %111 : vector<72x72xf32>
    %113 = math.exp %112 : vector<72x72xf32>
    %cst_45 = arith.constant dense<0.000000e+00> : vector<72xf32>
    %114 = vector.multi_reduction <add>, %113, %cst_45 [1] : vector<72x72xf32> to vector<72xf32>
    %115 = vector.shape_cast %114 : vector<72xf32> to vector<72x1xf32>
    %116 = tpu.reciprocal %115 {approx = true} : vector<72x1xf32> -> vector<72x1xf32>
    %117 = vector.broadcast %116 : vector<72x1xf32> to vector<72x72xf32>
    %118 = arith.mulf %113, %117 : vector<72x72xf32>
    %119 = arith.truncf %118 : vector<72x72xf32> to vector<72x72xbf16>
    %cst_46 = arith.constant dense<0.000000e+00> : vector<72x32xf32>
    %120 = tpu.matmul %119, %106, %cst_46 {dimension_numbers = #tpu.dot_dimension_numbers<[1], [0], [0], [1], [0, 0, 1, 1], [], []>} : vector<72x72xbf16>, vector<72x32xbf16>, vector<72x32xf32> -> vector<72x32xf32>
    %121 = arith.addf %99, %120 : vector<72x32xf32>
    %122 = arith.truncf %121 : vector<72x32xf32> to vector<72x32xbf16>
    %cst_47 = arith.constant dense<0.000000e+00> : vector<72x32xf32>
    %123 = tpu.matmul %122, %7, %cst_47 {dimension_numbers = #tpu.dot_dimension_numbers<[1], [0], [0], [1], [0, 0, 1, 1], [], []>} : vector<72x32xbf16>, vector<32x32xbf16>, vector<72x32xf32> -> vector<72x32xf32>
    %124 = vector.broadcast %18 : vector<1x32xf32> to vector<72x32xf32>
    %125 = arith.addf %123, %124 : vector<72x32xf32>
    %126 = arith.addf %3, %125 : vector<72x32xf32>
    %cst_48 = arith.constant dense<0.000000e+00> : vector<72xf32>
    %127 = vector.multi_reduction <add>, %126, %cst_48 [1] : vector<72x32xf32> to vector<72xf32>
    %128 = vector.shape_cast %127 : vector<72xf32> to vector<72x1xf32>
    %cst_49 = arith.constant 3.200000e+01 : f32
    %129 = vector.broadcast %cst_49 : f32 to vector<72x1xf32>
    %130 = arith.divf %128, %129 : vector<72x1xf32>
    %131 = vector.broadcast %130 : vector<72x1xf32> to vector<72x32xf32>
    %132 = arith.subf %126, %131 : vector<72x32xf32>
    %133 = arith.mulf %132, %132 : vector<72x32xf32>
    %cst_50 = arith.constant dense<0.000000e+00> : vector<72xf32>
    %134 = vector.multi_reduction <add>, %133, %cst_50 [1] : vector<72x32xf32> to vector<72xf32>
    %135 = vector.shape_cast %134 : vector<72xf32> to vector<72x1xf32>
    %cst_51 = arith.constant 3.200000e+01 : f32
    %136 = vector.broadcast %cst_51 : f32 to vector<72x1xf32>
    %137 = arith.divf %135, %136 : vector<72x1xf32>
    %138 = vector.broadcast %130 : vector<72x1xf32> to vector<72x32xf32>
    %139 = arith.subf %126, %138 : vector<72x32xf32>
    %cst_52 = arith.constant 9.99999974E-6 : f32
    %140 = vector.broadcast %cst_52 : f32 to vector<72x1xf32>
    %141 = arith.addf %137, %140 : vector<72x1xf32>
    %142 = math.rsqrt %141 : vector<72x1xf32>
    %143 = vector.broadcast %142 : vector<72x1xf32> to vector<72x32xf32>
    %144 = arith.mulf %139, %143 : vector<72x32xf32>
    %145 = vector.broadcast %19 : vector<1x32xf32> to vector<72x32xf32>
    %146 = arith.mulf %144, %145 : vector<72x32xf32>
    %147 = vector.broadcast %20 : vector<1x32xf32> to vector<72x32xf32>
    %148 = arith.addf %146, %147 : vector<72x32xf32>
    %149 = arith.truncf %148 : vector<72x32xf32> to vector<72x32xbf16>
    %cst_53 = arith.constant dense<0.000000e+00> : vector<72x2048xf32>
    %150 = tpu.matmul %149, %9, %cst_53 {dimension_numbers = #tpu.dot_dimension_numbers<[1], [0], [0], [1], [0, 0, 1, 1], [], []>} : vector<72x32xbf16>, vector<32x2048xbf16>, vector<72x2048xf32> -> vector<72x2048xf32>
    %151 = vector.broadcast %15 : vector<1x2048xf32> to vector<72x2048xf32>
    %152 = arith.addf %150, %151 : vector<72x2048xf32>
    %cst_54 = arith.constant 0.000000e+00 : f32
    %153 = vector.broadcast %cst_54 : f32 to vector<72x2048xf32>
    %154 = arith.maximumf %152, %153 : vector<72x2048xf32>
    %155 = arith.truncf %154 : vector<72x2048xf32> to vector<72x2048xbf16>
    %cst_55 = arith.constant dense<0.000000e+00> : vector<72x32xf32>
    %156 = tpu.matmul %155, %11, %cst_55 {dimension_numbers = #tpu.dot_dimension_numbers<[1], [0], [0], [1], [0, 0, 1, 1], [], []>} : vector<72x2048xbf16>, vector<2048x32xbf16>, vector<72x32xf32> -> vector<72x32xf32>
    %157 = vector.broadcast %21 : vector<1x32xf32> to vector<72x32xf32>
    %158 = arith.addf %156, %157 : vector<72x32xf32>
    %159 = arith.addf %148, %158 : vector<72x32xf32>
    %cst_56 = arith.constant dense<0.000000e+00> : vector<72xf32>
    %160 = vector.multi_reduction <add>, %159, %cst_56 [1] : vector<72x32xf32> to vector<72xf32>
    %161 = vector.shape_cast %160 : vector<72xf32> to vector<72x1xf32>
    %cst_57 = arith.constant 3.200000e+01 : f32
    %162 = vector.broadcast %cst_57 : f32 to vector<72x1xf32>
    %163 = arith.divf %161, %162 : vector<72x1xf32>
    %164 = vector.broadcast %163 : vector<72x1xf32> to vector<72x32xf32>
    %165 = arith.subf %159, %164 : vector<72x32xf32>
    %166 = arith.mulf %165, %165 : vector<72x32xf32>
    %cst_58 = arith.constant dense<0.000000e+00> : vector<72xf32>
    %167 = vector.multi_reduction <add>, %166, %cst_58 [1] : vector<72x32xf32> to vector<72xf32>
    %168 = vector.shape_cast %167 : vector<72xf32> to vector<72x1xf32>
    %cst_59 = arith.constant 3.200000e+01 : f32
    %169 = vector.broadcast %cst_59 : f32 to vector<72x1xf32>
    %170 = arith.divf %168, %169 : vector<72x1xf32>
    %171 = vector.broadcast %163 : vector<72x1xf32> to vector<72x32xf32>
    %172 = arith.subf %159, %171 : vector<72x32xf32>
    %cst_60 = arith.constant 9.99999974E-6 : f32
    %173 = vector.broadcast %cst_60 : f32 to vector<72x1xf32>
    %174 = arith.addf %170, %173 : vector<72x1xf32>
    %175 = math.rsqrt %174 : vector<72x1xf32>
    %176 = vector.broadcast %175 : vector<72x1xf32> to vector<72x32xf32>
    %177 = arith.mulf %172, %176 : vector<72x32xf32>
    %178 = vector.broadcast %22 : vector<1x32xf32> to vector<72x32xf32>
    %179 = arith.mulf %177, %178 : vector<72x32xf32>
    %180 = vector.broadcast %23 : vector<1x32xf32> to vector<72x32xf32>
    %181 = arith.addf %179, %180 : vector<72x32xf32>
    %c0_61 = arith.constant 0 : index
    %c0_62 = arith.constant 0 : index
    %182 = vector.load %arg14[%c0_61, %c0_62] : memref<72x32xf32, #tpu.memory_space<vmem>>, vector<72x32xf32>
    tpu.vector_store %arg14[%c0_61, %c0_62], %181 {strides = array<i32>} : memref<72x32xf32, #tpu.memory_space<vmem>>, vector<72x32xf32>,
    %c1_i32 = arith.constant 1 : i32
    %183 = arith.cmpi eq, %arg1, %c1_i32 : i32
    %184 = arith.extui %183 : i1 to i32
    %c0_i32_63 = arith.constant 0 : i32
    %185 = arith.cmpi ne, %184, %c0_i32_63 : i32
    scf.if %185 {
      %c0_64 = arith.constant 0 : index
      %c0_65 = arith.constant 0 : index
      %186 = vector.load %arg12[%c0_64, %c0_65] : memref<8x72xf32, #tpu.memory_space<vmem>>, vector<8x72xf32>
      %cst_66 = arith.constant dense<0.000000e+00> : vector<8x32xf32>
      %187 = tpu.matmul %186, %181, %cst_66 {dimension_numbers = #tpu.dot_dimension_numbers<[1], [0], [0], [1], [0, 0, 1, 1], [], []>} : vector<8x72xf32>, vector<72x32xf32>, vector<8x32xf32> -> vector<8x32xf32>
      %c0_67 = arith.constant 0 : index
      %c0_68 = arith.constant 0 : index
      %188 = vector.load %arg13[%c0_67, %c0_68] : memref<8x32xf32, #tpu.memory_space<vmem>>, vector<8x32xf32>
      tpu.vector_store %arg13[%c0_67, %c0_68], %187 {strides = array<i32>} : memref<8x32xf32, #tpu.memory_space<vmem>>, vector<8x32xf32>,
    } else {
    }
    return
  }
  func.func @transform_0(%arg0: i32, %arg1: i32) -> (i32, i32) {
    %c0_i32 = arith.constant 0 : i32
    %c0_i32_0 = arith.constant 0 : i32
    return %arg0, %c0_i32 : i32, i32
  }
  func.func @transform_1(%arg0: i32, %arg1: i32) -> (i32, i32, i32) {
    %c0_i32 = arith.constant 0 : i32
    %c0_i32_0 = arith.constant 0 : i32
    %c0_i32_1 = arith.constant 0 : i32
    return %arg1, %c0_i32, %c0_i32_0 : i32, i32, i32
  }
  func.func @transform_2(%arg0: i32, %arg1: i32) -> (i32, i32, i32) {
    %c0_i32 = arith.constant 0 : i32
    %c0_i32_0 = arith.constant 0 : i32
    %c0_i32_1 = arith.constant 0 : i32
    return %arg1, %c0_i32, %c0_i32_0 : i32, i32, i32
  }
  func.func @transform_3(%arg0: i32, %arg1: i32) -> (i32, i32, i32) {
    %c0_i32 = arith.constant 0 : i32
    %c0_i32_0 = arith.constant 0 : i32
    %c0_i32_1 = arith.constant 0 : i32
    return %arg1, %c0_i32, %c0_i32_0 : i32, i32, i32
  }
  func.func @transform_4(%arg0: i32, %arg1: i32) -> (i32, i32, i32) {
    %c0_i32 = arith.constant 0 : i32
    %c0_i32_0 = arith.constant 0 : i32
    %c0_i32_1 = arith.constant 0 : i32
    return %arg1, %c0_i32, %c0_i32_0 : i32, i32, i32
  }
  func.func @transform_5(%arg0: i32, %arg1: i32) -> (i32, i32, i32) {
    %c0_i32 = arith.constant 0 : i32
    %c0_i32_0 = arith.constant 0 : i32
    %c0_i32_1 = arith.constant 0 : i32
    return %arg1, %c0_i32, %c0_i32_0 : i32, i32, i32
  }
  func.func @transform_6(%arg0: i32, %arg1: i32) -> (i32, i32, i32) {
    %c0_i32 = arith.constant 0 : i32
    %c0_i32_0 = arith.constant 0 : i32
    %c0_i32_1 = arith.constant 0 : i32
    return %arg1, %c0_i32, %c0_i32_0 : i32, i32, i32
  }
  func.func @transform_7(%arg0: i32, %arg1: i32) -> (i32, i32, i32) {
    %c0_i32 = arith.constant 0 : i32
    %c0_i32_0 = arith.constant 0 : i32
    %c0_i32_1 = arith.constant 0 : i32
    return %arg1, %c0_i32, %c0_i32_0 : i32, i32, i32
  }
  func.func @transform_8(%arg0: i32, %arg1: i32) -> (i32, i32) {
    %c0_i32 = arith.constant 0 : i32
    %c0_i32_0 = arith.constant 0 : i32
    %c0_i32_1 = arith.constant 0 : i32
    return %c0_i32, %c0_i32_0 : i32, i32
  }
  func.func @transform_9(%arg0: i32, %arg1: i32) -> (i32, i32) {
    %c0_i32 = arith.constant 0 : i32
    %c0_i32_0 = arith.constant 0 : i32
    %c0_i32_1 = arith.constant 0 : i32
    return %c0_i32, %c0_i32_0 : i32, i32
  }
  func.func @transform_10(%arg0: i32, %arg1: i32) -> (i32, i32) {
    %c0_i32 = arith.constant 0 : i32
    %c0_i32_0 = arith.constant 0 : i32
    %c0_i32_1 = arith.constant 0 : i32
    return %c0_i32, %c0_i32_0 : i32, i32
  }
  func.func @transform_11(%arg0: i32, %arg1: i32) -> (i32, i32) {
    %c0_i32 = arith.constant 0 : i32
    %c0_i32_0 = arith.constant 0 : i32
    return %arg0, %c0_i32 : i32, i32
  }
}

</mosaic_0001>

<llo_original>
// kernel: temporal_transformer_forward.1
$region0: #{temporal_transformer_forward.1}
  #allocation0 [shape = 'u32[]', space=smem, size = 0x4, offset = 0x4, fixed_abs, tag = 'smem constant byte address 0x4 - core index']
  #allocation1 [shape = 'u32[144,128]{1,0:T(1,128)}', space=vmem, size = 0x12000, scoped, tag = 'internal scratch']
  #allocation2 [shape = 'f32[72,32]{1,0:T(8,128)}', space=vmem, size = 0x9000, scoped, tag = 'scratch operand']
  %s0 = inlined_call_operand.vmem [shape: f32[144,32], index: 0, kind: input, shape index: {}]
  %s1 = inlined_call_operand.vmem [shape: bf16[2,32,96], index: 1, kind: input, shape index: {}]
  %s2 = inlined_call_operand.vmem [shape: bf16[2,32,32], index: 2, kind: input, shape index: {}]
  %s3 = inlined_call_operand.vmem [shape: bf16[2,32,2048], index: 3, kind: input, shape index: {}]
  %s4 = inlined_call_operand.vmem [shape: bf16[2,2048,32], index: 4, kind: input, shape index: {}]
  %s5 = inlined_call_operand.vmem [shape: f32[2,1,96], index: 5, kind: input, shape index: {}]
  %s6 = inlined_call_operand.vmem [shape: f32[2,1,2048], index: 6, kind: input, shape index: {}]
  %s7 = inlined_call_operand.vmem [shape: f32[2,6,32], index: 7, kind: input, shape index: {}]
  %s8 = inlined_call_operand.vmem [shape: f32[4,32], index: 8, kind: input, shape index: {}]
  %s9 = inlined_call_operand.vmem [shape: f32[72,72], index: 9, kind: input, shape index: {}]
  %s10 = inlined_call_operand.vmem [shape: f32[8,72], index: 10, kind: input, shape index: {}]
  %s11 = inlined_call_operand.vmem [shape: f32[16,32], index: 11, kind: output, shape index: {}]
  %s12 = sld [smem:[#allocation0]]
  $region85: #{temporal_transformer_forward.1} parent=0
    _
  %s14 = ssub.s32 1, %s12
  %s15 = scalar_select 0, %s14, %s12
  loop: start=0, step=1, limit=6
  $region2: #{temporal_transformer_forward.1} parent=0 // loop_pre_header
    _
  $region3: #{temporal_transformer_forward.1} parent=0 // loop_header
    %s17 = sphi 0, %s21
    %p18 = scmp.ge.s32.totalorder %s17, 6
    %s24 = sphi 0, %s36
    %s25 = sphi 0, %s32
    %s26 = sphi 0, %s24
    %s27 = sphi 0, %s25
    %s28 = sphi 0, %s26
    %s29 = sphi 0, %s27
    %s39 = sphi 0, %s41
    %s42 = sphi 0, %s39
    %s43 = sphi 0, %s42
    %s59 = sphi 0, %s43
    %s65 = sphi 0, %s67
    %s68 = sphi 0, %s65
    %s69 = sphi 0, %s68
    %s85 = sphi 0, %s69
    %s91 = sphi 0, %s93
    %s94 = sphi 0, %s91
    %s95 = sphi 0, %s94
    %s111 = sphi 0, %s95
    %s117 = sphi 0, %s119
    %s120 = sphi 0, %s117
    %s121 = sphi 0, %s120
    %s137 = sphi 0, %s121
    %s143 = sphi 0, %s145
    %s146 = sphi 0, %s143
    %s147 = sphi 0, %s146
    %s163 = sphi 0, %s147
    %s169 = sphi 0, %s171
    %s172 = sphi 0, %s169
    %s173 = sphi 0, %s172
    %s189 = sphi 0, %s173
    %s195 = sphi 0, %s197
    %s198 = sphi 0, %s195
    %s199 = sphi 0, %s198
    %s215 = sphi 0, %s199
    %s221 = sphi 0, %s223
    %s224 = sphi 0, %s221
    %s225 = sphi 0, %s224
    %s241 = sphi 0, %s225
    %s245 = sphi 0, %s245
    %s247 = sphi 0, %s245
    %s248 = sphi 0, %s247
    %s262 = sphi 0, %s248
    %s266 = sphi 0, %s266
    %s268 = sphi 0, %s266
    %s269 = sphi 0, %s268
    %s283 = sphi 0, %s269
    %s287 = sphi 0, %s287
    %s289 = sphi 0, %s287
    %s290 = sphi 0, %s289
    %s304 = sphi 0, %s290
    %s310 = sphi 0, %s312
    %s313 = sphi 0, %s310
    %s314 = sphi 0, %s313
    %s330 = sphi 0, %s314
  $region4: #{temporal_transformer_forward.1} parent=0 // loop_header_branch
    %20 = sbr.rel (%p18) target = $region8
  $region5: #{temporal_transformer_forward.1} parent=0 // loop_body
    %s22 = ssub.s32 %s17, 1
    %s23 = ssub.s32 %s17, 2
    %s30 = sadd.s32 1, %s25
    %p31 = scmp.ge.s32.totalorder %s30, 2
    %s32 = scalar_select %p31, 0, %s30
    %s33 = sadd.s32 1, %s24
    %s34 = scalar_select %p31, %s33, %s24
    %p35 = scmp.ge.s32.totalorder %s34, 2
    %s36 = scalar_select %p35, 0, %s34
    %s37 = ssub.s32 %s24, %s36
    %p38 = scmp.eq.s32.totalorder %s37, 0
    %s40 = sadd.s32 %s39, 1
    %s41 = scalar_select %p38, %s39, %s40
    %p44 = pneg %p38
    %p45 = scmp.eq.s32.totalorder %s17, 3
    %p46 = por %p44, %p45
    %p47 = scmp.ne.s32.totalorder %s39, %s42
    %p48 = scmp.eq.s32.totalorder %s17, 0
    %p49 = por %p47, %p48
    %p50 = scmp.ne.s32.totalorder %s39, %s42
    %p51 = scmp.eq.s32.totalorder %s22, 3
    %p52 = por %p50, %p51
    %p53 = scmp.ne.s32.totalorder %s42, %s43
    %p54 = scmp.eq.s32.totalorder %s22, 0
    %p55 = por %p53, %p54
    %p56 = scmp.ne.s32.totalorder %s42, %s43
    %p57 = scmp.eq.s32.totalorder %s23, 3
    %p58 = por %p56, %p57
    %p60 = scmp.ne.s32.totalorder %s43, %s59
    %p61 = scmp.eq.s32.totalorder %s23, 0
    %p62 = por %p60, %p61
    %s63 = ssub.s32 %s25, %s32
    %p64 = scmp.eq.s32.totalorder %s63, 0
    %s66 = sadd.s32 %s65, 1
    %s67 = scalar_select %p64, %s65, %s66
    %p70 = pneg %p64
    %p71 = scmp.eq.s32.totalorder %s17, 3
    %p72 = por %p70, %p71
    %p73 = scmp.ne.s32.totalorder %s65, %s68
    %p74 = scmp.eq.s32.totalorder %s17, 0
    %p75 = por %p73, %p74
    %p76 = scmp.ne.s32.totalorder %s65, %s68
    %p77 = scmp.eq.s32.totalorder %s22, 3
    %p78 = por %p76, %p77
    %p79 = scmp.ne.s32.totalorder %s68, %s69
    %p80 = scmp.eq.s32.totalorder %s22, 0
    %p81 = por %p79, %p80
    %p82 = scmp.ne.s32.totalorder %s68, %s69
    %p83 = scmp.eq.s32.totalorder %s23, 3
    %p84 = por %p82, %p83
    %p86 = scmp.ne.s32.totalorder %s69, %s85
    %p87 = scmp.eq.s32.totalorder %s23, 0
    %p88 = por %p86, %p87
    %s89 = ssub.s32 %s25, %s32
    %p90 = scmp.eq.s32.totalorder %s89, 0
    %s92 = sadd.s32 %s91, 1
    %s93 = scalar_select %p90, %s91, %s92
    %p96 = pneg %p90
    %p97 = scmp.eq.s32.totalorder %s17, 3
    %p98 = por %p96, %p97
    %p99 = scmp.ne.s32.totalorder %s91, %s94
    %p100 = scmp.eq.s32.totalorder %s17, 0
    %p101 = por %p99, %p100
    %p102 = scmp.ne.s32.totalorder %s91, %s94
    %p103 = scmp.eq.s32.totalorder %s22, 3
    %p104 = por %p102, %p103
    %p105 = scmp.ne.s32.totalorder %s94, %s95
    %p106 = scmp.eq.s32.totalorder %s22, 0
    %p107 = por %p105, %p106
    %p108 = scmp.ne.s32.totalorder %s94, %s95
    %p109 = scmp.eq.s32.totalorder %s23, 3
    %p110 = por %p108, %p109
    %p112 = scmp.ne.s32.totalorder %s95, %s111
    %p113 = scmp.eq.s32.totalorder %s23, 0
    %p114 = por %p112, %p113
    %s115 = ssub.s32 %s25, %s32
    %p116 = scmp.eq.s32.totalorder %s115, 0
    %s118 = sadd.s32 %s117, 1
    %s119 = scalar_select %p116, %s117, %s118
    %p122 = pneg %p116
    %p123 = scmp.eq.s32.totalorder %s17, 3
    %p124 = por %p122, %p123
    %p125 = scmp.ne.s32.totalorder %s117, %s120
    %p126 = scmp.eq.s32.totalorder %s17, 0
    %p127 = por %p125, %p126
    %p128 = scmp.ne.s32.totalorder %s117, %s120
    %p129 = scmp.eq.s32.totalorder %s22, 3
    %p130 = por %p128, %p129
    %p131 = scmp.ne.s32.totalorder %s120, %s121
    %p132 = scmp.eq.s32.totalorder %s22, 0
    %p133 = por %p131, %p132
    %p134 = scmp.ne.s32.totalorder %s120, %s121
    %p135 = scmp.eq.s32.totalorder %s23, 3
    %p136 = por %p134, %p135
    %p138 = scmp.ne.s32.totalorder %s121, %s137
    %p139 = scmp.eq.s32.totalorder %s23, 0
    %p140 = por %p138, %p139
    %s141 = ssub.s32 %s25, %s32
    %p142 = scmp.eq.s32.totalorder %s141, 0
    %s144 = sadd.s32 %s143, 1
    %s145 = scalar_select %p142, %s143, %s144
    %p148 = pneg %p142
    %p149 = scmp.eq.s32.totalorder %s17, 3
    %p150 = por %p148, %p149
    %p151 = scmp.ne.s32.totalorder %s143, %s146
    %p152 = scmp.eq.s32.totalorder %s17, 0
    %p153 = por %p151, %p152
    %p154 = scmp.ne.s32.totalorder %s143, %s146
    %p155 = scmp.eq.s32.totalorder %s22, 3
    %p156 = por %p154, %p155
    %p157 = scmp.ne.s32.totalorder %s146, %s147
    %p158 = scmp.eq.s32.totalorder %s22, 0
    %p159 = por %p157, %p158
    %p160 = scmp.ne.s32.totalorder %s146, %s147
    %p161 = scmp.eq.s32.totalorder %s23, 3
    %p162 = por %p160, %p161
    %p164 = scmp.ne.s32.totalorder %s147, %s163
    %p165 = scmp.eq.s32.totalorder %s23, 0
    %p166 = por %p164, %p165
    %s167 = ssub.s32 %s25, %s32
    %p168 = scmp.eq.s32.totalorder %s167, 0
    %s170 = sadd.s32 %s169, 1
    %s171 = scalar_select %p168, %s169, %s170
    %p174 = pneg %p168
    %p175 = scmp.eq.s32.totalorder %s17, 3
    %p176 = por %p174, %p175
    %p177 = scmp.ne.s32.totalorder %s169, %s172
    %p178 = scmp.eq.s32.totalorder %s17, 0
    %p179 = por %p177, %p178
    %p180 = scmp.ne.s32.totalorder %s169, %s172
    %p181 = scmp.eq.s32.totalorder %s22, 3
    %p182 = por %p180, %p181
    %p183 = scmp.ne.s32.totalorder %s172, %s173
    %p184 = scmp.eq.s32.totalorder %s22, 0
    %p185 = por %p183, %p184
    %p186 = scmp.ne.s32.totalorder %s172, %s173
    %p187 = scmp.eq.s32.totalorder %s23, 3
    %p188 = por %p186, %p187
    %p190 = scmp.ne.s32.totalorder %s173, %s189
    %p191 = scmp.eq.s32.totalorder %s23, 0
    %p192 = por %p190, %p191
    %s193 = ssub.s32 %s25, %s32
    %p194 = scmp.eq.s32.totalorder %s193, 0
    %s196 = sadd.s32 %s195, 1
    %s197 = scalar_select %p194, %s195, %s196
    %p200 = pneg %p194
    %p201 = scmp.eq.s32.totalorder %s17, 3
    %p202 = por %p200, %p201
    %p203 = scmp.ne.s32.totalorder %s195, %s198
    %p204 = scmp.eq.s32.totalorder %s17, 0
    %p205 = por %p203, %p204
    %p206 = scmp.ne.s32.totalorder %s195, %s198
    %p207 = scmp.eq.s32.totalorder %s22, 3
    %p208 = por %p206, %p207
    %p209 = scmp.ne.s32.totalorder %s198, %s199
    %p210 = scmp.eq.s32.totalorder %s22, 0
    %p211 = por %p209, %p210
    %p212 = scmp.ne.s32.totalorder %s198, %s199
    %p213 = scmp.eq.s32.totalorder %s23, 3
    %p214 = por %p212, %p213
    %p216 = scmp.ne.s32.totalorder %s199, %s215
    %p217 = scmp.eq.s32.totalorder %s23, 0
    %p218 = por %p216, %p217
    %s219 = ssub.s32 %s25, %s32
    %p220 = scmp.eq.s32.totalorder %s219, 0
    %s222 = sadd.s32 %s221, 1
    %s223 = scalar_select %p220, %s221, %s222
    %p226 = pneg %p220
    %p227 = scmp.eq.s32.totalorder %s17, 3
    %p228 = por %p226, %p227
    %p229 = scmp.ne.s32.totalorder %s221, %s224
    %p230 = scmp.eq.s32.totalorder %s17, 0
    %p231 = por %p229, %p230
    %p232 = scmp.ne.s32.totalorder %s221, %s224
    %p233 = scmp.eq.s32.totalorder %s22, 3
    %p234 = por %p232, %p233
    %p235 = scmp.ne.s32.totalorder %s224, %s225
    %p236 = scmp.eq.s32.totalorder %s22, 0
    %p237 = por %p235, %p236
    %p238 = scmp.ne.s32.totalorder %s224, %s225
    %p239 = scmp.eq.s32.totalorder %s23, 3
    %p240 = por %p238, %p239
    %p242 = scmp.ne.s32.totalorder %s225, %s241
    %p243 = scmp.eq.s32.totalorder %s23, 0
    %p244 = por %p242, %p243
    %s246 = sadd.s32 %s245, 1
    %p249 = scmp.eq.s32.totalorder %s17, 3
    %p250 = scmp.ne.s32.totalorder %s245, %s247
    %p251 = scmp.eq.s32.totalorder %s17, 0
    %p252 = por %p250, %p251
    %p253 = scmp.ne.s32.totalorder %s245, %s247
    %p254 = scmp.eq.s32.totalorder %s22, 3
    %p255 = por %p253, %p254
    %p256 = scmp.ne.s32.totalorder %s247, %s248
    %p257 = scmp.eq.s32.totalorder %s22, 0
    %p258 = por %p256, %p257
    %p259 = scmp.ne.s32.totalorder %s247, %s248
    %p260 = scmp.eq.s32.totalorder %s23, 3
    %p261 = por %p259, %p260
    %p263 = scmp.ne.s32.totalorder %s248, %s262
    %p264 = scmp.eq.s32.totalorder %s23, 0
    %p265 = por %p263, %p264
    %s267 = sadd.s32 %s266, 1
    %p270 = scmp.eq.s32.totalorder %s17, 3
    %p271 = scmp.ne.s32.totalorder %s266, %s268
    %p272 = scmp.eq.s32.totalorder %s17, 0
    %p273 = por %p271, %p272
    %p274 = scmp.ne.s32.totalorder %s266, %s268
    %p275 = scmp.eq.s32.totalorder %s22, 3
    %p276 = por %p274, %p275
    %p277 = scmp.ne.s32.totalorder %s268, %s269
    %p278 = scmp.eq.s32.totalorder %s22, 0
    %p279 = por %p277, %p278
    %p280 = scmp.ne.s32.totalorder %s268, %s269
    %p281 = scmp.eq.s32.totalorder %s23, 3
    %p282 = por %p280, %p281
    %p284 = scmp.ne.s32.totalorder %s269, %s283
    %p285 = scmp.eq.s32.totalorder %s23, 0
    %p286 = por %p284, %p285
    %s288 = sadd.s32 %s287, 1
    %p291 = scmp.eq.s32.totalorder %s17, 3
    %p292 = scmp.ne.s32.totalorder %s287, %s289
    %p293 = scmp.eq.s32.totalorder %s17, 0
    %p294 = por %p292, %p293
    %p295 = scmp.ne.s32.totalorder %s287, %s289
    %p296 = scmp.eq.s32.totalorder %s22, 3
    %p297 = por %p295, %p296
    %p298 = scmp.ne.s32.totalorder %s289, %s290
    %p299 = scmp.eq.s32.totalorder %s22, 0
    %p300 = por %p298, %p299
    %p301 = scmp.ne.s32.totalorder %s289, %s290
    %p302 = scmp.eq.s32.totalorder %s23, 3
    %p303 = por %p301, %p302
    %p305 = scmp.ne.s32.totalorder %s290, %s304
    %p306 = scmp.eq.s32.totalorder %s23, 0
    %p307 = por %p305, %p306
    %s308 = ssub.s32 %s24, %s36
    %p309 = scmp.eq.s32.totalorder %s308, 0
    %s311 = sadd.s32 %s310, 1
    %s312 = scalar_select %p309, %s310, %s311
    %p315 = pneg %p309
    %p316 = scmp.eq.s32.totalorder %s17, 3
    %p317 = por %p315, %p316
    %p318 = scmp.ne.s32.totalorder %s310, %s313
    %p319 = scmp.eq.s32.totalorder %s17, 0
    %p320 = por %p318, %p319
    %p321 = scmp.ne.s32.totalorder %s310, %s313
    %p322 = scmp.eq.s32.totalorder %s22, 3
    %p323 = por %p321, %p322
    %p324 = scmp.ne.s32.totalorder %s313, %s314
    %p325 = scmp.eq.s32.totalorder %s22, 0
    %p326 = por %p324, %p325
    %p327 = scmp.ne.s32.totalorder %s313, %s314
    %p328 = scmp.eq.s32.totalorder %s23, 3
    %p329 = por %p327, %p328
    %p331 = scmp.ne.s32.totalorder %s314, %s330
    %p332 = scmp.eq.s32.totalorder %s23, 0
    %p333 = por %p331, %p332
    %p334 = scmp.le.s32.totalorder 1, %s17
    %p335 = scmp.lt.s32.totalorder %s17, 5
    %p336 = pnand %p334, %p335
    %p337 = pneg %p336
    // Predicated region
    $region9: #{temporal_transformer_forward.1} parent=5 // pred_check
      _
    $region10: #{temporal_transformer_forward.1} parent=5 // pred_check_branch
      %339 = sbr.rel (%p336) target = $region12
    $region11: #{temporal_transformer_forward.1} parent=5 // pred_region
      %s340 = ssub.s32 %s17, 1
      // Predicated region
      $region13: #{temporal_transformer_forward.1} parent=11 // pred_check
        %p341 = pneg %p258
      $region14: #{temporal_transformer_forward.1} parent=11 // pred_check_branch
        %343 = sbr.rel (%p341) target = $region16
      $region15: #{temporal_transformer_forward.1} parent=11 // pred_region
        _
      $region16: #{temporal_transformer_forward.1} parent=11 // pred_fallthru
        _
      // Predicated region
      $region17: #{temporal_transformer_forward.1} parent=11 // pred_check
        %p344 = pneg %p279
      $region18: #{temporal_transformer_forward.1} parent=11 // pred_check_branch
        %346 = sbr.rel (%p344) target = $region20
      $region19: #{temporal_transformer_forward.1} parent=11 // pred_region
        _
      $region20: #{temporal_transformer_forward.1} parent=11 // pred_fallthru
        _
      // Predicated region
      $region21: #{temporal_transformer_forward.1} parent=11 // pred_check
        %p347 = pneg %p300
      $region22: #{temporal_transformer_forward.1} parent=11 // pred_check_branch
        %349 = sbr.rel (%p347) target = $region24
      $region23: #{temporal_transformer_forward.1} parent=11 // pred_region
        _
      $region24: #{temporal_transformer_forward.1} parent=11 // pred_fallthru
        _
    $region12: #{temporal_transformer_forward.1} parent=5 // pred_fallthru
      _
    %p350 = scmp.lt.s32.totalorder %s17, 4
    // Predicated region
    $region25: #{temporal_transformer_forward.1} parent=5 // pred_check
      %p351 = pneg %p350
    $region26: #{temporal_transformer_forward.1} parent=5 // pred_check_branch
      %353 = sbr.rel (%p351) target = $region28
    $region27: #{temporal_transformer_forward.1} parent=5 // pred_region
      // Predicated region
      $region29: #{temporal_transformer_forward.1} parent=27 // pred_check
        %p354 = pneg %p49
      $region30: #{temporal_transformer_forward.1} parent=27 // pred_check_branch
        %356 = sbr.rel (%p354) target = $region32
      $region31: #{temporal_transformer_forward.1} parent=27 // pred_region
        %s357 = smul.u32 9, %s24
        %p358 = scmp.lt.s32.totalorder %s357, 17
        %s359 = scalar_select %p358, %s357, 17
        %s360 = smul.addr %s359, 8
        %s361 = scalar_lea.vmem %s0, %s360
        %s362 = smul.u32 9, %s24
      $region32: #{temporal_transformer_forward.1} parent=27 // pred_fallthru
        _
      // Predicated region
      $region33: #{temporal_transformer_forward.1} parent=27 // pred_check
        %p363 = pneg %p75
      $region34: #{temporal_transformer_forward.1} parent=27 // pred_check_branch
        %365 = sbr.rel (%p363) target = $region36
      $region35: #{temporal_transformer_forward.1} parent=27 // pred_region
        %p366 = scmp.lt.s32.totalorder %s25, 1
        %s367 = scalar_select %p366, %s25, 1
        %s368 = smul.addr %s367, 4
        %s369 = smul.addr %s368, 4
        %s370 = scalar_lea.vmem %s1, %s369
      $region36: #{temporal_transformer_forward.1} parent=27 // pred_fallthru
        _
      // Predicated region
      $region37: #{temporal_transformer_forward.1} parent=27 // pred_check
        %p371 = pneg %p101
      $region38: #{temporal_transformer_forward.1} parent=27 // pred_check_branch
        %373 = sbr.rel (%p371) target = $region40
      $region39: #{temporal_transformer_forward.1} parent=27 // pred_region
        %p374 = scmp.lt.s32.totalorder %s25, 1
        %s375 = scalar_select %p374, %s25, 1
        %s376 = smul.addr %s375, 4
        %s377 = smul.addr %s376, 4
        %s378 = scalar_lea.vmem %s2, %s377
      $region40: #{temporal_transformer_forward.1} parent=27 // pred_fallthru
        _
      // Predicated region
      $region41: #{temporal_transformer_forward.1} parent=27 // pred_check
        %p379 = pneg %p127
      $region42: #{temporal_transformer_forward.1} parent=27 // pred_check_branch
        %381 = sbr.rel (%p379) target = $region44
      $region43: #{temporal_transformer_forward.1} parent=27 // pred_region
        %p382 = scmp.lt.s32.totalorder %s25, 1
        %s383 = scalar_select %p382, %s25, 1
        %s384 = smul.addr %s383, 64
        %s385 = smul.addr %s384, 4
        %s386 = scalar_lea.vmem %s3, %s385
      $region44: #{temporal_transformer_forward.1} parent=27 // pred_fallthru
        _
      // Predicated region
      $region45: #{temporal_transformer_forward.1} parent=27 // pred_check
        %p387 = pneg %p153
      $region46: #{temporal_transformer_forward.1} parent=27 // pred_check_branch
        %389 = sbr.rel (%p387) target = $region48
      $region47: #{temporal_transformer_forward.1} parent=27 // pred_region
        %p390 = scmp.lt.s32.totalorder %s25, 1
        %s391 = scalar_select %p390, %s25, 1
        %s392 = smul.addr %s391, 256
        %s393 = smul.addr %s392, 4
        %s394 = scalar_lea.vmem %s4, %s393
      $region48: #{temporal_transformer_forward.1} parent=27 // pred_fallthru
        _
      // Predicated region
      $region49: #{temporal_transformer_forward.1} parent=27 // pred_check
        %p395 = pneg %p179
      $region50: #{temporal_transformer_forward.1} parent=27 // pred_check_branch
        %397 = sbr.rel (%p395) target = $region52
      $region51: #{temporal_transformer_forward.1} parent=27 // pred_region
        %p398 = scmp.lt.s32.totalorder %s25, 1
        %s399 = scalar_select %p398, %s25, 1
        %s400 = scalar_lea.vmem %s5, %s399
      $region52: #{temporal_transformer_forward.1} parent=27 // pred_fallthru
        _
      // Predicated region
      $region53: #{temporal_transformer_forward.1} parent=27 // pred_check
        %p401 = pneg %p205
      $region54: #{temporal_transformer_forward.1} parent=27 // pred_check_branch
        %403 = sbr.rel (%p401) target = $region56
      $region55: #{temporal_transformer_forward.1} parent=27 // pred_region
        %p404 = scmp.lt.s32.totalorder %s25, 1
        %s405 = scalar_select %p404, %s25, 1
        %s406 = smul.addr %s405, 16
        %s407 = scalar_lea.vmem %s6, %s406
      $region56: #{temporal_transformer_forward.1} parent=27 // pred_fallthru
        _
      // Predicated region
      $region57: #{temporal_transformer_forward.1} parent=27 // pred_check
        %p408 = pneg %p231
      $region58: #{temporal_transformer_forward.1} parent=27 // pred_check_branch
        %410 = sbr.rel (%p408) target = $region60
      $region59: #{temporal_transformer_forward.1} parent=27 // pred_region
        %p411 = scmp.lt.s32.totalorder %s25, 1
        %s412 = scalar_select %p411, %s25, 1
        %s413 = smul.addr %s412, 8
        %s414 = scalar_lea.vmem %s7, %s413
      $region60: #{temporal_transformer_forward.1} parent=27 // pred_fallthru
        _
    $region28: #{temporal_transformer_forward.1} parent=5 // pred_fallthru
      _
    %p415 = scmp.le.s32.totalorder 1, %s17
    %p416 = scmp.lt.s32.totalorder %s17, 5
    %p417 = pnand %p415, %p416
    %p418 = pneg %p417
    // Predicated region
    $region61: #{temporal_transformer_forward.1} parent=5 // pred_check
      _
    $region62: #{temporal_transformer_forward.1} parent=5 // pred_check_branch
      %420 = sbr.rel (%p417) target = $region64
    $region63: #{temporal_transformer_forward.1} parent=5 // pred_region
      %s421 = ssub.s32 %s17, 1
      %s422 = smul.u32 9, %s26
      %p423 = scmp.lt.s32.totalorder %s422, 17
      %s424 = scalar_select %p423, %s422, 17
      %s425 = smul.addr %s424, 8
      %s426 = scalar_lea.vmem %s0, %s425
      %p427 = pneg %p55
      %p428 = pneg %p52
      %p429 = scmp.lt.s32.totalorder %s27, 1
      %s430 = scalar_select %p429, %s27, 1
      %s431 = smul.addr %s430, 4
      %s432 = smul.addr %s431, 4
      %s433 = scalar_lea.vmem %s1, %s432
      %p434 = pneg %p81
      %p435 = pneg %p78
      %p436 = scmp.lt.s32.totalorder %s27, 1
      %s437 = scalar_select %p436, %s27, 1
      %s438 = smul.addr %s437, 4
      %s439 = smul.addr %s438, 4
      %s440 = scalar_lea.vmem %s2, %s439
      %p441 = pneg %p107
      %p442 = pneg %p104
      %p443 = scmp.lt.s32.totalorder %s27, 1
      %s444 = scalar_select %p443, %s27, 1
      %s445 = smul.addr %s444, 64
      %s446 = smul.addr %s445, 4
      %s447 = scalar_lea.vmem %s3, %s446
      %p448 = pneg %p133
      %p449 = pneg %p130
      %p450 = scmp.lt.s32.totalorder %s27, 1
      %s451 = scalar_select %p450, %s27, 1
      %s452 = smul.addr %s451, 256
      %s453 = smul.addr %s452, 4
      %s454 = scalar_lea.vmem %s4, %s453
      %p455 = pneg %p159
      %p456 = pneg %p156
      %p457 = scmp.lt.s32.totalorder %s27, 1
      %s458 = scalar_select %p457, %s27, 1
      %s459 = scalar_lea.vmem %s5, %s458
      %p460 = pneg %p185
      %p461 = pneg %p182
      %p462 = scmp.lt.s32.totalorder %s27, 1
      %s463 = scalar_select %p462, %s27, 1
      %s464 = smul.addr %s463, 16
      %s465 = scalar_lea.vmem %s6, %s464
      %p466 = pneg %p211
      %p467 = pneg %p208
      %p468 = scmp.lt.s32.totalorder %s27, 1
      %s469 = scalar_select %p468, %s27, 1
      %s470 = smul.addr %s469, 8
      %s471 = scalar_lea.vmem %s7, %s470
      %p472 = pneg %p237
      %p473 = pneg %p234
      %p474 = pneg %p258
      %p475 = pneg %p255
      %p476 = pneg %p279
      %p477 = pneg %p276
      %p478 = pneg %p300
      %p479 = pneg %p297
      %p480 = pneg %p326
      %p481 = pneg %p323
      %p482 = scmp.lt.s32.totalorder %s26, 1
      %s483 = scalar_select %p482, %s26, 1
      %s484 = smul.addr %s483, 8
      %s485 = scalar_lea.vmem %s11, %s484
      %s486 = smul.u32 9, %s26
      %p487 = scmp.lt.s32.totalorder %s486, 17
      %s488 = scalar_select %p487, %s486, 17
      %s489 = smul.addr %s488, 8
      %s490 = scalar_lea.vmem %s0, %s489
      %s491 = smul.u32 9, %s26
      %p492 = scmp.lt.s32.totalorder %s27, 1
      %s493 = scalar_select %p492, %s27, 1
      %s494 = smul.addr %s493, 4
      %s495 = smul.addr %s494, 4
      %s496 = scalar_lea.vmem %s1, %s495
      %p497 = scmp.lt.s32.totalorder %s27, 1
      %s498 = scalar_select %p497, %s27, 1
      %s499 = smul.addr %s498, 4
      %s500 = smul.addr %s499, 4
      %s501 = scalar_lea.vmem %s2, %s500
      %p502 = scmp.lt.s32.totalorder %s27, 1
      %s503 = scalar_select %p502, %s27, 1
      %s504 = smul.addr %s503, 64
      %s505 = smul.addr %s504, 4
      %s506 = scalar_lea.vmem %s3, %s505
      %p507 = scmp.lt.s32.totalorder %s27, 1
      %s508 = scalar_select %p507, %s27, 1
      %s509 = smul.addr %s508, 256
      %s510 = smul.addr %s509, 4
      %s511 = scalar_lea.vmem %s4, %s510
      %p512 = scmp.lt.s32.totalorder %s27, 1
      %s513 = scalar_select %p512, %s27, 1
      %s514 = scalar_lea.vmem %s5, %s513
      %p515 = scmp.lt.s32.totalorder %s27, 1
      %s516 = scalar_select %p515, %s27, 1
      %s517 = smul.addr %s516, 16
      %s518 = scalar_lea.vmem %s6, %s517
      %p519 = scmp.lt.s32.totalorder %s27, 1
      %s520 = scalar_select %p519, %s27, 1
      %s521 = smul.addr %s520, 8
      %s522 = scalar_lea.vmem %s7, %s521
      %p523 = scmp.lt.s32.totalorder %s26, 1
      %s524 = scalar_select %p523, %s26, 1
      %s525 = smul.addr %s524, 8
      %s526 = scalar_lea.vmem %s11, %s525
      %p528 = scmp.eq.s32.totalorder %s27, 0
      // Predicated region
      $region65: #{temporal_transformer_forward.1} parent=63 // pred_check
        %p529 = pneg %p528
      $region66: #{temporal_transformer_forward.1} parent=63 // pred_check_branch
        %531 = sbr.rel (%p529) target = $region68
      $region67: #{temporal_transformer_forward.1} parent=63 // pred_region
        %v532 = vld [vmem:[%s490] sm:$0xff]
        %v533 = vld [vmem:[%s490 + $0x8] sm:$0xff]
        %v534 = vld [vmem:[%s490 + $0x10] sm:$0xff]
        %v535 = vld [vmem:[%s490 + $0x18] sm:$0xff]
        %v536 = vld [vmem:[%s490 + $0x20] sm:$0xff]
        %v537 = vld [vmem:[%s490 + $0x28] sm:$0xff]
        %v538 = vld [vmem:[%s490 + $0x30] sm:$0xff]
        %v539 = vld [vmem:[%s490 + $0x38] sm:$0xff]
        %v540 = vld [vmem:[%s490 + $0x40] sm:$0xff]
        %vm541 = vcmask 261120
        %542 = vst.msk [vmem:[#allocation2] sm:$0xff] %vm541, %v532
        %543 = vst.msk [vmem:[#allocation2 + $0x8] sm:$0xff] %vm541, %v533
        %544 = vst.msk [vmem:[#allocation2 + $0x10] sm:$0xff] %vm541, %v534
        %545 = vst.msk [vmem:[#allocation2 + $0x18] sm:$0xff] %vm541, %v535
        %546 = vst.msk [vmem:[#allocation2 + $0x20] sm:$0xff] %vm541, %v536
        %547 = vst.msk [vmem:[#allocation2 + $0x28] sm:$0xff] %vm541, %v537
        %548 = vst.msk [vmem:[#allocation2 + $0x30] sm:$0xff] %vm541, %v538
        %549 = vst.msk [vmem:[#allocation2 + $0x38] sm:$0xff] %vm541, %v539
        %550 = vst.msk [vmem:[#allocation2 + $0x40] sm:$0xff] %vm541, %v540
      $region68: #{temporal_transformer_forward.1} parent=63 // pred_fallthru
        _
      %v551 = vld [vmem:[#allocation2] sm:$0xff]
      %v552 = vld [vmem:[#allocation2 + $0x8] sm:$0xff]
      %v553 = vld [vmem:[#allocation2 + $0x10] sm:$0xff]
      %v554 = vld [vmem:[#allocation2 + $0x18] sm:$0xff]
      %v555 = vld [vmem:[#allocation2 + $0x20] sm:$0xff]
      %v556 = vld [vmem:[#allocation2 + $0x28] sm:$0xff]
      %v557 = vld [vmem:[#allocation2 + $0x30] sm:$0xff]
      %v558 = vld [vmem:[#allocation2 + $0x38] sm:$0xff]
      %v559 = vld [vmem:[#allocation2 + $0x40] sm:$0xff]
      %v560 = vld [vmem:[%s496] sm:$0xf]
      %v561 = vld [vmem:[%s496 + $0x4] sm:$0xf]
      %v562 = vld [vmem:[%s496 + $0x8] sm:$0xf]
      %v563 = vld [vmem:[%s496 + $0xc] sm:$0xf]
      %v564 = vld [vmem:[%s501] sm:$0xf]
      %v565 = vld [vmem:[%s501 + $0x4] sm:$0xf]
      %v566 = vld [vmem:[%s501 + $0x8] sm:$0xf]
      %v567 = vld [vmem:[%s501 + $0xc] sm:$0xf]
      %v568 = vld [vmem:[%s506] sm:$0xff]
      %v569 = vld [vmem:[%s506 + $0x8] sm:$0xff]
      %v570 = vld [vmem:[%s506 + $0x10] sm:$0xff]
      %v571 = vld [vmem:[%s506 + $0x18] sm:$0xff]
      %v572 = vld [vmem:[%s506 + $0x20] sm:$0xff]
      %v573 = vld [vmem:[%s506 + $0x28] sm:$0xff]
      %v574 = vld [vmem:[%s506 + $0x30] sm:$0xff]
      %v575 = vld [vmem:[%s506 + $0x38] sm:$0xff]
      %v576 = vld [vmem:[%s506 + $0x40] sm:$0xff]
      %v577 = vld [vmem:[%s506 + $0x48] sm:$0xff]
      %v578 = vld [vmem:[%s506 + $0x50] sm:$0xff]
      %v579 = vld [vmem:[%s506 + $0x58] sm:$0xff]
      %v580 = vld [vmem:[%s506 + $0x60] sm:$0xff]
      %v581 = vld [vmem:[%s506 + $0x68] sm:$0xff]
      %v582 = vld [vmem:[%s506 + $0x70] sm:$0xff]
      %v583 = vld [vmem:[%s506 + $0x78] sm:$0xff]
      %v584 = vld [vmem:[%s506 + $0x80] sm:$0xff]
      %v585 = vld [vmem:[%s506 + $0x88] sm:$0xff]
      %v586 = vld [vmem:[%s506 + $0x90] sm:$0xff]
      %v587 = vld [vmem:[%s506 + $0x98] sm:$0xff]
      %v588 = vld [vmem:[%s506 + $0xa0] sm:$0xff]
      %v589 = vld [vmem:[%s506 + $0xa8] sm:$0xff]
      %v590 = vld [vmem:[%s506 + $0xb0] sm:$0xff]
      %v591 = vld [vmem:[%s506 + $0xb8] sm:$0xff]
      %v592 = vld [vmem:[%s506 + $0xc0] sm:$0xff]
      %v593 = vld [vmem:[%s506 + $0xc8] sm:$0xff]
      %v594 = vld [vmem:[%s506 + $0xd0] sm:$0xff]
      %v595 = vld [vmem:[%s506 + $0xd8] sm:$0xff]
      %v596 = vld [vmem:[%s506 + $0xe0] sm:$0xff]
      %v597 = vld [vmem:[%s506 + $0xe8] sm:$0xff]
      %v598 = vld [vmem:[%s506 + $0xf0] sm:$0xff]
      %v599 = vld [vmem:[%s506 + $0xf8] sm:$0xff]
      %v600 = vld [vmem:[%s511] sm:$0xf]
      %v601 = vld [vmem:[%s511 + $0x4] sm:$0xf]
      %v602 = vld [vmem:[%s511 + $0x8] sm:$0xf]
      %v603 = vld [vmem:[%s511 + $0xc] sm:$0xf]
      %v604 = vld [vmem:[%s511 + $0x10] sm:$0xf]
      %v605 = vld [vmem:[%s511 + $0x14] sm:$0xf]
      %v606 = vld [vmem:[%s511 + $0x18] sm:$0xf]
      %v607 = vld [vmem:[%s511 + $0x1c] sm:$0xf]
      %v608 = vld [vmem:[%s511 + $0x20] sm:$0xf]
      %v609 = vld [vmem:[%s511 + $0x24] sm:$0xf]
      %v610 = vld [vmem:[%s511 + $0x28] sm:$0xf]
      %v611 = vld [vmem:[%s511 + $0x2c] sm:$0xf]
      %v612 = vld [vmem:[%s511 + $0x30] sm:$0xf]
      %v613 = vld [vmem:[%s511 + $0x34] sm:$0xf]
      %v614 = vld [vmem:[%s511 + $0x38] sm:$0xf]
      %v615 = vld [vmem:[%s511 + $0x3c] sm:$0xf]
      %v616 = vld [vmem:[%s511 + $0x40] sm:$0xf]
      %v617 = vld [vmem:[%s511 + $0x44] sm:$0xf]
      %v618 = vld [vmem:[%s511 + $0x48] sm:$0xf]
      %v619 = vld [vmem:[%s511 + $0x4c] sm:$0xf]
      %v620 = vld [vmem:[%s511 + $0x50] sm:$0xf]
      %v621 = vld [vmem:[%s511 + $0x54] sm:$0xf]
      %v622 = vld [vmem:[%s511 + $0x58] sm:$0xf]
      %v623 = vld [vmem:[%s511 + $0x5c] sm:$0xf]
      %v624 = vld [vmem:[%s511 + $0x60] sm:$0xf]
      %v625 = vld [vmem:[%s511 + $0x64] sm:$0xf]
      %v626 = vld [vmem:[%s511 + $0x68] sm:$0xf]
      %v627 = vld [vmem:[%s511 + $0x6c] sm:$0xf]
      %v628 = vld [vmem:[%s511 + $0x70] sm:$0xf]
      %v629 = vld [vmem:[%s511 + $0x74] sm:$0xf]
      %v630 = vld [vmem:[%s511 + $0x78] sm:$0xf]
      %v631 = vld [vmem:[%s511 + $0x7c] sm:$0xf]
      %v632 = vld [vmem:[%s511 + $0x80] sm:$0xf]
      %v633 = vld [vmem:[%s511 + $0x84] sm:$0xf]
      %v634 = vld [vmem:[%s511 + $0x88] sm:$0xf]
      %v635 = vld [vmem:[%s511 + $0x8c] sm:$0xf]
      %v636 = vld [vmem:[%s511 + $0x90] sm:$0xf]
      %v637 = vld [vmem:[%s511 + $0x94] sm:$0xf]
      %v638 = vld [vmem:[%s511 + $0x98] sm:$0xf]
      %v639 = vld [vmem:[%s511 + $0x9c] sm:$0xf]
      %v640 = vld [vmem:[%s511 + $0xa0] sm:$0xf]
      %v641 = vld [vmem:[%s511 + $0xa4] sm:$0xf]
      %v642 = vld [vmem:[%s511 + $0xa8] sm:$0xf]
      %v643 = vld [vmem:[%s511 + $0xac] sm:$0xf]
      %v644 = vld [vmem:[%s511 + $0xb0] sm:$0xf]
      %v645 = vld [vmem:[%s511 + $0xb4] sm:$0xf]
      %v646 = vld [vmem:[%s511 + $0xb8] sm:$0xf]
      %v647 = vld [vmem:[%s511 + $0xbc] sm:$0xf]
      %v648 = vld [vmem:[%s511 + $0xc0] sm:$0xf]
      %v649 = vld [vmem:[%s511 + $0xc4] sm:$0xf]
      %v650 = vld [vmem:[%s511 + $0xc8] sm:$0xf]
      %v651 = vld [vmem:[%s511 + $0xcc] sm:$0xf]
      %v652 = vld [vmem:[%s511 + $0xd0] sm:$0xf]
      %v653 = vld [vmem:[%s511 + $0xd4] sm:$0xf]
      %v654 = vld [vmem:[%s511 + $0xd8] sm:$0xf]
      %v655 = vld [vmem:[%s511 + $0xdc] sm:$0xf]
      %v656 = vld [vmem:[%s511 + $0xe0] sm:$0xf]
      %v657 = vld [vmem:[%s511 + $0xe4] sm:$0xf]
      %v658 = vld [vmem:[%s511 + $0xe8] sm:$0xf]
      %v659 = vld [vmem:[%s511 + $0xec] sm:$0xf]
      %v660 = vld [vmem:[%s511 + $0xf0] sm:$0xf]
      %v661 = vld [vmem:[%s511 + $0xf4] sm:$0xf]
      %v662 = vld [vmem:[%s511 + $0xf8] sm:$0xf]
      %v663 = vld [vmem:[%s511 + $0xfc] sm:$0xf]
      %v664 = vld [vmem:[%s511 + $0x100] sm:$0xf]
      %v665 = vld [vmem:[%s511 + $0x104] sm:$0xf]
      %v666 = vld [vmem:[%s511 + $0x108] sm:$0xf]
      %v667 = vld [vmem:[%s511 + $0x10c] sm:$0xf]
      %v668 = vld [vmem:[%s511 + $0x110] sm:$0xf]
      %v669 = vld [vmem:[%s511 + $0x114] sm:$0xf]
      %v670 = vld [vmem:[%s511 + $0x118] sm:$0xf]
      %v671 = vld [vmem:[%s511 + $0x11c] sm:$0xf]
      %v672 = vld [vmem:[%s511 + $0x120] sm:$0xf]
      %v673 = vld [vmem:[%s511 + $0x124] sm:$0xf]
      %v674 = vld [vmem:[%s511 + $0x128] sm:$0xf]
      %v675 = vld [vmem:[%s511 + $0x12c] sm:$0xf]
      %v676 = vld [vmem:[%s511 + $0x130] sm:$0xf]
      %v677 = vld [vmem:[%s511 + $0x134] sm:$0xf]
      %v678 = vld [vmem:[%s511 + $0x138] sm:$0xf]
      %v679 = vld [vmem:[%s511 + $0x13c] sm:$0xf]
      %v680 = vld [vmem:[%s511 + $0x140] sm:$0xf]
      %v681 = vld [vmem:[%s511 + $0x144] sm:$0xf]
      %v682 = vld [vmem:[%s511 + $0x148] sm:$0xf]
      %v683 = vld [vmem:[%s511 + $0x14c] sm:$0xf]
      %v684 = vld [vmem:[%s511 + $0x150] sm:$0xf]
      %v685 = vld [vmem:[%s511 + $0x154] sm:$0xf]
      %v686 = vld [vmem:[%s511 + $0x158] sm:$0xf]
      %v687 = vld [vmem:[%s511 + $0x15c] sm:$0xf]
      %v688 = vld [vmem:[%s511 + $0x160] sm:$0xf]
      %v689 = vld [vmem:[%s511 + $0x164] sm:$0xf]
      %v690 = vld [vmem:[%s511 + $0x168] sm:$0xf]
      %v691 = vld [vmem:[%s511 + $0x16c] sm:$0xf]
      %v692 = vld [vmem:[%s511 + $0x170] sm:$0xf]
      %v693 = vld [vmem:[%s511 + $0x174] sm:$0xf]
      %v694 = vld [vmem:[%s511 + $0x178] sm:$0xf]
      %v695 = vld [vmem:[%s511 + $0x17c] sm:$0xf]
      %v696 = vld [vmem:[%s511 + $0x180] sm:$0xf]
      %v697 = vld [vmem:[%s511 + $0x184] sm:$0xf]
      %v698 = vld [vmem:[%s511 + $0x188] sm:$0xf]
      %v699 = vld [vmem:[%s511 + $0x18c] sm:$0xf]
      %v700 = vld [vmem:[%s511 + $0x190] sm:$0xf]
      %v701 = vld [vmem:[%s511 + $0x194] sm:$0xf]
      %v702 = vld [vmem:[%s511 + $0x198] sm:$0xf]
      %v703 = vld [vmem:[%s511 + $0x19c] sm:$0xf]
      %v704 = vld [vmem:[%s511 + $0x1a0] sm:$0xf]
      %v705 = vld [vmem:[%s511 + $0x1a4] sm:$0xf]
      %v706 = vld [vmem:[%s511 + $0x1a8] sm:$0xf]
      %v707 = vld [vmem:[%s511 + $0x1ac] sm:$0xf]
      %v708 = vld [vmem:[%s511 + $0x1b0] sm:$0xf]
      %v709 = vld [vmem:[%s511 + $0x1b4] sm:$0xf]
      %v710 = vld [vmem:[%s511 + $0x1b8] sm:$0xf]
      %v711 = vld [vmem:[%s511 + $0x1bc] sm:$0xf]
      %v712 = vld [vmem:[%s511 + $0x1c0] sm:$0xf]
      %v713 = vld [vmem:[%s511 + $0x1c4] sm:$0xf]
      %v714 = vld [vmem:[%s511 + $0x1c8] sm:$0xf]
      %v715 = vld [vmem:[%s511 + $0x1cc] sm:$0xf]
      %v716 = vld [vmem:[%s511 + $0x1d0] sm:$0xf]
      %v717 = vld [vmem:[%s511 + $0x1d4] sm:$0xf]
      %v718 = vld [vmem:[%s511 + $0x1d8] sm:$0xf]
      %v719 = vld [vmem:[%s511 + $0x1dc] sm:$0xf]
      %v720 = vld [vmem:[%s511 + $0x1e0] sm:$0xf]
      %v721 = vld [vmem:[%s511 + $0x1e4] sm:$0xf]
      %v722 = vld [vmem:[%s511 + $0x1e8] sm:$0xf]
      %v723 = vld [vmem:[%s511 + $0x1ec] sm:$0xf]
      %v724 = vld [vmem:[%s511 + $0x1f0] sm:$0xf]
      %v725 = vld [vmem:[%s511 + $0x1f4] sm:$0xf]
      %v726 = vld [vmem:[%s511 + $0x1f8] sm:$0xf]
      %v727 = vld [vmem:[%s511 + $0x1fc] sm:$0xf]
      %v728 = vld [vmem:[%s511 + $0x200] sm:$0xf]
      %v729 = vld [vmem:[%s511 + $0x204] sm:$0xf]
      %v730 = vld [vmem:[%s511 + $0x208] sm:$0xf]
      %v731 = vld [vmem:[%s511 + $0x20c] sm:$0xf]
      %v732 = vld [vmem:[%s511 + $0x210] sm:$0xf]
      %v733 = vld [vmem:[%s511 + $0x214] sm:$0xf]
      %v734 = vld [vmem:[%s511 + $0x218] sm:$0xf]
      %v735 = vld [vmem:[%s511 + $0x21c] sm:$0xf]
      %v736 = vld [vmem:[%s511 + $0x220] sm:$0xf]
      %v737 = vld [vmem:[%s511 + $0x224] sm:$0xf]
      %v738 = vld [vmem:[%s511 + $0x228] sm:$0xf]
      %v739 = vld [vmem:[%s511 + $0x22c] sm:$0xf]
      %v740 = vld [vmem:[%s511 + $0x230] sm:$0xf]
      %v741 = vld [vmem:[%s511 + $0x234] sm:$0xf]
      %v742 = vld [vmem:[%s511 + $0x238] sm:$0xf]
      %v743 = vld [vmem:[%s511 + $0x23c] sm:$0xf]
      %v744 = vld [vmem:[%s511 + $0x240] sm:$0xf]
      %v745 = vld [vmem:[%s511 + $0x244] sm:$0xf]
      %v746 = vld [vmem:[%s511 + $0x248] sm:$0xf]
      %v747 = vld [vmem:[%s511 + $0x24c] sm:$0xf]
      %v748 = vld [vmem:[%s511 + $0x250] sm:$0xf]
      %v749 = vld [vmem:[%s511 + $0x254] sm:$0xf]
      %v750 = vld [vmem:[%s511 + $0x258] sm:$0xf]
      %v751 = vld [vmem:[%s511 + $0x25c] sm:$0xf]
      %v752 = vld [vmem:[%s511 + $0x260] sm:$0xf]
      %v753 = vld [vmem:[%s511 + $0x264] sm:$0xf]
      %v754 = vld [vmem:[%s511 + $0x268] sm:$0xf]
      %v755 = vld [vmem:[%s511 + $0x26c] sm:$0xf]
      %v756 = vld [vmem:[%s511 + $0x270] sm:$0xf]
      %v757 = vld [vmem:[%s511 + $0x274] sm:$0xf]
      %v758 = vld [vmem:[%s511 + $0x278] sm:$0xf]
      %v759 = vld [vmem:[%s511 + $0x27c] sm:$0xf]
      %v760 = vld [vmem:[%s511 + $0x280] sm:$0xf]
      %v761 = vld [vmem:[%s511 + $0x284] sm:$0xf]
      %v762 = vld [vmem:[%s511 + $0x288] sm:$0xf]
      %v763 = vld [vmem:[%s511 + $0x28c] sm:$0xf]
      %v764 = vld [vmem:[%s511 + $0x290] sm:$0xf]
      %v765 = vld [vmem:[%s511 + $0x294] sm:$0xf]
      %v766 = vld [vmem:[%s511 + $0x298] sm:$0xf]
      %v767 = vld [vmem:[%s511 + $0x29c] sm:$0xf]
      %v768 = vld [vmem:[%s511 + $0x2a0] sm:$0xf]
      %v769 = vld [vmem:[%s511 + $0x2a4] sm:$0xf]
      %v770 = vld [vmem:[%s511 + $0x2a8] sm:$0xf]
      %v771 = vld [vmem:[%s511 + $0x2ac] sm:$0xf]
      %v772 = vld [vmem:[%s511 + $0x2b0] sm:$0xf]
      %v773 = vld [vmem:[%s511 + $0x2b4] sm:$0xf]
      %v774 = vld [vmem:[%s511 + $0x2b8] sm:$0xf]
      %v775 = vld [vmem:[%s511 + $0x2bc] sm:$0xf]
      %v776 = vld [vmem:[%s511 + $0x2c0] sm:$0xf]
      %v777 = vld [vmem:[%s511 + $0x2c4] sm:$0xf]
      %v778 = vld [vmem:[%s511 + $0x2c8] sm:$0xf]
      %v779 = vld [vmem:[%s511 + $0x2cc] sm:$0xf]
      %v780 = vld [vmem:[%s511 + $0x2d0] sm:$0xf]
      %v781 = vld [vmem:[%s511 + $0x2d4] sm:$0xf]
      %v782 = vld [vmem:[%s511 + $0x2d8] sm:$0xf]
      %v783 = vld [vmem:[%s511 + $0x2dc] sm:$0xf]
      %v784 = vld [vmem:[%s511 + $0x2e0] sm:$0xf]
      %v785 = vld [vmem:[%s511 + $0x2e4] sm:$0xf]
      %v786 = vld [vmem:[%s511 + $0x2e8] sm:$0xf]
      %v787 = vld [vmem:[%s511 + $0x2ec] sm:$0xf]
      %v788 = vld [vmem:[%s511 + $0x2f0] sm:$0xf]
      %v789 = vld [vmem:[%s511 + $0x2f4] sm:$0xf]
      %v790 = vld [vmem:[%s511 + $0x2f8] sm:$0xf]
      %v791 = vld [vmem:[%s511 + $0x2fc] sm:$0xf]
      %v792 = vld [vmem:[%s511 + $0x300] sm:$0xf]
      %v793 = vld [vmem:[%s511 + $0x304] sm:$0xf]
      %v794 = vld [vmem:[%s511 + $0x308] sm:$0xf]
      %v795 = vld [vmem:[%s511 + $0x30c] sm:$0xf]
      %v796 = vld [vmem:[%s511 + $0x310] sm:$0xf]
      %v797 = vld [vmem:[%s511 + $0x314] sm:$0xf]
      %v798 = vld [vmem:[%s511 + $0x318] sm:$0xf]
      %v799 = vld [vmem:[%s511 + $0x31c] sm:$0xf]
      %v800 = vld [vmem:[%s511 + $0x320] sm:$0xf]
      %v801 = vld [vmem:[%s511 + $0x324] sm:$0xf]
      %v802 = vld [vmem:[%s511 + $0x328] sm:$0xf]
      %v803 = vld [vmem:[%s511 + $0x32c] sm:$0xf]
      %v804 = vld [vmem:[%s511 + $0x330] sm:$0xf]
      %v805 = vld [vmem:[%s511 + $0x334] sm:$0xf]
      %v806 = vld [vmem:[%s511 + $0x338] sm:$0xf]
      %v807 = vld [vmem:[%s511 + $0x33c] sm:$0xf]
      %v808 = vld [vmem:[%s511 + $0x340] sm:$0xf]
      %v809 = vld [vmem:[%s511 + $0x344] sm:$0xf]
      %v810 = vld [vmem:[%s511 + $0x348] sm:$0xf]
      %v811 = vld [vmem:[%s511 + $0x34c] sm:$0xf]
      %v812 = vld [vmem:[%s511 + $0x350] sm:$0xf]
      %v813 = vld [vmem:[%s511 + $0x354] sm:$0xf]
      %v814 = vld [vmem:[%s511 + $0x358] sm:$0xf]
      %v815 = vld [vmem:[%s511 + $0x35c] sm:$0xf]
      %v816 = vld [vmem:[%s511 + $0x360] sm:$0xf]
      %v817 = vld [vmem:[%s511 + $0x364] sm:$0xf]
      %v818 = vld [vmem:[%s511 + $0x368] sm:$0xf]
      %v819 = vld [vmem:[%s511 + $0x36c] sm:$0xf]
      %v820 = vld [vmem:[%s511 + $0x370] sm:$0xf]
      %v821 = vld [vmem:[%s511 + $0x374] sm:$0xf]
      %v822 = vld [vmem:[%s511 + $0x378] sm:$0xf]
      %v823 = vld [vmem:[%s511 + $0x37c] sm:$0xf]
      %v824 = vld [vmem:[%s511 + $0x380] sm:$0xf]
      %v825 = vld [vmem:[%s511 + $0x384] sm:$0xf]
      %v826 = vld [vmem:[%s511 + $0x388] sm:$0xf]
      %v827 = vld [vmem:[%s511 + $0x38c] sm:$0xf]
      %v828 = vld [vmem:[%s511 + $0x390] sm:$0xf]
      %v829 = vld [vmem:[%s511 + $0x394] sm:$0xf]
      %v830 = vld [vmem:[%s511 + $0x398] sm:$0xf]
      %v831 = vld [vmem:[%s511 + $0x39c] sm:$0xf]
      %v832 = vld [vmem:[%s511 + $0x3a0] sm:$0xf]
      %v833 = vld [vmem:[%s511 + $0x3a4] sm:$0xf]
      %v834 = vld [vmem:[%s511 + $0x3a8] sm:$0xf]
      %v835 = vld [vmem:[%s511 + $0x3ac] sm:$0xf]
      %v836 = vld [vmem:[%s511 + $0x3b0] sm:$0xf]
      %v837 = vld [vmem:[%s511 + $0x3b4] sm:$0xf]
      %v838 = vld [vmem:[%s511 + $0x3b8] sm:$0xf]
      %v839 = vld [vmem:[%s511 + $0x3bc] sm:$0xf]
      %v840 = vld [vmem:[%s511 + $0x3c0] sm:$0xf]
      %v841 = vld [vmem:[%s511 + $0x3c4] sm:$0xf]
      %v842 = vld [vmem:[%s511 + $0x3c8] sm:$0xf]
      %v843 = vld [vmem:[%s511 + $0x3cc] sm:$0xf]
      %v844 = vld [vmem:[%s511 + $0x3d0] sm:$0xf]
      %v845 = vld [vmem:[%s511 + $0x3d4] sm:$0xf]
      %v846 = vld [vmem:[%s511 + $0x3d8] sm:$0xf]
      %v847 = vld [vmem:[%s511 + $0x3dc] sm:$0xf]
      %v848 = vld [vmem:[%s511 + $0x3e0] sm:$0xf]
      %v849 = vld [vmem:[%s511 + $0x3e4] sm:$0xf]
      %v850 = vld [vmem:[%s511 + $0x3e8] sm:$0xf]
      %v851 = vld [vmem:[%s511 + $0x3ec] sm:$0xf]
      %v852 = vld [vmem:[%s511 + $0x3f0] sm:$0xf]
      %v853 = vld [vmem:[%s511 + $0x3f4] sm:$0xf]
      %v854 = vld [vmem:[%s511 + $0x3f8] sm:$0xf]
      %v855 = vld [vmem:[%s511 + $0x3fc] sm:$0xf]
      %v856 = vld [vmem:[%s514] sm:$0x1]
      %v857 = vld [vmem:[%s518] sm:$0xff]
      %v858 = vld [vmem:[%s518 + $0x8] sm:$0xff]
      %v859 = vld [vmem:[%s522] sm:$0x3f]
      %v860 = vpack.c.bf16 %v552, %v551
      %v861 = vpack.c.bf16 %v554, %v553
      %v862 = vpack.c.bf16 %v556, %v555
      %v863 = vpack.c.bf16 %v558, %v557
      %v864 = vpack.c.bf16 %v559, %v559
      %v866 = vlaneseq
      %v867 = vshrl.u32 %v866, 7
      %v868 = vsub.s32 0, %v867
      %v869 = vrot.slane %v856, %v868
      %v875 = vunpack.c.l.b16 %v560
      %v876 = vunpack.c.l.b16 %v561
      %v877 = vunpack.c.l.b16 %v562
      %v878 = vunpack.c.l.b16 %v563
      %v879 = vpack.c.b16 %v876, %v875
      %v880 = vpack.c.b16 %v878, %v877
      %vm883 = vcmask 261120
      %v885 = vsel %vm883, %v860, 0
      %v888 = vsel %vm883, %v861, 0
      %v891 = vsel %vm883, %v862, 0
      %v894 = vsel %vm883, %v863, 0
      %v897 = vsel %vm883, %v864, 0
      %899 = vmatprep.subr.bf16.mxu0 0
      %900 = vmatpush1.bf16.msra.mxu0 %v879
      %901 = vmatprep.subr.bf16.mxu0 0
      %902 = vmatpush1.bf16.msra.mxu0 %v880
      %903 = vmatprep.subr.bf16.mxu0 0
      %904 = vmatpush1.bf16.msra.mxu0 0
      %905 = vmatprep.subr.bf16.mxu0 0
      %906 = vmatpush1.bf16.msra.mxu0 0
      %907 = vmatprep.subr.bf16.mxu0 0
      %908 = vmatpush1.bf16.msra.mxu0 0
      %909 = vmatprep.subr.bf16.mxu0 0
      %910 = vmatpush1.bf16.msra.mxu0 0
      %911 = vmatprep.subr.bf16.mxu0 0
      %912 = vmatpush1.bf16.msra.mxu0 0
      %913 = vmatprep.subr.bf16.mxu0 0
      %914 = vmatpush1.bf16.msra.mxu0 0
      %915 = vmatprep.subr.bf16.mxu0 0
      %916 = vmatpush1.bf16.msra.mxu0 0
      %917 = vmatprep.subr.bf16.mxu0 0
      %918 = vmatpush1.bf16.msra.mxu0 0
      %919 = vmatprep.subr.bf16.mxu0 0
      %920 = vmatpush1.bf16.msra.mxu0 0
      %921 = vmatprep.subr.bf16.mxu0 0
      %922 = vmatpush1.bf16.msra.mxu0 0
      %923 = vmatprep.subr.bf16.mxu0 0
      %924 = vmatpush1.bf16.msra.mxu0 0
      %925 = vmatprep.subr.bf16.mxu0 0
      %926 = vmatpush1.bf16.msra.mxu0 0
      %927 = vmatprep.subr.bf16.mxu0 0
      %928 = vmatpush1.bf16.msra.mxu0 0
      %929 = vmatprep.subr.bf16.mxu0 0
      %930 = vmatpush1.bf16.msra.mxu0 0
      %931 = vmatprep.mubr.bf16.mxu0 0
      %932 = vmatmul.mubr.bf16.gmra.mrb[0].mxu0 %v885
      %v933 = vpop.f32.mrb[0].mxu0
      %v934 = vadd.f32 %v869, %v933
      %v935 = vpop.f32.mrb[0].mxu0
      %v936 = vpop.f32.mrb[0].mxu0
      %v937 = vadd.f32 %v869, %v936
      %v938 = vpop.f32.mrb[0].mxu0
      %939 = vmatprep.mubr.bf16.mxu0 0
      %940 = vmatmul.mubr.bf16.gmra.mrb[0].mxu0 %v888
      %v941 = vpop.f32.mrb[0].mxu0
      %v942 = vadd.f32 %v869, %v941
      %v943 = vpop.f32.mrb[0].mxu0
      %v944 = vpop.f32.mrb[0].mxu0
      %v945 = vadd.f32 %v869, %v944
      %v946 = vpop.f32.mrb[0].mxu0
      %947 = vmatprep.mubr.bf16.mxu0 0
      %948 = vmatmul.mubr.bf16.gmra.mrb[0].mxu0 %v891
      %v949 = vpop.f32.mrb[0].mxu0
      %v950 = vadd.f32 %v869, %v949
      %v951 = vpop.f32.mrb[0].mxu0
      %v952 = vpop.f32.mrb[0].mxu0
      %v953 = vadd.f32 %v869, %v952
      %v954 = vpop.f32.mrb[0].mxu0
      %955 = vmatprep.mubr.bf16.mxu0 0
      %956 = vmatmul.mubr.bf16.gmra.mrb[0].mxu0 %v894
      %v957 = vpop.f32.mrb[0].mxu0
      %v958 = vadd.f32 %v869, %v957
      %v959 = vpop.f32.mrb[0].mxu0
      %v960 = vpop.f32.mrb[0].mxu0
      %v961 = vadd.f32 %v869, %v960
      %v962 = vpop.f32.mrb[0].mxu0
      %963 = vmatprep.mubr.bf16.mxu0 0
      %964 = vmatmul.mubr.bf16.gmra.mrb[0].mxu0 %v897
      %v965 = vpop.f32.mrb[0].mxu0
      %v966 = vadd.f32 %v869, %v965
      %v967 = vpop.f32.mrb[0].mxu0
      %v968 = vpop.f32.mrb[0].mxu0
      %v969 = vpop.f32.mrb[0].mxu0
      %970 = vdwg.mxu0
      %v971 = vld [vmem:[%s9] sm:$0xff]
      %v972 = vld [vmem:[%s9 + $0x8] sm:$0xff]
      %v973 = vld [vmem:[%s9 + $0x10] sm:$0xff]
      %v974 = vld [vmem:[%s9 + $0x18] sm:$0xff]
      %v975 = vld [vmem:[%s9 + $0x20] sm:$0xff]
      %v976 = vld [vmem:[%s9 + $0x28] sm:$0xff]
      %v977 = vld [vmem:[%s9 + $0x30] sm:$0xff]
      %v978 = vld [vmem:[%s9 + $0x38] sm:$0xff]
      %v979 = vld [vmem:[%s9 + $0x40] sm:$0xff]
      %v980 = vpack.c.bf16 %v937, %v934
      %v981 = vpack.c.bf16 %v945, %v942
      %v982 = vpack.c.bf16 %v953, %v950
      %v983 = vpack.c.bf16 %v961, %v958
      %v984 = vpack.c.bf16 %v966, %v966
      %v985 = vld [vmem:[%s8] sm:$0x1]
      %v986 = vlaneseq
      %v987 = vshrl.u32 %v986, 7
      %v988 = vsub.s32 0, %v987
      %v989 = vrot.slane %v985, %v988
      %991 = vrot.lane.b32.xlu0 %v989, 32
      %v992 = vpop.permute.xlu0 %991
      %v994 = vmul.f32 %v934, %v992
      %v995 = vmul.f32 %v937, %v992
      %v996 = vmul.f32 %v942, %v992
      %v997 = vmul.f32 %v945, %v992
      %v998 = vmul.f32 %v950, %v992
      %v999 = vmul.f32 %v953, %v992
      %v1000 = vmul.f32 %v958, %v992
      %v1001 = vmul.f32 %v961, %v992
      %v1002 = vmul.f32 %v966, %v992
      %v1003 = vpack.c.bf16 %v995, %v994
      %v1004 = vpack.c.bf16 %v997, %v996
      %v1005 = vpack.c.bf16 %v999, %v998
      %v1006 = vpack.c.bf16 %v1001, %v1000
      %v1007 = vpack.c.bf16 %v1002, %v1002
      %1008 = vrot.lane.b32.xlu0 %v989, 64
      %v1009 = vpop.permute.xlu0 %1008
      %v1011 = vmul.f32 %v934, %v1009
      %v1012 = vmul.f32 %v937, %v1009
      %v1013 = vmul.f32 %v942, %v1009
      %v1014 = vmul.f32 %v945, %v1009
      %v1015 = vmul.f32 %v950, %v1009
      %v1016 = vmul.f32 %v953, %v1009
      %v1017 = vmul.f32 %v958, %v1009
      %v1018 = vmul.f32 %v961, %v1009
      %v1019 = vmul.f32 %v966, %v1009
      %v1020 = vpack.c.bf16 %v1012, %v1011
      %v1021 = vpack.c.bf16 %v1014, %v1013
      %v1022 = vpack.c.bf16 %v1016, %v1015
      %v1023 = vpack.c.bf16 %v1018, %v1017
      %v1024 = vpack.c.bf16 %v1019, %v1019
      %1030 = vrot.lane.b32.xlu0 %v1003, 96
      %v1031 = vpop.permute.xlu0 %1030
      %1032 = vrot.lane.b32.xlu0 %v1004, 96
      %v1033 = vpop.permute.xlu0 %1032
      %1034 = vrot.lane.b32.xlu0 %v1005, 96
      %v1035 = vpop.permute.xlu0 %1034
      %1036 = vrot.lane.b32.xlu0 %v1006, 96
      %v1037 = vpop.permute.xlu0 %1036
      %1038 = vrot.lane.b32.xlu0 %v1007, 96
      %v1039 = vpop.permute.xlu0 %1038
      %v1041 = vsel %vm883, %v980, 0
      %v1044 = vsel %vm883, %v981, 0
      %v1047 = vsel %vm883, %v982, 0
      %v1050 = vsel %vm883, %v983, 0
      %v1053 = vsel %vm883, %v984, 0
      %v1056 = vsel %vm883, %v1031, 0
      %v1059 = vsel %vm883, %v1033, 0
      %v1062 = vsel %vm883, %v1035, 0
      %v1065 = vsel %vm883, %v1037, 0
      %v1068 = vsel %vm883, %v1039, 0
      %1070 = vmatprep.subr.bf16.mxu0 0
      %1071 = vmatpush1.bf16.xpose.msra.mxu0 %v1056
      %1072 = vmatprep.subr.bf16.mxu0 0
      %1073 = vmatpush1.bf16.xpose.msra.mxu0 %v1059
      %1074 = vmatprep.subr.bf16.mxu0 0
      %1075 = vmatpush1.bf16.xpose.msra.mxu0 %v1062
      %1076 = vmatprep.subr.bf16.mxu0 0
      %1077 = vmatpush1.bf16.xpose.msra.mxu0 %v1065
      %1078 = vmatprep.subr.bf16.mxu0 0
      %1079 = vmatpush1.bf16.xpose.msra.mxu0 %v1068
      %1080 = vmatprep.subr.bf16.mxu0 0
      %1081 = vmatpush1.bf16.xpose.msra.mxu0 0
      %1082 = vmatprep.subr.bf16.mxu0 0
      %1083 = vmatpush1.bf16.xpose.msra.mxu0 0
      %1084 = vmatprep.subr.bf16.mxu0 0
      %1085 = vmatpush1.bf16.xpose.msra.mxu0 0
      %1086 = vmatprep.subr.bf16.mxu0 0
      %1087 = vmatpush1.bf16.xpose.msra.mxu0 0
      %1088 = vmatprep.subr.bf16.mxu0 0
      %1089 = vmatpush1.bf16.xpose.msra.mxu0 0
      %1090 = vmatprep.subr.bf16.mxu0 0
      %1091 = vmatpush1.bf16.xpose.msra.mxu0 0
      %1092 = vmatprep.subr.bf16.mxu0 0
      %1093 = vmatpush1.bf16.xpose.msra.mxu0 0
      %1094 = vmatprep.subr.bf16.mxu0 0
      %1095 = vmatpush1.bf16.xpose.msra.mxu0 0
      %1096 = vmatprep.subr.bf16.mxu0 0
      %1097 = vmatpush1.bf16.xpose.msra.mxu0 0
      %1098 = vmatprep.subr.bf16.mxu0 0
      %1099 = vmatpush1.bf16.xpose.msra.mxu0 0
      %1100 = vmatprep.subr.bf16.mxu0 0
      %1101 = vmatpush1.bf16.xpose.msra.mxu0 0
      %1102 = vmatprep.mubr.bf16.mxu0 0
      %1103 = vmatmul.mubr.bf16.gmra.mrb[0].mxu0 %v1041
      %v1104 = vpop.f32.mrb[0].mxu0
      %v1105 = vadd.f32 %v971, %v1104
      %v1106 = vpop.f32.mrb[0].mxu0
      %v1107 = vpop.f32.mrb[0].mxu0
      %v1108 = vadd.f32 %v972, %v1107
      %v1109 = vpop.f32.mrb[0].mxu0
      %1110 = vmatprep.mubr.bf16.mxu0 0
      %1111 = vmatmul.mubr.bf16.gmra.mrb[0].mxu0 %v1044
      %v1112 = vpop.f32.mrb[0].mxu0
      %v1113 = vadd.f32 %v973, %v1112
      %v1114 = vpop.f32.mrb[0].mxu0
      %v1115 = vpop.f32.mrb[0].mxu0
      %v1116 = vadd.f32 %v974, %v1115
      %v1117 = vpop.f32.mrb[0].mxu0
      %1118 = vmatprep.mubr.bf16.mxu0 0
      %1119 = vmatmul.mubr.bf16.gmra.mrb[0].mxu0 %v1047
      %v1120 = vpop.f32.mrb[0].mxu0
      %v1121 = vadd.f32 %v975, %v1120
      %v1122 = vpop.f32.mrb[0].mxu0
      %v1123 = vpop.f32.mrb[0].mxu0
      %v1124 = vadd.f32 %v976, %v1123
      %v1125 = vpop.f32.mrb[0].mxu0
      %1126 = vmatprep.mubr.bf16.mxu0 0
      %1127 = vmatmul.mubr.bf16.gmra.mrb[0].mxu0 %v1050
      %v1128 = vpop.f32.mrb[0].mxu0
      %v1129 = vadd.f32 %v977, %v1128
      %v1130 = vpop.f32.mrb[0].mxu0
      %v1131 = vpop.f32.mrb[0].mxu0
      %v1132 = vadd.f32 %v978, %v1131
      %v1133 = vpop.f32.mrb[0].mxu0
      %1134 = vmatprep.mubr.bf16.mxu0 0
      %1135 = vmatmul.mubr.bf16.gmra.mrb[0].mxu0 %v1053
      %v1136 = vpop.f32.mrb[0].mxu0
      %v1137 = vadd.f32 %v979, %v1136
      %v1138 = vpop.f32.mrb[0].mxu0
      %v1139 = vpop.f32.mrb[0].mxu0
      %v1140 = vpop.f32.mrb[0].mxu0
      %1141 = vdwg.mxu0
      %vm1142 = vcmask 588800
      %v1143 = vsel %vm1142, %v1105, -inf
      %1144 = vmax.xlane.f32.xlu0 %v1143
      %v1145 = vpop.xlane.xlu0 %1144
      %v1146 = vsel %vm1142, %v1108, -inf
      %1147 = vmax.xlane.f32.xlu0 %v1146
      %v1148 = vpop.xlane.xlu0 %1147
      %v1149 = vsel %vm1142, %v1113, -inf
      %1150 = vmax.xlane.f32.xlu0 %v1149
      %v1151 = vpop.xlane.xlu0 %1150
      %v1152 = vsel %vm1142, %v1116, -inf
      %1153 = vmax.xlane.f32.xlu0 %v1152
      %v1154 = vpop.xlane.xlu0 %1153
      %v1155 = vsel %vm1142, %v1121, -inf
      %1156 = vmax.xlane.f32.xlu0 %v1155
      %v1157 = vpop.xlane.xlu0 %1156
      %v1158 = vsel %vm1142, %v1124, -inf
      %1159 = vmax.xlane.f32.xlu0 %v1158
      %v1160 = vpop.xlane.xlu0 %1159
      %v1161 = vsel %vm1142, %v1129, -inf
      %1162 = vmax.xlane.f32.xlu0 %v1161
      %v1163 = vpop.xlane.xlu0 %1162
      %v1164 = vsel %vm1142, %v1132, -inf
      %1165 = vmax.xlane.f32.xlu0 %v1164
      %v1166 = vpop.xlane.xlu0 %1165
      %v1167 = vsel %vm1142, %v1137, -inf
      %1168 = vmax.xlane.f32.xlu0 %v1167
      %v1169 = vpop.xlane.xlu0 %1168
      %v1170 = vsub.f32 %v1105, %v1145
      %v1171 = vsub.f32 %v1108, %v1148
      %v1172 = vsub.f32 %v1113, %v1151
      %v1173 = vsub.f32 %v1116, %v1154
      %v1174 = vsub.f32 %v1121, %v1157
      %v1175 = vsub.f32 %v1124, %v1160
      %v1176 = vsub.f32 %v1129, %v1163
      %v1177 = vsub.f32 %v1132, %v1166
      %v1178 = vsub.f32 %v1137, %v1169
      %v1179 = vmul.f32 %v1170, 1.442695
      %v1180 = vpow.pop %v1179
      %v1181 = vmul.f32 %v1171, 1.442695
      %v1182 = vpow.pop %v1181
      %v1183 = vmul.f32 %v1172, 1.442695
      %v1184 = vpow.pop %v1183
      %v1185 = vmul.f32 %v1173, 1.442695
      %v1186 = vpow.pop %v1185
      %v1187 = vmul.f32 %v1174, 1.442695
      %v1188 = vpow.pop %v1187
      %v1189 = vmul.f32 %v1175, 1.442695
      %v1190 = vpow.pop %v1189
      %v1191 = vmul.f32 %v1176, 1.442695
      %v1192 = vpow.pop %v1191
      %v1193 = vmul.f32 %v1177, 1.442695
      %v1194 = vpow.pop %v1193
      %v1195 = vmul.f32 %v1178, 1.442695
      %v1196 = vpow.pop %v1195
      %v1197 = vsel %vm1142, %v1180, 0.0
      %1198 = vadd.xlane.f32.xlu0 %v1197
      %v1199 = vpop.xlane.xlu0 %1198
      %v1200 = vsel %vm1142, %v1182, 0.0
      %1201 = vadd.xlane.f32.xlu0 %v1200
      %v1202 = vpop.xlane.xlu0 %1201
      %v1203 = vsel %vm1142, %v1184, 0.0
      %1204 = vadd.xlane.f32.xlu0 %v1203
      %v1205 = vpop.xlane.xlu0 %1204
      %v1206 = vsel %vm1142, %v1186, 0.0
      %1207 = vadd.xlane.f32.xlu0 %v1206
      %v1208 = vpop.xlane.xlu0 %1207
      %v1209 = vsel %vm1142, %v1188, 0.0
      %1210 = vadd.xlane.f32.xlu0 %v1209
      %v1211 = vpop.xlane.xlu0 %1210
      %v1212 = vsel %vm1142, %v1190, 0.0
      %1213 = vadd.xlane.f32.xlu0 %v1212
      %v1214 = vpop.xlane.xlu0 %1213
      %v1215 = vsel %vm1142, %v1192, 0.0
      %1216 = vadd.xlane.f32.xlu0 %v1215
      %v1217 = vpop.xlane.xlu0 %1216
      %v1218 = vsel %vm1142, %v1194, 0.0
      %1219 = vadd.xlane.f32.xlu0 %v1218
      %v1220 = vpop.xlane.xlu0 %1219
      %v1221 = vsel %vm1142, %v1196, 0.0
      %1222 = vadd.xlane.f32.xlu0 %v1221
      %v1223 = vpop.xlane.xlu0 %1222
      %v1224 = vrcp.pop %v1199
      %v1225 = vrcp.pop %v1202
      %v1226 = vrcp.pop %v1205
      %v1227 = vrcp.pop %v1208
      %v1228 = vrcp.pop %v1211
      %v1229 = vrcp.pop %v1214
      %v1230 = vrcp.pop %v1217
      %v1231 = vrcp.pop %v1220
      %v1232 = vrcp.pop %v1223
      %v1233 = vmul.f32 %v1180, %v1224
      %v1234 = vmul.f32 %v1182, %v1225
      %v1235 = vmul.f32 %v1184, %v1226
      %v1236 = vmul.f32 %v1186, %v1227
      %v1237 = vmul.f32 %v1188, %v1228
      %v1238 = vmul.f32 %v1190, %v1229
      %v1239 = vmul.f32 %v1192, %v1230
      %v1240 = vmul.f32 %v1194, %v1231
      %v1241 = vmul.f32 %v1196, %v1232
      %v1242 = vpack.c.bf16 %v1234, %v1233
      %v1243 = vpack.c.bf16 %v1236, %v1235
      %v1244 = vpack.c.bf16 %v1238, %v1237
      %v1245 = vpack.c.bf16 %v1240, %v1239
      %v1246 = vpack.c.bf16 %v1241, %v1241
      %v1247 = vld [vmem:[%s8 + $0x1] sm:$0x1]
      %v1248 = vlaneseq
      %v1249 = vshrl.u32 %v1248, 7
      %v1250 = vsub.s32 0, %v1249
      %v1251 = vrot.slane %v1247, %v1250
      %1253 = vrot.lane.b32.xlu0 %v1251, 32
      %v1254 = vpop.permute.xlu0 %1253
      %v1256 = vmul.f32 %v934, %v1254
      %v1257 = vmul.f32 %v937, %v1254
      %v1258 = vmul.f32 %v942, %v1254
      %v1259 = vmul.f32 %v945, %v1254
      %v1260 = vmul.f32 %v950, %v1254
      %v1261 = vmul.f32 %v953, %v1254
      %v1262 = vmul.f32 %v958, %v1254
      %v1263 = vmul.f32 %v961, %v1254
      %v1264 = vmul.f32 %v966, %v1254
      %v1265 = vpack.c.bf16 %v1257, %v1256
      %v1266 = vpack.c.bf16 %v1259, %v1258
      %v1267 = vpack.c.bf16 %v1261, %v1260
      %v1268 = vpack.c.bf16 %v1263, %v1262
      %v1269 = vpack.c.bf16 %v1264, %v1264
      %1270 = vrot.lane.b32.xlu0 %v1251, 64
      %v1271 = vpop.permute.xlu0 %1270
      %v1273 = vmul.f32 %v934, %v1271
      %v1274 = vmul.f32 %v937, %v1271
      %v1275 = vmul.f32 %v942, %v1271
      %v1276 = vmul.f32 %v945, %v1271
      %v1277 = vmul.f32 %v950, %v1271
      %v1278 = vmul.f32 %v953, %v1271
      %v1279 = vmul.f32 %v958, %v1271
      %v1280 = vmul.f32 %v961, %v1271
      %v1281 = vmul.f32 %v966, %v1271
      %v1282 = vpack.c.bf16 %v1274, %v1273
      %v1283 = vpack.c.bf16 %v1276, %v1275
      %v1284 = vpack.c.bf16 %v1278, %v1277
      %v1285 = vpack.c.bf16 %v1280, %v1279
      %v1286 = vpack.c.bf16 %v1281, %v1281
      %1292 = vrot.lane.b32.xlu0 %v1265, 96
      %v1293 = vpop.permute.xlu0 %1292
      %1294 = vrot.lane.b32.xlu0 %v1266, 96
      %v1295 = vpop.permute.xlu0 %1294
      %1296 = vrot.lane.b32.xlu0 %v1267, 96
      %v1297 = vpop.permute.xlu0 %1296
      %1298 = vrot.lane.b32.xlu0 %v1268, 96
      %v1299 = vpop.permute.xlu0 %1298
      %1300 = vrot.lane.b32.xlu0 %v1269, 96
      %v1301 = vpop.permute.xlu0 %1300
      %v1303 = vsel %vm883, %v1293, 0
      %v1306 = vsel %vm883, %v1295, 0
      %v1309 = vsel %vm883, %v1297, 0
      %v1312 = vsel %vm883, %v1299, 0
      %v1315 = vsel %vm883, %v1301, 0
      %1317 = vmatprep.subr.bf16.mxu0 0
      %1318 = vmatpush1.bf16.xpose.msra.mxu0 %v1303
      %1319 = vmatprep.subr.bf16.mxu0 0
      %1320 = vmatpush1.bf16.xpose.msra.mxu0 %v1306
      %1321 = vmatprep.subr.bf16.mxu0 0
      %1322 = vmatpush1.bf16.xpose.msra.mxu0 %v1309
      %1323 = vmatprep.subr.bf16.mxu0 0
      %1324 = vmatpush1.bf16.xpose.msra.mxu0 %v1312
      %1325 = vmatprep.subr.bf16.mxu0 0
      %1326 = vmatpush1.bf16.xpose.msra.mxu0 %v1315
      %1327 = vmatprep.subr.bf16.mxu0 0
      %1328 = vmatpush1.bf16.xpose.msra.mxu0 0
      %1329 = vmatprep.subr.bf16.mxu0 0
      %1330 = vmatpush1.bf16.xpose.msra.mxu0 0
      %1331 = vmatprep.subr.bf16.mxu0 0
      %1332 = vmatpush1.bf16.xpose.msra.mxu0 0
      %1333 = vmatprep.subr.bf16.mxu0 0
      %1334 = vmatpush1.bf16.xpose.msra.mxu0 0
      %1335 = vmatprep.subr.bf16.mxu0 0
      %1336 = vmatpush1.bf16.xpose.msra.mxu0 0
      %1337 = vmatprep.subr.bf16.mxu0 0
      %1338 = vmatpush1.bf16.xpose.msra.mxu0 0
      %1339 = vmatprep.subr.bf16.mxu0 0
      %1340 = vmatpush1.bf16.xpose.msra.mxu0 0
      %1341 = vmatprep.subr.bf16.mxu0 0
      %1342 = vmatpush1.bf16.xpose.msra.mxu0 0
      %1343 = vmatprep.subr.bf16.mxu0 0
      %1344 = vmatpush1.bf16.xpose.msra.mxu0 0
      %1345 = vmatprep.subr.bf16.mxu0 0
      %1346 = vmatpush1.bf16.xpose.msra.mxu0 0
      %1347 = vmatprep.subr.bf16.mxu0 0
      %1348 = vmatpush1.bf16.xpose.msra.mxu0 0
      %1349 = vmatprep.mubr.bf16.mxu0 0
      %1350 = vmatmul.mubr.bf16.gmra.mrb[0].mxu0 %v1041
      %v1351 = vpop.f32.mrb[0].mxu0
      %v1352 = vadd.f32 %v971, %v1351
      %v1353 = vpop.f32.mrb[0].mxu0
      %v1354 = vpop.f32.mrb[0].mxu0
      %v1355 = vadd.f32 %v972, %v1354
      %v1356 = vpop.f32.mrb[0].mxu0
      %1357 = vmatprep.mubr.bf16.mxu0 0
      %1358 = vmatmul.mubr.bf16.gmra.mrb[0].mxu0 %v1044
      %v1359 = vpop.f32.mrb[0].mxu0
      %v1360 = vadd.f32 %v973, %v1359
      %v1361 = vpop.f32.mrb[0].mxu0
      %v1362 = vpop.f32.mrb[0].mxu0
      %v1363 = vadd.f32 %v974, %v1362
      %v1364 = vpop.f32.mrb[0].mxu0
      %1365 = vmatprep.mubr.bf16.mxu0 0
      %1366 = vmatmul.mubr.bf16.gmra.mrb[0].mxu0 %v1047
      %v1367 = vpop.f32.mrb[0].mxu0
      %v1368 = vadd.f32 %v975, %v1367
      %v1369 = vpop.f32.mrb[0].mxu0
      %v1370 = vpop.f32.mrb[0].mxu0
      %v1371 = vadd.f32 %v976, %v1370
      %v1372 = vpop.f32.mrb[0].mxu0
      %1373 = vmatprep.mubr.bf16.mxu0 0
      %1374 = vmatmul.mubr.bf16.gmra.mrb[0].mxu0 %v1050
      %v1375 = vpop.f32.mrb[0].mxu0
      %v1376 = vadd.f32 %v977, %v1375
      %v1377 = vpop.f32.mrb[0].mxu0
      %v1378 = vpop.f32.mrb[0].mxu0
      %v1379 = vadd.f32 %v978, %v1378
      %v1380 = vpop.f32.mrb[0].mxu0
      %1381 = vmatprep.mubr.bf16.mxu0 0
      %1382 = vmatmul.mubr.bf16.gmra.mrb[0].mxu0 %v1053
      %v1383 = vpop.f32.mrb[0].mxu0
      %v1384 = vadd.f32 %v979, %v1383
      %v1385 = vpop.f32.mrb[0].mxu0
      %v1386 = vpop.f32.mrb[0].mxu0
      %v1387 = vpop.f32.mrb[0].mxu0
      %1388 = vdwg.mxu0
      %v1389 = vsel %vm1142, %v1352, -inf
      %1390 = vmax.xlane.f32.xlu0 %v1389
      %v1391 = vpop.xlane.xlu0 %1390
      %v1392 = vsel %vm1142, %v1355, -inf
      %1393 = vmax.xlane.f32.xlu0 %v1392
      %v1394 = vpop.xlane.xlu0 %1393
      %v1395 = vsel %vm1142, %v1360, -inf
      %1396 = vmax.xlane.f32.xlu0 %v1395
      %v1397 = vpop.xlane.xlu0 %1396
      %v1398 = vsel %vm1142, %v1363, -inf
      %1399 = vmax.xlane.f32.xlu0 %v1398
      %v1400 = vpop.xlane.xlu0 %1399
      %v1401 = vsel %vm1142, %v1368, -inf
      %1402 = vmax.xlane.f32.xlu0 %v1401
      %v1403 = vpop.xlane.xlu0 %1402
      %v1404 = vsel %vm1142, %v1371, -inf
      %1405 = vmax.xlane.f32.xlu0 %v1404
      %v1406 = vpop.xlane.xlu0 %1405
      %v1407 = vsel %vm1142, %v1376, -inf
      %1408 = vmax.xlane.f32.xlu0 %v1407
      %v1409 = vpop.xlane.xlu0 %1408
      %v1410 = vsel %vm1142, %v1379, -inf
      %1411 = vmax.xlane.f32.xlu0 %v1410
      %v1412 = vpop.xlane.xlu0 %1411
      %v1413 = vsel %vm1142, %v1384, -inf
      %1414 = vmax.xlane.f32.xlu0 %v1413
      %v1415 = vpop.xlane.xlu0 %1414
      %v1416 = vsub.f32 %v1352, %v1391
      %v1417 = vsub.f32 %v1355, %v1394
      %v1418 = vsub.f32 %v1360, %v1397
      %v1419 = vsub.f32 %v1363, %v1400
      %v1420 = vsub.f32 %v1368, %v1403
      %v1421 = vsub.f32 %v1371, %v1406
      %v1422 = vsub.f32 %v1376, %v1409
      %v1423 = vsub.f32 %v1379, %v1412
      %v1424 = vsub.f32 %v1384, %v1415
      %v1425 = vmul.f32 %v1416, 1.442695
      %v1426 = vpow.pop %v1425
      %v1427 = vmul.f32 %v1417, 1.442695
      %v1428 = vpow.pop %v1427
      %v1429 = vmul.f32 %v1418, 1.442695
      %v1430 = vpow.pop %v1429
      %v1431 = vmul.f32 %v1419, 1.442695
      %v1432 = vpow.pop %v1431
      %v1433 = vmul.f32 %v1420, 1.442695
      %v1434 = vpow.pop %v1433
      %v1435 = vmul.f32 %v1421, 1.442695
      %v1436 = vpow.pop %v1435
      %v1437 = vmul.f32 %v1422, 1.442695
      %v1438 = vpow.pop %v1437
      %v1439 = vmul.f32 %v1423, 1.442695
      %v1440 = vpow.pop %v1439
      %v1441 = vmul.f32 %v1424, 1.442695
      %v1442 = vpow.pop %v1441
      %v1443 = vsel %vm1142, %v1426, 0.0
      %1444 = vadd.xlane.f32.xlu0 %v1443
      %v1445 = vpop.xlane.xlu0 %1444
      %v1446 = vsel %vm1142, %v1428, 0.0
      %1447 = vadd.xlane.f32.xlu0 %v1446
      %v1448 = vpop.xlane.xlu0 %1447
      %v1449 = vsel %vm1142, %v1430, 0.0
      %1450 = vadd.xlane.f32.xlu0 %v1449
      %v1451 = vpop.xlane.xlu0 %1450
      %v1452 = vsel %vm1142, %v1432, 0.0
      %1453 = vadd.xlane.f32.xlu0 %v1452
      %v1454 = vpop.xlane.xlu0 %1453
      %v1455 = vsel %vm1142, %v1434, 0.0
      %1456 = vadd.xlane.f32.xlu0 %v1455
      %v1457 = vpop.xlane.xlu0 %1456
      %v1458 = vsel %vm1142, %v1436, 0.0
      %1459 = vadd.xlane.f32.xlu0 %v1458
      %v1460 = vpop.xlane.xlu0 %1459
      %v1461 = vsel %vm1142, %v1438, 0.0
      %1462 = vadd.xlane.f32.xlu0 %v1461
      %v1463 = vpop.xlane.xlu0 %1462
      %v1464 = vsel %vm1142, %v1440, 0.0
      %1465 = vadd.xlane.f32.xlu0 %v1464
      %v1466 = vpop.xlane.xlu0 %1465
      %v1467 = vsel %vm1142, %v1442, 0.0
      %1468 = vadd.xlane.f32.xlu0 %v1467
      %v1469 = vpop.xlane.xlu0 %1468
      %v1470 = vrcp.pop %v1445
      %v1471 = vrcp.pop %v1448
      %v1472 = vrcp.pop %v1451
      %v1473 = vrcp.pop %v1454
      %v1474 = vrcp.pop %v1457
      %v1475 = vrcp.pop %v1460
      %v1476 = vrcp.pop %v1463
      %v1477 = vrcp.pop %v1466
      %v1478 = vrcp.pop %v1469
      %v1479 = vmul.f32 %v1426, %v1470
      %v1480 = vmul.f32 %v1428, %v1471
      %v1481 = vmul.f32 %v1430, %v1472
      %v1482 = vmul.f32 %v1432, %v1473
      %v1483 = vmul.f32 %v1434, %v1474
      %v1484 = vmul.f32 %v1436, %v1475
      %v1485 = vmul.f32 %v1438, %v1476
      %v1486 = vmul.f32 %v1440, %v1477
      %v1487 = vmul.f32 %v1442, %v1478
      %v1488 = vpack.c.bf16 %v1480, %v1479
      %v1489 = vpack.c.bf16 %v1482, %v1481
      %v1490 = vpack.c.bf16 %v1484, %v1483
      %v1491 = vpack.c.bf16 %v1486, %v1485
      %v1492 = vpack.c.bf16 %v1487, %v1487
      %1498 = vrot.lane.b32.xlu0 %v1282, 64
      %v1499 = vpop.permute.xlu0 %1498
      %1500 = vrot.lane.b32.xlu0 %v1283, 64
      %v1501 = vpop.permute.xlu0 %1500
      %1502 = vrot.lane.b32.xlu0 %v1284, 64
      %v1503 = vpop.permute.xlu0 %1502
      %1504 = vrot.lane.b32.xlu0 %v1285, 64
      %v1505 = vpop.permute.xlu0 %1504
      %1506 = vrot.lane.b32.xlu0 %v1286, 64
      %v1507 = vpop.permute.xlu0 %1506
      %v1513 = vsel %vm1142, %v1488, 0
      %v1516 = vsel %vm1142, %v1489, 0
      %v1519 = vsel %vm1142, %v1490, 0
      %v1522 = vsel %vm1142, %v1491, 0
      %v1525 = vsel %vm1142, %v1492, 0
      %vm1527 = vcmask 1043456
      %v1529 = vsel %vm1527, %v1507, 0
      %1531 = vmatprep.subr.bf16.mxu0 0
      %1532 = vmatpush1.bf16.msra.mxu0 %v1499
      %1533 = vmatprep.subr.bf16.mxu0 0
      %1534 = vmatpush1.bf16.msra.mxu0 %v1501
      %1535 = vmatprep.subr.bf16.mxu0 0
      %1536 = vmatpush1.bf16.msra.mxu0 %v1503
      %1537 = vmatprep.subr.bf16.mxu0 0
      %1538 = vmatpush1.bf16.msra.mxu0 %v1505
      %1539 = vmatprep.subr.bf16.mxu0 0
      %1540 = vmatpush1.bf16.msra.mxu0 %v1529
      %1541 = vmatprep.subr.bf16.mxu0 0
      %1542 = vmatpush1.bf16.msra.mxu0 0
      %1543 = vmatprep.subr.bf16.mxu0 0
      %1544 = vmatpush1.bf16.msra.mxu0 0
      %1545 = vmatprep.subr.bf16.mxu0 0
      %1546 = vmatpush1.bf16.msra.mxu0 0
      %1547 = vmatprep.subr.bf16.mxu0 0
      %1548 = vmatpush1.bf16.msra.mxu0 0
      %1549 = vmatprep.subr.bf16.mxu0 0
      %1550 = vmatpush1.bf16.msra.mxu0 0
      %1551 = vmatprep.subr.bf16.mxu0 0
      %1552 = vmatpush1.bf16.msra.mxu0 0
      %1553 = vmatprep.subr.bf16.mxu0 0
      %1554 = vmatpush1.bf16.msra.mxu0 0
      %1555 = vmatprep.subr.bf16.mxu0 0
      %1556 = vmatpush1.bf16.msra.mxu0 0
      %1557 = vmatprep.subr.bf16.mxu0 0
      %1558 = vmatpush1.bf16.msra.mxu0 0
      %1559 = vmatprep.subr.bf16.mxu0 0
      %1560 = vmatpush1.bf16.msra.mxu0 0
      %1561 = vmatprep.subr.bf16.mxu0 0
      %1562 = vmatpush1.bf16.msra.mxu0 0
      %1563 = vmatprep.mubr.bf16.mxu0 0
      %1564 = vmatmul.mubr.bf16.gmra.mrb[0].mxu0 %v1513
      %v1565 = vpop.f32.mrb[0].mxu0
      %v1566 = vadd.f32 0.0, %v1565
      %v1567 = vpop.f32.mrb[0].mxu0
      %v1568 = vpop.f32.mrb[0].mxu0
      %v1569 = vadd.f32 0.0, %v1568
      %v1570 = vpop.f32.mrb[0].mxu0
      %1571 = vmatprep.mubr.bf16.mxu0 0
      %1572 = vmatmul.mubr.bf16.gmra.mrb[0].mxu0 %v1516
      %v1573 = vpop.f32.mrb[0].mxu0
      %v1574 = vadd.f32 0.0, %v1573
      %v1575 = vpop.f32.mrb[0].mxu0
      %v1576 = vpop.f32.mrb[0].mxu0
      %v1577 = vadd.f32 0.0, %v1576
      %v1578 = vpop.f32.mrb[0].mxu0
      %1579 = vmatprep.mubr.bf16.mxu0 0
      %1580 = vmatmul.mubr.bf16.gmra.mrb[0].mxu0 %v1519
      %v1581 = vpop.f32.mrb[0].mxu0
      %v1582 = vadd.f32 0.0, %v1581
      %v1583 = vpop.f32.mrb[0].mxu0
      %v1584 = vpop.f32.mrb[0].mxu0
      %v1585 = vadd.f32 0.0, %v1584
      %v1586 = vpop.f32.mrb[0].mxu0
      %1587 = vmatprep.mubr.bf16.mxu0 0
      %1588 = vmatmul.mubr.bf16.gmra.mrb[0].mxu0 %v1522
      %v1589 = vpop.f32.mrb[0].mxu0
      %v1590 = vadd.f32 0.0, %v1589
      %v1591 = vpop.f32.mrb[0].mxu0
      %v1592 = vpop.f32.mrb[0].mxu0
      %v1593 = vadd.f32 0.0, %v1592
      %v1594 = vpop.f32.mrb[0].mxu0
      %1595 = vmatprep.mubr.bf16.mxu0 0
      %1596 = vmatmul.mubr.bf16.gmra.mrb[0].mxu0 %v1525
      %v1597 = vpop.f32.mrb[0].mxu0
      %v1598 = vadd.f32 0.0, %v1597
      %v1599 = vpop.f32.mrb[0].mxu0
      %v1600 = vpop.f32.mrb[0].mxu0
      %v1601 = vpop.f32.mrb[0].mxu0
      %1602 = vdwg.mxu0
      %1608 = vrot.lane.b32.xlu0 %v1020, 64
      %v1609 = vpop.permute.xlu0 %1608
      %1610 = vrot.lane.b32.xlu0 %v1021, 64
      %v1611 = vpop.permute.xlu0 %1610
      %1612 = vrot.lane.b32.xlu0 %v1022, 64
      %v1613 = vpop.permute.xlu0 %1612
      %1614 = vrot.lane.b32.xlu0 %v1023, 64
      %v1615 = vpop.permute.xlu0 %1614
      %1616 = vrot.lane.b32.xlu0 %v1024, 64
      %v1617 = vpop.permute.xlu0 %1616
      %v1623 = vsel %vm1142, %v1242, 0
      %v1626 = vsel %vm1142, %v1243, 0
      %v1629 = vsel %vm1142, %v1244, 0
      %v1632 = vsel %vm1142, %v1245, 0
      %v1635 = vsel %vm1142, %v1246, 0
      %v1638 = vsel %vm1527, %v1617, 0
      %1640 = vmatprep.subr.bf16.mxu0 0
      %1641 = vmatpush1.bf16.msra.mxu0 %v1609
      %1642 = vmatprep.subr.bf16.mxu0 0
      %1643 = vmatpush1.bf16.msra.mxu0 %v1611
      %1644 = vmatprep.subr.bf16.mxu0 0
      %1645 = vmatpush1.bf16.msra.mxu0 %v1613
      %1646 = vmatprep.subr.bf16.mxu0 0
      %1647 = vmatpush1.bf16.msra.mxu0 %v1615
      %1648 = vmatprep.subr.bf16.mxu0 0
      %1649 = vmatpush1.bf16.msra.mxu0 %v1638
      %1650 = vmatprep.subr.bf16.mxu0 0
      %1651 = vmatpush1.bf16.msra.mxu0 0
      %1652 = vmatprep.subr.bf16.mxu0 0
      %1653 = vmatpush1.bf16.msra.mxu0 0
      %1654 = vmatprep.subr.bf16.mxu0 0
      %1655 = vmatpush1.bf16.msra.mxu0 0
      %1656 = vmatprep.subr.bf16.mxu0 0
      %1657 = vmatpush1.bf16.msra.mxu0 0
      %1658 = vmatprep.subr.bf16.mxu0 0
      %1659 = vmatpush1.bf16.msra.mxu0 0
      %1660 = vmatprep.subr.bf16.mxu0 0
      %1661 = vmatpush1.bf16.msra.mxu0 0
      %1662 = vmatprep.subr.bf16.mxu0 0
      %1663 = vmatpush1.bf16.msra.mxu0 0
      %1664 = vmatprep.subr.bf16.mxu0 0
      %1665 = vmatpush1.bf16.msra.mxu0 0
      %1666 = vmatprep.subr.bf16.mxu0 0
      %1667 = vmatpush1.bf16.msra.mxu0 0
      %1668 = vmatprep.subr.bf16.mxu0 0
      %1669 = vmatpush1.bf16.msra.mxu0 0
      %1670 = vmatprep.subr.bf16.mxu0 0
      %1671 = vmatpush1.bf16.msra.mxu0 0
      %1672 = vmatprep.mubr.bf16.mxu0 0
      %1673 = vmatmul.mubr.bf16.gmra.mrb[0].mxu0 %v1623
      %v1674 = vpop.f32.mrb[0].mxu0
      %v1675 = vadd.f32 %v1566, %v1674
      %v1676 = vpop.f32.mrb[0].mxu0
      %v1677 = vpop.f32.mrb[0].mxu0
      %v1678 = vadd.f32 %v1569, %v1677
      %v1679 = vpop.f32.mrb[0].mxu0
      %1680 = vmatprep.mubr.bf16.mxu0 0
      %1681 = vmatmul.mubr.bf16.gmra.mrb[0].mxu0 %v1626
      %v1682 = vpop.f32.mrb[0].mxu0
      %v1683 = vadd.f32 %v1574, %v1682
      %v1684 = vpop.f32.mrb[0].mxu0
      %v1685 = vpop.f32.mrb[0].mxu0
      %v1686 = vadd.f32 %v1577, %v1685
      %v1687 = vpop.f32.mrb[0].mxu0
      %1688 = vmatprep.mubr.bf16.mxu0 0
      %1689 = vmatmul.mubr.bf16.gmra.mrb[0].mxu0 %v1629
      %v1690 = vpop.f32.mrb[0].mxu0
      %v1691 = vadd.f32 %v1582, %v1690
      %v1692 = vpop.f32.mrb[0].mxu0
      %v1693 = vpop.f32.mrb[0].mxu0
      %v1694 = vadd.f32 %v1585, %v1693
      %v1695 = vpop.f32.mrb[0].mxu0
      %1696 = vmatprep.mubr.bf16.mxu0 0
      %1697 = vmatmul.mubr.bf16.gmra.mrb[0].mxu0 %v1632
      %v1698 = vpop.f32.mrb[0].mxu0
      %v1699 = vadd.f32 %v1590, %v1698
      %v1700 = vpop.f32.mrb[0].mxu0
      %v1701 = vpop.f32.mrb[0].mxu0
      %v1702 = vadd.f32 %v1593, %v1701
      %v1703 = vpop.f32.mrb[0].mxu0
      %1704 = vmatprep.mubr.bf16.mxu0 0
      %1705 = vmatmul.mubr.bf16.gmra.mrb[0].mxu0 %v1635
      %v1706 = vpop.f32.mrb[0].mxu0
      %v1707 = vadd.f32 %v1598, %v1706
      %v1708 = vpop.f32.mrb[0].mxu0
      %v1709 = vpop.f32.mrb[0].mxu0
      %v1710 = vpop.f32.mrb[0].mxu0
      %1711 = vdwg.mxu0
      %v1712 = vld [vmem:[%s8 + $0x2] sm:$0x1]
      %v1713 = vlaneseq
      %v1714 = vshrl.u32 %v1713, 7
      %v1715 = vsub.s32 0, %v1714
      %v1716 = vrot.slane %v1712, %v1715
      %1718 = vrot.lane.b32.xlu0 %v1716, 32
      %v1719 = vpop.permute.xlu0 %1718
      %v1721 = vmul.f32 %v934, %v1719
      %v1722 = vmul.f32 %v937, %v1719
      %v1723 = vmul.f32 %v942, %v1719
      %v1724 = vmul.f32 %v945, %v1719
      %v1725 = vmul.f32 %v950, %v1719
      %v1726 = vmul.f32 %v953, %v1719
      %v1727 = vmul.f32 %v958, %v1719
      %v1728 = vmul.f32 %v961, %v1719
      %v1729 = vmul.f32 %v966, %v1719
      %v1730 = vpack.c.bf16 %v1722, %v1721
      %v1731 = vpack.c.bf16 %v1724, %v1723
      %v1732 = vpack.c.bf16 %v1726, %v1725
      %v1733 = vpack.c.bf16 %v1728, %v1727
      %v1734 = vpack.c.bf16 %v1729, %v1729
      %1735 = vrot.lane.b32.xlu0 %v1716, 64
      %v1736 = vpop.permute.xlu0 %1735
      %v1738 = vmul.f32 %v934, %v1736
      %v1739 = vmul.f32 %v937, %v1736
      %v1740 = vmul.f32 %v942, %v1736
      %v1741 = vmul.f32 %v945, %v1736
      %v1742 = vmul.f32 %v950, %v1736
      %v1743 = vmul.f32 %v953, %v1736
      %v1744 = vmul.f32 %v958, %v1736
      %v1745 = vmul.f32 %v961, %v1736
      %v1746 = vmul.f32 %v966, %v1736
      %v1747 = vpack.c.bf16 %v1739, %v1738
      %v1748 = vpack.c.bf16 %v1741, %v1740
      %v1749 = vpack.c.bf16 %v1743, %v1742
      %v1750 = vpack.c.bf16 %v1745, %v1744
      %v1751 = vpack.c.bf16 %v1746, %v1746
      %1757 = vrot.lane.b32.xlu0 %v1730, 96
      %v1758 = vpop.permute.xlu0 %1757
      %1759 = vrot.lane.b32.xlu0 %v1731, 96
      %v1760 = vpop.permute.xlu0 %1759
      %1761 = vrot.lane.b32.xlu0 %v1732, 96
      %v1762 = vpop.permute.xlu0 %1761
      %1763 = vrot.lane.b32.xlu0 %v1733, 96
      %v1764 = vpop.permute.xlu0 %1763
      %1765 = vrot.lane.b32.xlu0 %v1734, 96
      %v1766 = vpop.permute.xlu0 %1765
      %v1768 = vsel %vm883, %v1758, 0
      %v1771 = vsel %vm883, %v1760, 0
      %v1774 = vsel %vm883, %v1762, 0
      %v1777 = vsel %vm883, %v1764, 0
      %v1780 = vsel %vm883, %v1766, 0
      %1782 = vmatprep.subr.bf16.mxu0 0
      %1783 = vmatpush1.bf16.xpose.msra.mxu0 %v1768
      %1784 = vmatprep.subr.bf16.mxu0 0
      %1785 = vmatpush1.bf16.xpose.msra.mxu0 %v1771
      %1786 = vmatprep.subr.bf16.mxu0 0
      %1787 = vmatpush1.bf16.xpose.msra.mxu0 %v1774
      %1788 = vmatprep.subr.bf16.mxu0 0
      %1789 = vmatpush1.bf16.xpose.msra.mxu0 %v1777
      %1790 = vmatprep.subr.bf16.mxu0 0
      %1791 = vmatpush1.bf16.xpose.msra.mxu0 %v1780
      %1792 = vmatprep.subr.bf16.mxu0 0
      %1793 = vmatpush1.bf16.xpose.msra.mxu0 0
      %1794 = vmatprep.subr.bf16.mxu0 0
      %1795 = vmatpush1.bf16.xpose.msra.mxu0 0
      %1796 = vmatprep.subr.bf16.mxu0 0
      %1797 = vmatpush1.bf16.xpose.msra.mxu0 0
      %1798 = vmatprep.subr.bf16.mxu0 0
      %1799 = vmatpush1.bf16.xpose.msra.mxu0 0
      %1800 = vmatprep.subr.bf16.mxu0 0
      %1801 = vmatpush1.bf16.xpose.msra.mxu0 0
      %1802 = vmatprep.subr.bf16.mxu0 0
      %1803 = vmatpush1.bf16.xpose.msra.mxu0 0
      %1804 = vmatprep.subr.bf16.mxu0 0
      %1805 = vmatpush1.bf16.xpose.msra.mxu0 0
      %1806 = vmatprep.subr.bf16.mxu0 0
      %1807 = vmatpush1.bf16.xpose.msra.mxu0 0
      %1808 = vmatprep.subr.bf16.mxu0 0
      %1809 = vmatpush1.bf16.xpose.msra.mxu0 0
      %1810 = vmatprep.subr.bf16.mxu0 0
      %1811 = vmatpush1.bf16.xpose.msra.mxu0 0
      %1812 = vmatprep.subr.bf16.mxu0 0
      %1813 = vmatpush1.bf16.xpose.msra.mxu0 0
      %1814 = vmatprep.mubr.bf16.mxu0 0
      %1815 = vmatmul.mubr.bf16.gmra.mrb[0].mxu0 %v1041
      %v1816 = vpop.f32.mrb[0].mxu0
      %v1817 = vadd.f32 %v971, %v1816
      %v1818 = vpop.f32.mrb[0].mxu0
      %v1819 = vpop.f32.mrb[0].mxu0
      %v1820 = vadd.f32 %v972, %v1819
      %v1821 = vpop.f32.mrb[0].mxu0
      %1822 = vmatprep.mubr.bf16.mxu0 0
      %1823 = vmatmul.mubr.bf16.gmra.mrb[0].mxu0 %v1044
      %v1824 = vpop.f32.mrb[0].mxu0
      %v1825 = vadd.f32 %v973, %v1824
      %v1826 = vpop.f32.mrb[0].mxu0
      %v1827 = vpop.f32.mrb[0].mxu0
      %v1828 = vadd.f32 %v974, %v1827
      %v1829 = vpop.f32.mrb[0].mxu0
      %1830 = vmatprep.mubr.bf16.mxu0 0
      %1831 = vmatmul.mubr.bf16.gmra.mrb[0].mxu0 %v1047
      %v1832 = vpop.f32.mrb[0].mxu0
      %v1833 = vadd.f32 %v975, %v1832
      %v1834 = vpop.f32.mrb[0].mxu0
      %v1835 = vpop.f32.mrb[0].mxu0
      %v1836 = vadd.f32 %v976, %v1835
      %v1837 = vpop.f32.mrb[0].mxu0
      %1838 = vmatprep.mubr.bf16.mxu0 0
      %1839 = vmatmul.mubr.bf16.gmra.mrb[0].mxu0 %v1050
      %v1840 = vpop.f32.mrb[0].mxu0
      %v1841 = vadd.f32 %v977, %v1840
      %v1842 = vpop.f32.mrb[0].mxu0
      %v1843 = vpop.f32.mrb[0].mxu0
      %v1844 = vadd.f32 %v978, %v1843
      %v1845 = vpop.f32.mrb[0].mxu0
      %1846 = vmatprep.mubr.bf16.mxu0 0
      %1847 = vmatmul.mubr.bf16.gmra.mrb[0].mxu0 %v1053
      %v1848 = vpop.f32.mrb[0].mxu0
      %v1849 = vadd.f32 %v979, %v1848
      %v1850 = vpop.f32.mrb[0].mxu0
      %v1851 = vpop.f32.mrb[0].mxu0
      %v1852 = vpop.f32.mrb[0].mxu0
      %1853 = vdwg.mxu0
      %v1854 = vsel %vm1142, %v1817, -inf
      %1855 = vmax.xlane.f32.xlu0 %v1854
      %v1856 = vpop.xlane.xlu0 %1855
      %v1857 = vsel %vm1142, %v1820, -inf
      %1858 = vmax.xlane.f32.xlu0 %v1857
      %v1859 = vpop.xlane.xlu0 %1858
      %v1860 = vsel %vm1142, %v1825, -inf
      %1861 = vmax.xlane.f32.xlu0 %v1860
      %v1862 = vpop.xlane.xlu0 %1861
      %v1863 = vsel %vm1142, %v1828, -inf
      %1864 = vmax.xlane.f32.xlu0 %v1863
      %v1865 = vpop.xlane.xlu0 %1864
      %v1866 = vsel %vm1142, %v1833, -inf
      %1867 = vmax.xlane.f32.xlu0 %v1866
      %v1868 = vpop.xlane.xlu0 %1867
      %v1869 = vsel %vm1142, %v1836, -inf
      %1870 = vmax.xlane.f32.xlu0 %v1869
      %v1871 = vpop.xlane.xlu0 %1870
      %v1872 = vsel %vm1142, %v1841, -inf
      %1873 = vmax.xlane.f32.xlu0 %v1872
      %v1874 = vpop.xlane.xlu0 %1873
      %v1875 = vsel %vm1142, %v1844, -inf
      %1876 = vmax.xlane.f32.xlu0 %v1875
      %v1877 = vpop.xlane.xlu0 %1876
      %v1878 = vsel %vm1142, %v1849, -inf
      %1879 = vmax.xlane.f32.xlu0 %v1878
      %v1880 = vpop.xlane.xlu0 %1879
      %v1881 = vsub.f32 %v1817, %v1856
      %v1882 = vsub.f32 %v1820, %v1859
      %v1883 = vsub.f32 %v1825, %v1862
      %v1884 = vsub.f32 %v1828, %v1865
      %v1885 = vsub.f32 %v1833, %v1868
      %v1886 = vsub.f32 %v1836, %v1871
      %v1887 = vsub.f32 %v1841, %v1874
      %v1888 = vsub.f32 %v1844, %v1877
      %v1889 = vsub.f32 %v1849, %v1880
      %v1890 = vmul.f32 %v1881, 1.442695
      %v1891 = vpow.pop %v1890
      %v1892 = vmul.f32 %v1882, 1.442695
      %v1893 = vpow.pop %v1892
      %v1894 = vmul.f32 %v1883, 1.442695
      %v1895 = vpow.pop %v1894
      %v1896 = vmul.f32 %v1884, 1.442695
      %v1897 = vpow.pop %v1896
      %v1898 = vmul.f32 %v1885, 1.442695
      %v1899 = vpow.pop %v1898
      %v1900 = vmul.f32 %v1886, 1.442695
      %v1901 = vpow.pop %v1900
      %v1902 = vmul.f32 %v1887, 1.442695
      %v1903 = vpow.pop %v1902
      %v1904 = vmul.f32 %v1888, 1.442695
      %v1905 = vpow.pop %v1904
      %v1906 = vmul.f32 %v1889, 1.442695
      %v1907 = vpow.pop %v1906
      %v1908 = vsel %vm1142, %v1891, 0.0
      %1909 = vadd.xlane.f32.xlu0 %v1908
      %v1910 = vpop.xlane.xlu0 %1909
      %v1911 = vsel %vm1142, %v1893, 0.0
      %1912 = vadd.xlane.f32.xlu0 %v1911
      %v1913 = vpop.xlane.xlu0 %1912
      %v1914 = vsel %vm1142, %v1895, 0.0
      %1915 = vadd.xlane.f32.xlu0 %v1914
      %v1916 = vpop.xlane.xlu0 %1915
      %v1917 = vsel %vm1142, %v1897, 0.0
      %1918 = vadd.xlane.f32.xlu0 %v1917
      %v1919 = vpop.xlane.xlu0 %1918
      %v1920 = vsel %vm1142, %v1899, 0.0
      %1921 = vadd.xlane.f32.xlu0 %v1920
      %v1922 = vpop.xlane.xlu0 %1921
      %v1923 = vsel %vm1142, %v1901, 0.0
      %1924 = vadd.xlane.f32.xlu0 %v1923
      %v1925 = vpop.xlane.xlu0 %1924
      %v1926 = vsel %vm1142, %v1903, 0.0
      %1927 = vadd.xlane.f32.xlu0 %v1926
      %v1928 = vpop.xlane.xlu0 %1927
      %v1929 = vsel %vm1142, %v1905, 0.0
      %1930 = vadd.xlane.f32.xlu0 %v1929
      %v1931 = vpop.xlane.xlu0 %1930
      %v1932 = vsel %vm1142, %v1907, 0.0
      %1933 = vadd.xlane.f32.xlu0 %v1932
      %v1934 = vpop.xlane.xlu0 %1933
      %v1935 = vrcp.pop %v1910
      %v1936 = vrcp.pop %v1913
      %v1937 = vrcp.pop %v1916
      %v1938 = vrcp.pop %v1919
      %v1939 = vrcp.pop %v1922
      %v1940 = vrcp.pop %v1925
      %v1941 = vrcp.pop %v1928
      %v1942 = vrcp.pop %v1931
      %v1943 = vrcp.pop %v1934
      %v1944 = vmul.f32 %v1891, %v1935
      %v1945 = vmul.f32 %v1893, %v1936
      %v1946 = vmul.f32 %v1895, %v1937
      %v1947 = vmul.f32 %v1897, %v1938
      %v1948 = vmul.f32 %v1899, %v1939
      %v1949 = vmul.f32 %v1901, %v1940
      %v1950 = vmul.f32 %v1903, %v1941
      %v1951 = vmul.f32 %v1905, %v1942
      %v1952 = vmul.f32 %v1907, %v1943
      %v1953 = vpack.c.bf16 %v1945, %v1944
      %v1954 = vpack.c.bf16 %v1947, %v1946
      %v1955 = vpack.c.bf16 %v1949, %v1948
      %v1956 = vpack.c.bf16 %v1951, %v1950
      %v1957 = vpack.c.bf16 %v1952, %v1952
      %1963 = vrot.lane.b32.xlu0 %v1747, 64
      %v1964 = vpop.permute.xlu0 %1963
      %1965 = vrot.lane.b32.xlu0 %v1748, 64
      %v1966 = vpop.permute.xlu0 %1965
      %1967 = vrot.lane.b32.xlu0 %v1749, 64
      %v1968 = vpop.permute.xlu0 %1967
      %1969 = vrot.lane.b32.xlu0 %v1750, 64
      %v1970 = vpop.permute.xlu0 %1969
      %1971 = vrot.lane.b32.xlu0 %v1751, 64
      %v1972 = vpop.permute.xlu0 %1971
      %v1978 = vsel %vm1142, %v1953, 0
      %v1981 = vsel %vm1142, %v1954, 0
      %v1984 = vsel %vm1142, %v1955, 0
      %v1987 = vsel %vm1142, %v1956, 0
      %v1990 = vsel %vm1142, %v1957, 0
      %v1993 = vsel %vm1527, %v1972, 0
      %1995 = vmatprep.subr.bf16.mxu0 0
      %1996 = vmatpush1.bf16.msra.mxu0 %v1964
      %1997 = vmatprep.subr.bf16.mxu0 0
      %1998 = vmatpush1.bf16.msra.mxu0 %v1966
      %1999 = vmatprep.subr.bf16.mxu0 0
      %2000 = vmatpush1.bf16.msra.mxu0 %v1968
      %2001 = vmatprep.subr.bf16.mxu0 0
      %2002 = vmatpush1.bf16.msra.mxu0 %v1970
      %2003 = vmatprep.subr.bf16.mxu0 0
      %2004 = vmatpush1.bf16.msra.mxu0 %v1993
      %2005 = vmatprep.subr.bf16.mxu0 0
      %2006 = vmatpush1.bf16.msra.mxu0 0
      %2007 = vmatprep.subr.bf16.mxu0 0
      %2008 = vmatpush1.bf16.msra.mxu0 0
      %2009 = vmatprep.subr.bf16.mxu0 0
      %2010 = vmatpush1.bf16.msra.mxu0 0
      %2011 = vmatprep.subr.bf16.mxu0 0
      %2012 = vmatpush1.bf16.msra.mxu0 0
      %2013 = vmatprep.subr.bf16.mxu0 0
      %2014 = vmatpush1.bf16.msra.mxu0 0
      %2015 = vmatprep.subr.bf16.mxu0 0
      %2016 = vmatpush1.bf16.msra.mxu0 0
      %2017 = vmatprep.subr.bf16.mxu0 0
      %2018 = vmatpush1.bf16.msra.mxu0 0
      %2019 = vmatprep.subr.bf16.mxu0 0
      %2020 = vmatpush1.bf16.msra.mxu0 0
      %2021 = vmatprep.subr.bf16.mxu0 0
      %2022 = vmatpush1.bf16.msra.mxu0 0
      %2023 = vmatprep.subr.bf16.mxu0 0
      %2024 = vmatpush1.bf16.msra.mxu0 0
      %2025 = vmatprep.subr.bf16.mxu0 0
      %2026 = vmatpush1.bf16.msra.mxu0 0
      %2027 = vmatprep.mubr.bf16.mxu0 0
      %2028 = vmatmul.mubr.bf16.gmra.mrb[0].mxu0 %v1978
      %v2029 = vpop.f32.mrb[0].mxu0
      %v2030 = vadd.f32 0.0, %v2029
      %v2031 = vpop.f32.mrb[0].mxu0
      %v2032 = vpop.f32.mrb[0].mxu0
      %v2033 = vadd.f32 0.0, %v2032
      %v2034 = vpop.f32.mrb[0].mxu0
      %2035 = vmatprep.mubr.bf16.mxu0 0
      %2036 = vmatmul.mubr.bf16.gmra.mrb[0].mxu0 %v1981
      %v2037 = vpop.f32.mrb[0].mxu0
      %v2038 = vadd.f32 0.0, %v2037
      %v2039 = vpop.f32.mrb[0].mxu0
      %v2040 = vpop.f32.mrb[0].mxu0
      %v2041 = vadd.f32 0.0, %v2040
      %v2042 = vpop.f32.mrb[0].mxu0
      %2043 = vmatprep.mubr.bf16.mxu0 0
      %2044 = vmatmul.mubr.bf16.gmra.mrb[0].mxu0 %v1984
      %v2045 = vpop.f32.mrb[0].mxu0
      %v2046 = vadd.f32 0.0, %v2045
      %v2047 = vpop.f32.mrb[0].mxu0
      %v2048 = vpop.f32.mrb[0].mxu0
      %v2049 = vadd.f32 0.0, %v2048
      %v2050 = vpop.f32.mrb[0].mxu0
      %2051 = vmatprep.mubr.bf16.mxu0 0
      %2052 = vmatmul.mubr.bf16.gmra.mrb[0].mxu0 %v1987
      %v2053 = vpop.f32.mrb[0].mxu0
      %v2054 = vadd.f32 0.0, %v2053
      %v2055 = vpop.f32.mrb[0].mxu0
      %v2056 = vpop.f32.mrb[0].mxu0
      %v2057 = vadd.f32 0.0, %v2056
      %v2058 = vpop.f32.mrb[0].mxu0
      %2059 = vmatprep.mubr.bf16.mxu0 0
      %2060 = vmatmul.mubr.bf16.gmra.mrb[0].mxu0 %v1990
      %v2061 = vpop.f32.mrb[0].mxu0
      %v2062 = vadd.f32 0.0, %v2061
      %v2063 = vpop.f32.mrb[0].mxu0
      %v2064 = vpop.f32.mrb[0].mxu0
      %v2065 = vpop.f32.mrb[0].mxu0
      %2066 = vdwg.mxu0
      %v2067 = vadd.f32 %v1675, %v2030
      %v2068 = vadd.f32 %v1678, %v2033
      %v2069 = vadd.f32 %v1683, %v2038
      %v2070 = vadd.f32 %v1686, %v2041
      %v2071 = vadd.f32 %v1691, %v2046
      %v2072 = vadd.f32 %v1694, %v2049
      %v2073 = vadd.f32 %v1699, %v2054
      %v2074 = vadd.f32 %v1702, %v2057
      %v2075 = vadd.f32 %v1707, %v2062
      %v2076 = vld [vmem:[%s8 + $0x3] sm:$0x1]
      %v2077 = vlaneseq
      %v2078 = vshrl.u32 %v2077, 7
      %v2079 = vsub.s32 0, %v2078
      %v2080 = vrot.slane %v2076, %v2079
      %2082 = vrot.lane.b32.xlu0 %v2080, 32
      %v2083 = vpop.permute.xlu0 %2082
      %v2085 = vmul.f32 %v934, %v2083
      %v2086 = vmul.f32 %v937, %v2083
      %v2087 = vmul.f32 %v942, %v2083
      %v2088 = vmul.f32 %v945, %v2083
      %v2089 = vmul.f32 %v950, %v2083
      %v2090 = vmul.f32 %v953, %v2083
      %v2091 = vmul.f32 %v958, %v2083
      %v2092 = vmul.f32 %v961, %v2083
      %v2093 = vmul.f32 %v966, %v2083
      %v2094 = vpack.c.bf16 %v2086, %v2085
      %v2095 = vpack.c.bf16 %v2088, %v2087
      %v2096 = vpack.c.bf16 %v2090, %v2089
      %v2097 = vpack.c.bf16 %v2092, %v2091
      %v2098 = vpack.c.bf16 %v2093, %v2093
      %2099 = vrot.lane.b32.xlu0 %v2080, 64
      %v2100 = vpop.permute.xlu0 %2099
      %v2102 = vmul.f32 %v934, %v2100
      %v2103 = vmul.f32 %v937, %v2100
      %v2104 = vmul.f32 %v942, %v2100
      %v2105 = vmul.f32 %v945, %v2100
      %v2106 = vmul.f32 %v950, %v2100
      %v2107 = vmul.f32 %v953, %v2100
      %v2108 = vmul.f32 %v958, %v2100
      %v2109 = vmul.f32 %v961, %v2100
      %v2110 = vmul.f32 %v966, %v2100
      %v2111 = vpack.c.bf16 %v2103, %v2102
      %v2112 = vpack.c.bf16 %v2105, %v2104
      %v2113 = vpack.c.bf16 %v2107, %v2106
      %v2114 = vpack.c.bf16 %v2109, %v2108
      %v2115 = vpack.c.bf16 %v2110, %v2110
      %2121 = vrot.lane.b32.xlu0 %v2094, 96
      %v2122 = vpop.permute.xlu0 %2121
      %2123 = vrot.lane.b32.xlu0 %v2095, 96
      %v2124 = vpop.permute.xlu0 %2123
      %2125 = vrot.lane.b32.xlu0 %v2096, 96
      %v2126 = vpop.permute.xlu0 %2125
      %2127 = vrot.lane.b32.xlu0 %v2097, 96
      %v2128 = vpop.permute.xlu0 %2127
      %2129 = vrot.lane.b32.xlu0 %v2098, 96
      %v2130 = vpop.permute.xlu0 %2129
      %v2132 = vsel %vm883, %v2122, 0
      %v2135 = vsel %vm883, %v2124, 0
      %v2138 = vsel %vm883, %v2126, 0
      %v2141 = vsel %vm883, %v2128, 0
      %v2144 = vsel %vm883, %v2130, 0
      %2146 = vmatprep.subr.bf16.mxu0 0
      %2147 = vmatpush1.bf16.xpose.msra.mxu0 %v2132
      %2148 = vmatprep.subr.bf16.mxu0 0
      %2149 = vmatpush1.bf16.xpose.msra.mxu0 %v2135
      %2150 = vmatprep.subr.bf16.mxu0 0
      %2151 = vmatpush1.bf16.xpose.msra.mxu0 %v2138
      %2152 = vmatprep.subr.bf16.mxu0 0
      %2153 = vmatpush1.bf16.xpose.msra.mxu0 %v2141
      %2154 = vmatprep.subr.bf16.mxu0 0
      %2155 = vmatpush1.bf16.xpose.msra.mxu0 %v2144
      %2156 = vmatprep.subr.bf16.mxu0 0
      %2157 = vmatpush1.bf16.xpose.msra.mxu0 0
      %2158 = vmatprep.subr.bf16.mxu0 0
      %2159 = vmatpush1.bf16.xpose.msra.mxu0 0
      %2160 = vmatprep.subr.bf16.mxu0 0
      %2161 = vmatpush1.bf16.xpose.msra.mxu0 0
      %2162 = vmatprep.subr.bf16.mxu0 0
      %2163 = vmatpush1.bf16.xpose.msra.mxu0 0
      %2164 = vmatprep.subr.bf16.mxu0 0
      %2165 = vmatpush1.bf16.xpose.msra.mxu0 0
      %2166 = vmatprep.subr.bf16.mxu0 0
      %2167 = vmatpush1.bf16.xpose.msra.mxu0 0
      %2168 = vmatprep.subr.bf16.mxu0 0
      %2169 = vmatpush1.bf16.xpose.msra.mxu0 0
      %2170 = vmatprep.subr.bf16.mxu0 0
      %2171 = vmatpush1.bf16.xpose.msra.mxu0 0
      %2172 = vmatprep.subr.bf16.mxu0 0
      %2173 = vmatpush1.bf16.xpose.msra.mxu0 0
      %2174 = vmatprep.subr.bf16.mxu0 0
      %2175 = vmatpush1.bf16.xpose.msra.mxu0 0
      %2176 = vmatprep.subr.bf16.mxu0 0
      %2177 = vmatpush1.bf16.xpose.msra.mxu0 0
      %2178 = vmatprep.mubr.bf16.mxu0 0
      %2179 = vmatmul.mubr.bf16.gmra.mrb[0].mxu0 %v1041
      %v2180 = vpop.f32.mrb[0].mxu0
      %v2181 = vadd.f32 %v971, %v2180
      %v2182 = vpop.f32.mrb[0].mxu0
      %v2183 = vpop.f32.mrb[0].mxu0
      %v2184 = vadd.f32 %v972, %v2183
      %v2185 = vpop.f32.mrb[0].mxu0
      %2186 = vmatprep.mubr.bf16.mxu0 0
      %2187 = vmatmul.mubr.bf16.gmra.mrb[0].mxu0 %v1044
      %v2188 = vpop.f32.mrb[0].mxu0
      %v2189 = vadd.f32 %v973, %v2188
      %v2190 = vpop.f32.mrb[0].mxu0
      %v2191 = vpop.f32.mrb[0].mxu0
      %v2192 = vadd.f32 %v974, %v2191
      %v2193 = vpop.f32.mrb[0].mxu0
      %2194 = vmatprep.mubr.bf16.mxu0 0
      %2195 = vmatmul.mubr.bf16.gmra.mrb[0].mxu0 %v1047
      %v2196 = vpop.f32.mrb[0].mxu0
      %v2197 = vadd.f32 %v975, %v2196
      %v2198 = vpop.f32.mrb[0].mxu0
      %v2199 = vpop.f32.mrb[0].mxu0
      %v2200 = vadd.f32 %v976, %v2199
      %v2201 = vpop.f32.mrb[0].mxu0
      %2202 = vmatprep.mubr.bf16.mxu0 0
      %2203 = vmatmul.mubr.bf16.gmra.mrb[0].mxu0 %v1050
      %v2204 = vpop.f32.mrb[0].mxu0
      %v2205 = vadd.f32 %v977, %v2204
      %v2206 = vpop.f32.mrb[0].mxu0
      %v2207 = vpop.f32.mrb[0].mxu0
      %v2208 = vadd.f32 %v978, %v2207
      %v2209 = vpop.f32.mrb[0].mxu0
      %2210 = vmatprep.mubr.bf16.mxu0 0
      %2211 = vmatmul.mubr.bf16.gmra.mrb[0].mxu0 %v1053
      %v2212 = vpop.f32.mrb[0].mxu0
      %v2213 = vadd.f32 %v979, %v2212
      %v2214 = vpop.f32.mrb[0].mxu0
      %v2215 = vpop.f32.mrb[0].mxu0
      %v2216 = vpop.f32.mrb[0].mxu0
      %2217 = vdwg.mxu0
      %v2218 = vsel %vm1142, %v2181, -inf
      %2219 = vmax.xlane.f32.xlu0 %v2218
      %v2220 = vpop.xlane.xlu0 %2219
      %v2221 = vsel %vm1142, %v2184, -inf
      %2222 = vmax.xlane.f32.xlu0 %v2221
      %v2223 = vpop.xlane.xlu0 %2222
      %v2224 = vsel %vm1142, %v2189, -inf
      %2225 = vmax.xlane.f32.xlu0 %v2224
      %v2226 = vpop.xlane.xlu0 %2225
      %v2227 = vsel %vm1142, %v2192, -inf
      %2228 = vmax.xlane.f32.xlu0 %v2227
      %v2229 = vpop.xlane.xlu0 %2228
      %v2230 = vsel %vm1142, %v2197, -inf
      %2231 = vmax.xlane.f32.xlu0 %v2230
      %v2232 = vpop.xlane.xlu0 %2231
      %v2233 = vsel %vm1142, %v2200, -inf
      %2234 = vmax.xlane.f32.xlu0 %v2233
      %v2235 = vpop.xlane.xlu0 %2234
      %v2236 = vsel %vm1142, %v2205, -inf
      %2237 = vmax.xlane.f32.xlu0 %v2236
      %v2238 = vpop.xlane.xlu0 %2237
      %v2239 = vsel %vm1142, %v2208, -inf
      %2240 = vmax.xlane.f32.xlu0 %v2239
      %v2241 = vpop.xlane.xlu0 %2240
      %v2242 = vsel %vm1142, %v2213, -inf
      %2243 = vmax.xlane.f32.xlu0 %v2242
      %v2244 = vpop.xlane.xlu0 %2243
      %v2245 = vsub.f32 %v2181, %v2220
      %v2246 = vsub.f32 %v2184, %v2223
      %v2247 = vsub.f32 %v2189, %v2226
      %v2248 = vsub.f32 %v2192, %v2229
      %v2249 = vsub.f32 %v2197, %v2232
      %v2250 = vsub.f32 %v2200, %v2235
      %v2251 = vsub.f32 %v2205, %v2238
      %v2252 = vsub.f32 %v2208, %v2241
      %v2253 = vsub.f32 %v2213, %v2244
      %v2254 = vmul.f32 %v2245, 1.442695
      %v2255 = vpow.pop %v2254
      %v2256 = vmul.f32 %v2246, 1.442695
      %v2257 = vpow.pop %v2256
      %v2258 = vmul.f32 %v2247, 1.442695
      %v2259 = vpow.pop %v2258
      %v2260 = vmul.f32 %v2248, 1.442695
      %v2261 = vpow.pop %v2260
      %v2262 = vmul.f32 %v2249, 1.442695
      %v2263 = vpow.pop %v2262
      %v2264 = vmul.f32 %v2250, 1.442695
      %v2265 = vpow.pop %v2264
      %v2266 = vmul.f32 %v2251, 1.442695
      %v2267 = vpow.pop %v2266
      %v2268 = vmul.f32 %v2252, 1.442695
      %v2269 = vpow.pop %v2268
      %v2270 = vmul.f32 %v2253, 1.442695
      %v2271 = vpow.pop %v2270
      %v2272 = vsel %vm1142, %v2255, 0.0
      %2273 = vadd.xlane.f32.xlu0 %v2272
      %v2274 = vpop.xlane.xlu0 %2273
      %v2275 = vsel %vm1142, %v2257, 0.0
      %2276 = vadd.xlane.f32.xlu0 %v2275
      %v2277 = vpop.xlane.xlu0 %2276
      %v2278 = vsel %vm1142, %v2259, 0.0
      %2279 = vadd.xlane.f32.xlu0 %v2278
      %v2280 = vpop.xlane.xlu0 %2279
      %v2281 = vsel %vm1142, %v2261, 0.0
      %2282 = vadd.xlane.f32.xlu0 %v2281
      %v2283 = vpop.xlane.xlu0 %2282
      %v2284 = vsel %vm1142, %v2263, 0.0
      %2285 = vadd.xlane.f32.xlu0 %v2284
      %v2286 = vpop.xlane.xlu0 %2285
      %v2287 = vsel %vm1142, %v2265, 0.0
      %2288 = vadd.xlane.f32.xlu0 %v2287
      %v2289 = vpop.xlane.xlu0 %2288
      %v2290 = vsel %vm1142, %v2267, 0.0
      %2291 = vadd.xlane.f32.xlu0 %v2290
      %v2292 = vpop.xlane.xlu0 %2291
      %v2293 = vsel %vm1142, %v2269, 0.0
      %2294 = vadd.xlane.f32.xlu0 %v2293
      %v2295 = vpop.xlane.xlu0 %2294
      %v2296 = vsel %vm1142, %v2271, 0.0
      %2297 = vadd.xlane.f32.xlu0 %v2296
      %v2298 = vpop.xlane.xlu0 %2297
      %v2299 = vrcp.pop %v2274
      %v2300 = vrcp.pop %v2277
      %v2301 = vrcp.pop %v2280
      %v2302 = vrcp.pop %v2283
      %v2303 = vrcp.pop %v2286
      %v2304 = vrcp.pop %v2289
      %v2305 = vrcp.pop %v2292
      %v2306 = vrcp.pop %v2295
      %v2307 = vrcp.pop %v2298
      %v2308 = vmul.f32 %v2255, %v2299
      %v2309 = vmul.f32 %v2257, %v2300
      %v2310 = vmul.f32 %v2259, %v2301
      %v2311 = vmul.f32 %v2261, %v2302
      %v2312 = vmul.f32 %v2263, %v2303
      %v2313 = vmul.f32 %v2265, %v2304
      %v2314 = vmul.f32 %v2267, %v2305
      %v2315 = vmul.f32 %v2269, %v2306
      %v2316 = vmul.f32 %v2271, %v2307
      %v2317 = vpack.c.bf16 %v2309, %v2308
      %v2318 = vpack.c.bf16 %v2311, %v2310
      %v2319 = vpack.c.bf16 %v2313, %v2312
      %v2320 = vpack.c.bf16 %v2315, %v2314
      %v2321 = vpack.c.bf16 %v2316, %v2316
      %2327 = vrot.lane.b32.xlu0 %v2111, 64
      %v2328 = vpop.permute.xlu0 %2327
      %2329 = vrot.lane.b32.xlu0 %v2112, 64
      %v2330 = vpop.permute.xlu0 %2329
      %2331 = vrot.lane.b32.xlu0 %v2113, 64
      %v2332 = vpop.permute.xlu0 %2331
      %2333 = vrot.lane.b32.xlu0 %v2114, 64
      %v2334 = vpop.permute.xlu0 %2333
      %2335 = vrot.lane.b32.xlu0 %v2115, 64
      %v2336 = vpop.permute.xlu0 %2335
      %v2342 = vsel %vm1142, %v2317, 0
      %v2345 = vsel %vm1142, %v2318, 0
      %v2348 = vsel %vm1142, %v2319, 0
      %v2351 = vsel %vm1142, %v2320, 0
      %v2354 = vsel %vm1142, %v2321, 0
      %v2357 = vsel %vm1527, %v2336, 0
      %2359 = vmatprep.subr.bf16.mxu0 0
      %2360 = vmatpush1.bf16.msra.mxu0 %v2328
      %2361 = vmatprep.subr.bf16.mxu0 0
      %2362 = vmatpush1.bf16.msra.mxu0 %v2330
      %2363 = vmatprep.subr.bf16.mxu0 0
      %2364 = vmatpush1.bf16.msra.mxu0 %v2332
      %2365 = vmatprep.subr.bf16.mxu0 0
      %2366 = vmatpush1.bf16.msra.mxu0 %v2334
      %2367 = vmatprep.subr.bf16.mxu0 0
      %2368 = vmatpush1.bf16.msra.mxu0 %v2357
      %2369 = vmatprep.subr.bf16.mxu0 0
      %2370 = vmatpush1.bf16.msra.mxu0 0
      %2371 = vmatprep.subr.bf16.mxu0 0
      %2372 = vmatpush1.bf16.msra.mxu0 0
      %2373 = vmatprep.subr.bf16.mxu0 0
      %2374 = vmatpush1.bf16.msra.mxu0 0
      %2375 = vmatprep.subr.bf16.mxu0 0
      %2376 = vmatpush1.bf16.msra.mxu0 0
      %2377 = vmatprep.subr.bf16.mxu0 0
      %2378 = vmatpush1.bf16.msra.mxu0 0
      %2379 = vmatprep.subr.bf16.mxu0 0
      %2380 = vmatpush1.bf16.msra.mxu0 0
      %2381 = vmatprep.subr.bf16.mxu0 0
      %2382 = vmatpush1.bf16.msra.mxu0 0
      %2383 = vmatprep.subr.bf16.mxu0 0
      %2384 = vmatpush1.bf16.msra.mxu0 0
      %2385 = vmatprep.subr.bf16.mxu0 0
      %2386 = vmatpush1.bf16.msra.mxu0 0
      %2387 = vmatprep.subr.bf16.mxu0 0
      %2388 = vmatpush1.bf16.msra.mxu0 0
      %2389 = vmatprep.subr.bf16.mxu0 0
      %2390 = vmatpush1.bf16.msra.mxu0 0
      %2391 = vmatprep.mubr.bf16.mxu0 0
      %2392 = vmatmul.mubr.bf16.gmra.mrb[0].mxu0 %v2342
      %v2393 = vpop.f32.mrb[0].mxu0
      %v2394 = vadd.f32 0.0, %v2393
      %v2395 = vpop.f32.mrb[0].mxu0
      %v2396 = vpop.f32.mrb[0].mxu0
      %v2397 = vadd.f32 0.0, %v2396
      %v2398 = vpop.f32.mrb[0].mxu0
      %2399 = vmatprep.mubr.bf16.mxu0 0
      %2400 = vmatmul.mubr.bf16.gmra.mrb[0].mxu0 %v2345
      %v2401 = vpop.f32.mrb[0].mxu0
      %v2402 = vadd.f32 0.0, %v2401
      %v2403 = vpop.f32.mrb[0].mxu0
      %v2404 = vpop.f32.mrb[0].mxu0
      %v2405 = vadd.f32 0.0, %v2404
      %v2406 = vpop.f32.mrb[0].mxu0
      %2407 = vmatprep.mubr.bf16.mxu0 0
      %2408 = vmatmul.mubr.bf16.gmra.mrb[0].mxu0 %v2348
      %v2409 = vpop.f32.mrb[0].mxu0
      %v2410 = vadd.f32 0.0, %v2409
      %v2411 = vpop.f32.mrb[0].mxu0
      %v2412 = vpop.f32.mrb[0].mxu0
      %v2413 = vadd.f32 0.0, %v2412
      %v2414 = vpop.f32.mrb[0].mxu0
      %2415 = vmatprep.mubr.bf16.mxu0 0
      %2416 = vmatmul.mubr.bf16.gmra.mrb[0].mxu0 %v2351
      %v2417 = vpop.f32.mrb[0].mxu0
      %v2418 = vadd.f32 0.0, %v2417
      %v2419 = vpop.f32.mrb[0].mxu0
      %v2420 = vpop.f32.mrb[0].mxu0
      %v2421 = vadd.f32 0.0, %v2420
      %v2422 = vpop.f32.mrb[0].mxu0
      %2423 = vmatprep.mubr.bf16.mxu0 0
      %2424 = vmatmul.mubr.bf16.gmra.mrb[0].mxu0 %v2354
      %v2425 = vpop.f32.mrb[0].mxu0
      %v2426 = vadd.f32 0.0, %v2425
      %v2427 = vpop.f32.mrb[0].mxu0
      %v2428 = vpop.f32.mrb[0].mxu0
      %v2429 = vpop.f32.mrb[0].mxu0
      %2430 = vdwg.mxu0
      %v2431 = vadd.f32 %v2067, %v2394
      %v2432 = vadd.f32 %v2068, %v2397
      %v2433 = vadd.f32 %v2069, %v2402
      %v2434 = vadd.f32 %v2070, %v2405
      %v2435 = vadd.f32 %v2071, %v2410
      %v2436 = vadd.f32 %v2072, %v2413
      %v2437 = vadd.f32 %v2073, %v2418
      %v2438 = vadd.f32 %v2074, %v2421
      %v2439 = vadd.f32 %v2075, %v2426
      %v2440 = vpack.c.bf16 %v2432, %v2431
      %v2441 = vpack.c.bf16 %v2434, %v2433
      %v2442 = vpack.c.bf16 %v2436, %v2435
      %v2443 = vpack.c.bf16 %v2438, %v2437
      %v2444 = vpack.c.bf16 %v2439, %v2439
      %v2445 = vlaneseq
      %v2446 = vshrl.u32 %v2445, 7
      %v2447 = vsub.s32 0, %v2446
      %v2448 = vrot.slane %v859, %v2447
      %v2453 = vunpack.c.l.b16 %v564
      %v2454 = vunpack.c.l.b16 %v565
      %v2455 = vunpack.c.l.b16 %v566
      %v2456 = vunpack.c.l.b16 %v567
      %v2457 = vpack.c.b16 %v2454, %v2453
      %v2458 = vpack.c.b16 %v2456, %v2455
      %v2462 = vsel %vm883, %v2440, 0
      %v2465 = vsel %vm883, %v2441, 0
      %v2468 = vsel %vm883, %v2442, 0
      %v2471 = vsel %vm883, %v2443, 0
      %v2474 = vsel %vm883, %v2444, 0
      %2476 = vmatprep.subr.bf16.mxu0 0
      %2477 = vmatpush1.bf16.msra.mxu0 %v2457
      %2478 = vmatprep.subr.bf16.mxu0 0
      %2479 = vmatpush1.bf16.msra.mxu0 %v2458
      %2480 = vmatprep.subr.bf16.mxu0 0
      %2481 = vmatpush1.bf16.msra.mxu0 0
      %2482 = vmatprep.subr.bf16.mxu0 0
      %2483 = vmatpush1.bf16.msra.mxu0 0
      %2484 = vmatprep.subr.bf16.mxu0 0
      %2485 = vmatpush1.bf16.msra.mxu0 0
      %2486 = vmatprep.subr.bf16.mxu0 0
      %2487 = vmatpush1.bf16.msra.mxu0 0
      %2488 = vmatprep.subr.bf16.mxu0 0
      %2489 = vmatpush1.bf16.msra.mxu0 0
      %2490 = vmatprep.subr.bf16.mxu0 0
      %2491 = vmatpush1.bf16.msra.mxu0 0
      %2492 = vmatprep.subr.bf16.mxu0 0
      %2493 = vmatpush1.bf16.msra.mxu0 0
      %2494 = vmatprep.subr.bf16.mxu0 0
      %2495 = vmatpush1.bf16.msra.mxu0 0
      %2496 = vmatprep.subr.bf16.mxu0 0
      %2497 = vmatpush1.bf16.msra.mxu0 0
      %2498 = vmatprep.subr.bf16.mxu0 0
      %2499 = vmatpush1.bf16.msra.mxu0 0
      %2500 = vmatprep.subr.bf16.mxu0 0
      %2501 = vmatpush1.bf16.msra.mxu0 0
      %2502 = vmatprep.subr.bf16.mxu0 0
      %2503 = vmatpush1.bf16.msra.mxu0 0
      %2504 = vmatprep.subr.bf16.mxu0 0
      %2505 = vmatpush1.bf16.msra.mxu0 0
      %2506 = vmatprep.subr.bf16.mxu0 0
      %2507 = vmatpush1.bf16.msra.mxu0 0
      %2508 = vmatprep.mubr.bf16.mxu0 0
      %2509 = vmatmul.mubr.bf16.gmra.mrb[0].mxu0 %v2462
      %v2510 = vpop.f32.mrb[0].mxu0
      %v2511 = vadd.f32 %v2448, %v2510
      %v2512 = vpop.f32.mrb[0].mxu0
      %v2513 = vpop.f32.mrb[0].mxu0
      %v2514 = vadd.f32 %v2448, %v2513
      %v2515 = vpop.f32.mrb[0].mxu0
      %2516 = vmatprep.mubr.bf16.mxu0 0
      %2517 = vmatmul.mubr.bf16.gmra.mrb[0].mxu0 %v2465
      %v2518 = vpop.f32.mrb[0].mxu0
      %v2519 = vadd.f32 %v2448, %v2518
      %v2520 = vpop.f32.mrb[0].mxu0
      %v2521 = vpop.f32.mrb[0].mxu0
      %v2522 = vadd.f32 %v2448, %v2521
      %v2523 = vpop.f32.mrb[0].mxu0
      %2524 = vmatprep.mubr.bf16.mxu0 0
      %2525 = vmatmul.mubr.bf16.gmra.mrb[0].mxu0 %v2468
      %v2526 = vpop.f32.mrb[0].mxu0
      %v2527 = vadd.f32 %v2448, %v2526
      %v2528 = vpop.f32.mrb[0].mxu0
      %v2529 = vpop.f32.mrb[0].mxu0
      %v2530 = vadd.f32 %v2448, %v2529
      %v2531 = vpop.f32.mrb[0].mxu0
      %2532 = vmatprep.mubr.bf16.mxu0 0
      %2533 = vmatmul.mubr.bf16.gmra.mrb[0].mxu0 %v2471
      %v2534 = vpop.f32.mrb[0].mxu0
      %v2535 = vadd.f32 %v2448, %v2534
      %v2536 = vpop.f32.mrb[0].mxu0
      %v2537 = vpop.f32.mrb[0].mxu0
      %v2538 = vadd.f32 %v2448, %v2537
      %v2539 = vpop.f32.mrb[0].mxu0
      %2540 = vmatprep.mubr.bf16.mxu0 0
      %2541 = vmatmul.mubr.bf16.gmra.mrb[0].mxu0 %v2474
      %v2542 = vpop.f32.mrb[0].mxu0
      %v2543 = vadd.f32 %v2448, %v2542
      %v2544 = vpop.f32.mrb[0].mxu0
      %v2545 = vpop.f32.mrb[0].mxu0
      %v2546 = vpop.f32.mrb[0].mxu0
      %2547 = vdwg.mxu0
      %v2548 = vadd.f32 %v551, %v2511
      %v2549 = vadd.f32 %v552, %v2514
      %v2550 = vadd.f32 %v553, %v2519
      %v2551 = vadd.f32 %v554, %v2522
      %v2552 = vadd.f32 %v555, %v2527
      %v2553 = vadd.f32 %v556, %v2530
      %v2554 = vadd.f32 %v557, %v2535
      %v2555 = vadd.f32 %v558, %v2538
      %v2556 = vadd.f32 %v559, %v2543
      %v2557 = vsel %vm883, %v2548, 0.0
      %2558 = vadd.xlane.f32.xlu0 %v2557
      %v2559 = vpop.xlane.xlu0 %2558
      %v2560 = vsel %vm883, %v2549, 0.0
      %2561 = vadd.xlane.f32.xlu0 %v2560
      %v2562 = vpop.xlane.xlu0 %2561
      %v2563 = vsel %vm883, %v2550, 0.0
      %2564 = vadd.xlane.f32.xlu0 %v2563
      %v2565 = vpop.xlane.xlu0 %2564
      %v2566 = vsel %vm883, %v2551, 0.0
      %2567 = vadd.xlane.f32.xlu0 %v2566
      %v2568 = vpop.xlane.xlu0 %2567
      %v2569 = vsel %vm883, %v2552, 0.0
      %2570 = vadd.xlane.f32.xlu0 %v2569
      %v2571 = vpop.xlane.xlu0 %2570
      %v2572 = vsel %vm883, %v2553, 0.0
      %2573 = vadd.xlane.f32.xlu0 %v2572
      %v2574 = vpop.xlane.xlu0 %2573
      %v2575 = vsel %vm883, %v2554, 0.0
      %2576 = vadd.xlane.f32.xlu0 %v2575
      %v2577 = vpop.xlane.xlu0 %2576
      %v2578 = vsel %vm883, %v2555, 0.0
      %2579 = vadd.xlane.f32.xlu0 %v2578
      %v2580 = vpop.xlane.xlu0 %2579
      %v2581 = vsel %vm883, %v2556, 0.0
      %2582 = vadd.xlane.f32.xlu0 %v2581
      %v2583 = vpop.xlane.xlu0 %2582
      %v2584 = vrcp.pop 32.0
      %v2585 = vmul.f32 %v2559, %v2584
      %v2586 = vmul.f32 %v2562, %v2584
      %v2587 = vmul.f32 %v2565, %v2584
      %v2588 = vmul.f32 %v2568, %v2584
      %v2589 = vmul.f32 %v2571, %v2584
      %v2590 = vmul.f32 %v2574, %v2584
      %v2591 = vmul.f32 %v2577, %v2584
      %v2592 = vmul.f32 %v2580, %v2584
      %v2593 = vmul.f32 %v2583, %v2584
      %v2594 = vsub.f32 %v2548, %v2585
      %v2595 = vsub.f32 %v2549, %v2586
      %v2596 = vsub.f32 %v2550, %v2587
      %v2597 = vsub.f32 %v2551, %v2588
      %v2598 = vsub.f32 %v2552, %v2589
      %v2599 = vsub.f32 %v2553, %v2590
      %v2600 = vsub.f32 %v2554, %v2591
      %v2601 = vsub.f32 %v2555, %v2592
      %v2602 = vsub.f32 %v2556, %v2593
      %v2603 = vmul.f32 %v2594, %v2594
      %v2604 = vmul.f32 %v2595, %v2595
      %v2605 = vmul.f32 %v2596, %v2596
      %v2606 = vmul.f32 %v2597, %v2597
      %v2607 = vmul.f32 %v2598, %v2598
      %v2608 = vmul.f32 %v2599, %v2599
      %v2609 = vmul.f32 %v2600, %v2600
      %v2610 = vmul.f32 %v2601, %v2601
      %v2611 = vmul.f32 %v2602, %v2602
      %v2612 = vsel %vm883, %v2603, 0.0
      %2613 = vadd.xlane.f32.xlu0 %v2612
      %v2614 = vpop.xlane.xlu0 %2613
      %v2615 = vsel %vm883, %v2604, 0.0
      %2616 = vadd.xlane.f32.xlu0 %v2615
      %v2617 = vpop.xlane.xlu0 %2616
      %v2618 = vsel %vm883, %v2605, 0.0
      %2619 = vadd.xlane.f32.xlu0 %v2618
      %v2620 = vpop.xlane.xlu0 %2619
      %v2621 = vsel %vm883, %v2606, 0.0
      %2622 = vadd.xlane.f32.xlu0 %v2621
      %v2623 = vpop.xlane.xlu0 %2622
      %v2624 = vsel %vm883, %v2607, 0.0
      %2625 = vadd.xlane.f32.xlu0 %v2624
      %v2626 = vpop.xlane.xlu0 %2625
      %v2627 = vsel %vm883, %v2608, 0.0
      %2628 = vadd.xlane.f32.xlu0 %v2627
      %v2629 = vpop.xlane.xlu0 %2628
      %v2630 = vsel %vm883, %v2609, 0.0
      %2631 = vadd.xlane.f32.xlu0 %v2630
      %v2632 = vpop.xlane.xlu0 %2631
      %v2633 = vsel %vm883, %v2610, 0.0
      %2634 = vadd.xlane.f32.xlu0 %v2633
      %v2635 = vpop.xlane.xlu0 %2634
      %v2636 = vsel %vm883, %v2611, 0.0
      %2637 = vadd.xlane.f32.xlu0 %v2636
      %v2638 = vpop.xlane.xlu0 %2637
      %v2639 = vmul.f32 %v2614, %v2584
      %v2640 = vmul.f32 %v2617, %v2584
      %v2641 = vmul.f32 %v2620, %v2584
      %v2642 = vmul.f32 %v2623, %v2584
      %v2643 = vmul.f32 %v2626, %v2584
      %v2644 = vmul.f32 %v2629, %v2584
      %v2645 = vmul.f32 %v2632, %v2584
      %v2646 = vmul.f32 %v2635, %v2584
      %v2647 = vmul.f32 %v2638, %v2584
      %v2648 = vadd.f32 %v2639, 1e-05
      %v2649 = vadd.f32 %v2640, 1e-05
      %v2650 = vadd.f32 %v2641, 1e-05
      %v2651 = vadd.f32 %v2642, 1e-05
      %v2652 = vadd.f32 %v2643, 1e-05
      %v2653 = vadd.f32 %v2644, 1e-05
      %v2654 = vadd.f32 %v2645, 1e-05
      %v2655 = vadd.f32 %v2646, 1e-05
      %v2656 = vadd.f32 %v2647, 1e-05
      %v2657 = vrsqrt.pop %v2648
      %v2658 = vrsqrt.pop %v2649
      %v2659 = vrsqrt.pop %v2650
      %v2660 = vrsqrt.pop %v2651
      %v2661 = vrsqrt.pop %v2652
      %v2662 = vrsqrt.pop %v2653
      %v2663 = vrsqrt.pop %v2654
      %v2664 = vrsqrt.pop %v2655
      %v2665 = vrsqrt.pop %v2656
      %v2666 = vmul.f32 %v2594, %v2657
      %v2667 = vmul.f32 %v2595, %v2658
      %v2668 = vmul.f32 %v2596, %v2659
      %v2669 = vmul.f32 %v2597, %v2660
      %v2670 = vmul.f32 %v2598, %v2661
      %v2671 = vmul.f32 %v2599, %v2662
      %v2672 = vmul.f32 %v2600, %v2663
      %v2673 = vmul.f32 %v2601, %v2664
      %v2674 = vmul.f32 %v2602, %v2665
      %v2675 = vlaneseq
      %v2676 = vshrl.u32 %v2675, 7
      %v2677 = vsub.s32 1, %v2676
      %v2678 = vrot.slane %v859, %v2677
      %v2679 = vmul.f32 %v2666, %v2678
      %v2680 = vmul.f32 %v2667, %v2678
      %v2681 = vmul.f32 %v2668, %v2678
      %v2682 = vmul.f32 %v2669, %v2678
      %v2683 = vmul.f32 %v2670, %v2678
      %v2684 = vmul.f32 %v2671, %v2678
      %v2685 = vmul.f32 %v2672, %v2678
      %v2686 = vmul.f32 %v2673, %v2678
      %v2687 = vmul.f32 %v2674, %v2678
      %v2688 = vlaneseq
      %v2689 = vshrl.u32 %v2688, 7
      %v2690 = vsub.s32 2, %v2689
      %v2691 = vrot.slane %v859, %v2690
      %v2692 = vadd.f32 %v2679, %v2691
      %v2693 = vadd.f32 %v2680, %v2691
      %v2694 = vadd.f32 %v2681, %v2691
      %v2695 = vadd.f32 %v2682, %v2691
      %v2696 = vadd.f32 %v2683, %v2691
      %v2697 = vadd.f32 %v2684, %v2691
      %v2698 = vadd.f32 %v2685, %v2691
      %v2699 = vadd.f32 %v2686, %v2691
      %v2700 = vadd.f32 %v2687, %v2691
      %v2701 = vpack.c.bf16 %v2693, %v2692
      %v2702 = vpack.c.bf16 %v2695, %v2694
      %v2703 = vpack.c.bf16 %v2697, %v2696
      %v2704 = vpack.c.bf16 %v2699, %v2698
      %v2705 = vpack.c.bf16 %v2700, %v2700
      %v2708 = vlaneseq
      %v2709 = vshrl.u32 %v2708, 7
      %v2710 = vsub.s32 0, %v2709
      %v2711 = vrot.slane %v857, %v2710
      %v2712 = vlaneseq
      %v2713 = vshrl.u32 %v2712, 7
      %v2714 = vsub.s32 1, %v2713
      %v2715 = vrot.slane %v857, %v2714
      %v2716 = vlaneseq
      %v2717 = vshrl.u32 %v2716, 7
      %v2718 = vsub.s32 2, %v2717
      %v2719 = vrot.slane %v857, %v2718
      %v2720 = vlaneseq
      %v2721 = vshrl.u32 %v2720, 7
      %v2722 = vsub.s32 3, %v2721
      %v2723 = vrot.slane %v857, %v2722
      %v2724 = vlaneseq
      %v2725 = vshrl.u32 %v2724, 7
      %v2726 = vsub.s32 4, %v2725
      %v2727 = vrot.slane %v857, %v2726
      %v2728 = vlaneseq
      %v2729 = vshrl.u32 %v2728, 7
      %v2730 = vsub.s32 5, %v2729
      %v2731 = vrot.slane %v857, %v2730
      %v2732 = vlaneseq
      %v2733 = vshrl.u32 %v2732, 7
      %v2734 = vsub.s32 6, %v2733
      %v2735 = vrot.slane %v857, %v2734
      %v2736 = vlaneseq
      %v2737 = vshrl.u32 %v2736, 7
      %v2738 = vsub.s32 7, %v2737
      %v2739 = vrot.slane %v857, %v2738
      %v2740 = vlaneseq
      %v2741 = vshrl.u32 %v2740, 7
      %v2742 = vsub.s32 0, %v2741
      %v2743 = vrot.slane %v858, %v2742
      %v2744 = vlaneseq
      %v2745 = vshrl.u32 %v2744, 7
      %v2746 = vsub.s32 1, %v2745
      %v2747 = vrot.slane %v858, %v2746
      %v2748 = vlaneseq
      %v2749 = vshrl.u32 %v2748, 7
      %v2750 = vsub.s32 2, %v2749
      %v2751 = vrot.slane %v858, %v2750
      %v2752 = vlaneseq
      %v2753 = vshrl.u32 %v2752, 7
      %v2754 = vsub.s32 3, %v2753
      %v2755 = vrot.slane %v858, %v2754
      %v2756 = vlaneseq
      %v2757 = vshrl.u32 %v2756, 7
      %v2758 = vsub.s32 4, %v2757
      %v2759 = vrot.slane %v858, %v2758
      %v2760 = vlaneseq
      %v2761 = vshrl.u32 %v2760, 7
      %v2762 = vsub.s32 5, %v2761
      %v2763 = vrot.slane %v858, %v2762
      %v2764 = vlaneseq
      %v2765 = vshrl.u32 %v2764, 7
      %v2766 = vsub.s32 6, %v2765
      %v2767 = vrot.slane %v858, %v2766
      %v2768 = vlaneseq
      %v2769 = vshrl.u32 %v2768, 7
      %v2770 = vsub.s32 7, %v2769
      %v2771 = vrot.slane %v858, %v2770
      %v2820 = vunpack.c.l.b16 %v568
      %v2821 = vunpack.c.h.b16 %v568
      %v2822 = vunpack.c.l.b16 %v569
      %v2823 = vunpack.c.h.b16 %v569
      %v2824 = vunpack.c.l.b16 %v570
      %v2825 = vunpack.c.h.b16 %v570
      %v2826 = vunpack.c.l.b16 %v571
      %v2827 = vunpack.c.h.b16 %v571
      %v2828 = vunpack.c.l.b16 %v572
      %v2829 = vunpack.c.h.b16 %v572
      %v2830 = vunpack.c.l.b16 %v573
      %v2831 = vunpack.c.h.b16 %v573
      %v2832 = vunpack.c.l.b16 %v574
      %v2833 = vunpack.c.h.b16 %v574
      %v2834 = vunpack.c.l.b16 %v575
      %v2835 = vunpack.c.h.b16 %v575
      %v2836 = vunpack.c.l.b16 %v576
      %v2837 = vunpack.c.h.b16 %v576
      %v2838 = vunpack.c.l.b16 %v577
      %v2839 = vunpack.c.h.b16 %v577
      %v2840 = vunpack.c.l.b16 %v578
      %v2841 = vunpack.c.h.b16 %v578
      %v2842 = vunpack.c.l.b16 %v579
      %v2843 = vunpack.c.h.b16 %v579
      %v2844 = vunpack.c.l.b16 %v580
      %v2845 = vunpack.c.h.b16 %v580
      %v2846 = vunpack.c.l.b16 %v581
      %v2847 = vunpack.c.h.b16 %v581
      %v2848 = vunpack.c.l.b16 %v582
      %v2849 = vunpack.c.h.b16 %v582
      %v2850 = vunpack.c.l.b16 %v583
      %v2851 = vunpack.c.h.b16 %v583
      %v2852 = vunpack.c.l.b16 %v584
      %v2853 = vunpack.c.h.b16 %v584
      %v2854 = vunpack.c.l.b16 %v585
      %v2855 = vunpack.c.h.b16 %v585
      %v2856 = vunpack.c.l.b16 %v586
      %v2857 = vunpack.c.h.b16 %v586
      %v2858 = vunpack.c.l.b16 %v587
      %v2859 = vunpack.c.h.b16 %v587
      %v2860 = vunpack.c.l.b16 %v588
      %v2861 = vunpack.c.h.b16 %v588
      %v2862 = vunpack.c.l.b16 %v589
      %v2863 = vunpack.c.h.b16 %v589
      %v2864 = vunpack.c.l.b16 %v590
      %v2865 = vunpack.c.h.b16 %v590
      %v2866 = vunpack.c.l.b16 %v591
      %v2867 = vunpack.c.h.b16 %v591
      %v2868 = vunpack.c.l.b16 %v592
      %v2869 = vunpack.c.h.b16 %v592
      %v2870 = vunpack.c.l.b16 %v593
      %v2871 = vunpack.c.h.b16 %v593
      %v2872 = vunpack.c.l.b16 %v594
      %v2873 = vunpack.c.h.b16 %v594
      %v2874 = vunpack.c.l.b16 %v595
      %v2875 = vunpack.c.h.b16 %v595
      %v2876 = vunpack.c.l.b16 %v596
      %v2877 = vunpack.c.h.b16 %v596
      %v2878 = vunpack.c.l.b16 %v597
      %v2879 = vunpack.c.h.b16 %v597
      %v2880 = vunpack.c.l.b16 %v598
      %v2881 = vunpack.c.h.b16 %v598
      %v2882 = vunpack.c.l.b16 %v599
      %v2883 = vunpack.c.h.b16 %v599
      %v2884 = vpack.c.b16 %v2836, %v2820
      %v2885 = vpack.c.b16 %v2837, %v2821
      %v2886 = vpack.c.b16 %v2838, %v2822
      %v2887 = vpack.c.b16 %v2839, %v2823
      %v2888 = vpack.c.b16 %v2840, %v2824
      %v2889 = vpack.c.b16 %v2841, %v2825
      %v2890 = vpack.c.b16 %v2842, %v2826
      %v2891 = vpack.c.b16 %v2843, %v2827
      %v2892 = vpack.c.b16 %v2844, %v2828
      %v2893 = vpack.c.b16 %v2845, %v2829
      %v2894 = vpack.c.b16 %v2846, %v2830
      %v2895 = vpack.c.b16 %v2847, %v2831
      %v2896 = vpack.c.b16 %v2848, %v2832
      %v2897 = vpack.c.b16 %v2849, %v2833
      %v2898 = vpack.c.b16 %v2850, %v2834
      %v2899 = vpack.c.b16 %v2851, %v2835
      %v2900 = vpack.c.b16 %v2868, %v2852
      %v2901 = vpack.c.b16 %v2869, %v2853
      %v2902 = vpack.c.b16 %v2870, %v2854
      %v2903 = vpack.c.b16 %v2871, %v2855
      %v2904 = vpack.c.b16 %v2872, %v2856
      %v2905 = vpack.c.b16 %v2873, %v2857
      %v2906 = vpack.c.b16 %v2874, %v2858
      %v2907 = vpack.c.b16 %v2875, %v2859
      %v2908 = vpack.c.b16 %v2876, %v2860
      %v2909 = vpack.c.b16 %v2877, %v2861
      %v2910 = vpack.c.b16 %v2878, %v2862
      %v2911 = vpack.c.b16 %v2879, %v2863
      %v2912 = vpack.c.b16 %v2880, %v2864
      %v2913 = vpack.c.b16 %v2881, %v2865
      %v2914 = vpack.c.b16 %v2882, %v2866
      %v2915 = vpack.c.b16 %v2883, %v2867
      %v2949 = vsel %vm883, %v2701, 0
      %v2952 = vsel %vm883, %v2702, 0
      %v2955 = vsel %vm883, %v2703, 0
      %v2958 = vsel %vm883, %v2704, 0
      %v2961 = vsel %vm883, %v2705, 0
      %2963 = vmatprep.subr.bf16.mxu0 %v2885
      %2964 = vmatpush1.bf16.msra.mxu0 %v2884
      %2965 = vmatprep.subr.bf16.mxu0 %v2901
      %2966 = vmatpush1.bf16.msra.mxu0 %v2900
      %2967 = vmatprep.subr.bf16.mxu0 0
      %2968 = vmatpush1.bf16.msra.mxu0 0
      %2969 = vmatprep.subr.bf16.mxu0 0
      %2970 = vmatpush1.bf16.msra.mxu0 0
      %2971 = vmatprep.subr.bf16.mxu0 0
      %2972 = vmatpush1.bf16.msra.mxu0 0
      %2973 = vmatprep.subr.bf16.mxu0 0
      %2974 = vmatpush1.bf16.msra.mxu0 0
      %2975 = vmatprep.subr.bf16.mxu0 0
      %2976 = vmatpush1.bf16.msra.mxu0 0
      %2977 = vmatprep.subr.bf16.mxu0 0
      %2978 = vmatpush1.bf16.msra.mxu0 0
      %2979 = vmatprep.subr.bf16.mxu0 0
      %2980 = vmatpush1.bf16.msra.mxu0 0
      %2981 = vmatprep.subr.bf16.mxu0 0
      %2982 = vmatpush1.bf16.msra.mxu0 0
      %2983 = vmatprep.subr.bf16.mxu0 0
      %2984 = vmatpush1.bf16.msra.mxu0 0
      %2985 = vmatprep.subr.bf16.mxu0 0
      %2986 = vmatpush1.bf16.msra.mxu0 0
      %2987 = vmatprep.subr.bf16.mxu0 0
      %2988 = vmatpush1.bf16.msra.mxu0 0
      %2989 = vmatprep.subr.bf16.mxu0 0
      %2990 = vmatpush1.bf16.msra.mxu0 0
      %2991 = vmatprep.subr.bf16.mxu0 0
      %2992 = vmatpush1.bf16.msra.mxu0 0
      %2993 = vmatprep.subr.bf16.mxu0 0
      %2994 = vmatpush1.bf16.msra.mxu0 0
      %2995 = vmatprep.mubr.bf16.mxu0 0
      %2996 = vmatmul.mubr.bf16.gmra.mrb[0].mxu0 %v2949
      %v2997 = vpop.f32.mrb[0].mxu0
      %v2998 = vadd.f32 %v2711, %v2997
      %v2999 = vpop.f32.mrb[0].mxu0
      %v3000 = vadd.f32 %v2715, %v2999
      %v3001 = vpop.f32.mrb[0].mxu0
      %v3002 = vadd.f32 %v2711, %v3001
      %v3003 = vpop.f32.mrb[0].mxu0
      %v3004 = vadd.f32 %v2715, %v3003
      %3005 = vmatprep.mubr.bf16.mxu0 0
      %3006 = vmatmul.mubr.bf16.gmra.mrb[0].mxu0 %v2952
      %v3007 = vpop.f32.mrb[0].mxu0
      %v3008 = vadd.f32 %v2711, %v3007
      %v3009 = vpop.f32.mrb[0].mxu0
      %v3010 = vadd.f32 %v2715, %v3009
      %v3011 = vpop.f32.mrb[0].mxu0
      %v3012 = vadd.f32 %v2711, %v3011
      %v3013 = vpop.f32.mrb[0].mxu0
      %v3014 = vadd.f32 %v2715, %v3013
      %3015 = vmatprep.mubr.bf16.mxu0 0
      %3016 = vmatmul.mubr.bf16.gmra.mrb[0].mxu0 %v2955
      %v3017 = vpop.f32.mrb[0].mxu0
      %v3018 = vadd.f32 %v2711, %v3017
      %v3019 = vpop.f32.mrb[0].mxu0
      %v3020 = vadd.f32 %v2715, %v3019
      %v3021 = vpop.f32.mrb[0].mxu0
      %v3022 = vadd.f32 %v2711, %v3021
      %v3023 = vpop.f32.mrb[0].mxu0
      %v3024 = vadd.f32 %v2715, %v3023
      %3025 = vmatprep.mubr.bf16.mxu0 0
      %3026 = vmatmul.mubr.bf16.gmra.mrb[0].mxu0 %v2958
      %v3027 = vpop.f32.mrb[0].mxu0
      %v3028 = vadd.f32 %v2711, %v3027
      %v3029 = vpop.f32.mrb[0].mxu0
      %v3030 = vadd.f32 %v2715, %v3029
      %v3031 = vpop.f32.mrb[0].mxu0
      %v3032 = vadd.f32 %v2711, %v3031
      %v3033 = vpop.f32.mrb[0].mxu0
      %v3034 = vadd.f32 %v2715, %v3033
      %3035 = vmatprep.mubr.bf16.mxu0 0
      %3036 = vmatmul.mubr.bf16.gmra.mrb[0].mxu0 %v2961
      %v3037 = vpop.f32.mrb[0].mxu0
      %v3038 = vadd.f32 %v2711, %v3037
      %v3039 = vpop.f32.mrb[0].mxu0
      %v3040 = vadd.f32 %v2715, %v3039
      %v3041 = vpop.f32.mrb[0].mxu0
      %v3042 = vpop.f32.mrb[0].mxu0
      %3043 = vdwg.mxu0
      %3044 = vmatprep.subr.bf16.mxu0 %v2887
      %3045 = vmatpush1.bf16.msra.mxu0 %v2886
      %3046 = vmatprep.subr.bf16.mxu0 %v2903
      %3047 = vmatpush1.bf16.msra.mxu0 %v2902
      %3048 = vmatprep.subr.bf16.mxu0 0
      %3049 = vmatpush1.bf16.msra.mxu0 0
      %3050 = vmatprep.subr.bf16.mxu0 0
      %3051 = vmatpush1.bf16.msra.mxu0 0
      %3052 = vmatprep.subr.bf16.mxu0 0
      %3053 = vmatpush1.bf16.msra.mxu0 0
      %3054 = vmatprep.subr.bf16.mxu0 0
      %3055 = vmatpush1.bf16.msra.mxu0 0
      %3056 = vmatprep.subr.bf16.mxu0 0
      %3057 = vmatpush1.bf16.msra.mxu0 0
      %3058 = vmatprep.subr.bf16.mxu0 0
      %3059 = vmatpush1.bf16.msra.mxu0 0
      %3060 = vmatprep.subr.bf16.mxu0 0
      %3061 = vmatpush1.bf16.msra.mxu0 0
      %3062 = vmatprep.subr.bf16.mxu0 0
      %3063 = vmatpush1.bf16.msra.mxu0 0
      %3064 = vmatprep.subr.bf16.mxu0 0
      %3065 = vmatpush1.bf16.msra.mxu0 0
      %3066 = vmatprep.subr.bf16.mxu0 0
      %3067 = vmatpush1.bf16.msra.mxu0 0
      %3068 = vmatprep.subr.bf16.mxu0 0
      %3069 = vmatpush1.bf16.msra.mxu0 0
      %3070 = vmatprep.subr.bf16.mxu0 0
      %3071 = vmatpush1.bf16.msra.mxu0 0
      %3072 = vmatprep.subr.bf16.mxu0 0
      %3073 = vmatpush1.bf16.msra.mxu0 0
      %3074 = vmatprep.subr.bf16.mxu0 0
      %3075 = vmatpush1.bf16.msra.mxu0 0
      %3076 = vmatprep.mubr.bf16.mxu0 0
      %3077 = vmatmul.mubr.bf16.gmra.mrb[0].mxu0 %v2949
      %v3078 = vpop.f32.mrb[0].mxu0
      %v3079 = vadd.f32 %v2719, %v3078
      %v3080 = vpop.f32.mrb[0].mxu0
      %v3081 = vadd.f32 %v2723, %v3080
      %v3082 = vpop.f32.mrb[0].mxu0
      %v3083 = vadd.f32 %v2719, %v3082
      %v3084 = vpop.f32.mrb[0].mxu0
      %v3085 = vadd.f32 %v2723, %v3084
      %3086 = vmatprep.mubr.bf16.mxu0 0
      %3087 = vmatmul.mubr.bf16.gmra.mrb[0].mxu0 %v2952
      %v3088 = vpop.f32.mrb[0].mxu0
      %v3089 = vadd.f32 %v2719, %v3088
      %v3090 = vpop.f32.mrb[0].mxu0
      %v3091 = vadd.f32 %v2723, %v3090
      %v3092 = vpop.f32.mrb[0].mxu0
      %v3093 = vadd.f32 %v2719, %v3092
      %v3094 = vpop.f32.mrb[0].mxu0
      %v3095 = vadd.f32 %v2723, %v3094
      %3096 = vmatprep.mubr.bf16.mxu0 0
      %3097 = vmatmul.mubr.bf16.gmra.mrb[0].mxu0 %v2955
      %v3098 = vpop.f32.mrb[0].mxu0
      %v3099 = vadd.f32 %v2719, %v3098
      %v3100 = vpop.f32.mrb[0].mxu0
      %v3101 = vadd.f32 %v2723, %v3100
      %v3102 = vpop.f32.mrb[0].mxu0
      %v3103 = vadd.f32 %v2719, %v3102
      %v3104 = vpop.f32.mrb[0].mxu0
      %v3105 = vadd.f32 %v2723, %v3104
      %3106 = vmatprep.mubr.bf16.mxu0 0
      %3107 = vmatmul.mubr.bf16.gmra.mrb[0].mxu0 %v2958
      %v3108 = vpop.f32.mrb[0].mxu0
      %v3109 = vadd.f32 %v2719, %v3108
      %v3110 = vpop.f32.mrb[0].mxu0
      %v3111 = vadd.f32 %v2723, %v3110
      %v3112 = vpop.f32.mrb[0].mxu0
      %v3113 = vadd.f32 %v2719, %v3112
      %v3114 = vpop.f32.mrb[0].mxu0
      %v3115 = vadd.f32 %v2723, %v3114
      %3116 = vmatprep.mubr.bf16.mxu0 0
      %3117 = vmatmul.mubr.bf16.gmra.mrb[0].mxu0 %v2961
      %v3118 = vpop.f32.mrb[0].mxu0
      %v3119 = vadd.f32 %v2719, %v3118
      %v3120 = vpop.f32.mrb[0].mxu0
      %v3121 = vadd.f32 %v2723, %v3120
      %v3122 = vpop.f32.mrb[0].mxu0
      %v3123 = vpop.f32.mrb[0].mxu0
      %3124 = vdwg.mxu0
      %3125 = vmatprep.subr.bf16.mxu0 %v2889
      %3126 = vmatpush1.bf16.msra.mxu0 %v2888
      %3127 = vmatprep.subr.bf16.mxu0 %v2905
      %3128 = vmatpush1.bf16.msra.mxu0 %v2904
      %3129 = vmatprep.subr.bf16.mxu0 0
      %3130 = vmatpush1.bf16.msra.mxu0 0
      %3131 = vmatprep.subr.bf16.mxu0 0
      %3132 = vmatpush1.bf16.msra.mxu0 0
      %3133 = vmatprep.subr.bf16.mxu0 0
      %3134 = vmatpush1.bf16.msra.mxu0 0
      %3135 = vmatprep.subr.bf16.mxu0 0
      %3136 = vmatpush1.bf16.msra.mxu0 0
      %3137 = vmatprep.subr.bf16.mxu0 0
      %3138 = vmatpush1.bf16.msra.mxu0 0
      %3139 = vmatprep.subr.bf16.mxu0 0
      %3140 = vmatpush1.bf16.msra.mxu0 0
      %3141 = vmatprep.subr.bf16.mxu0 0
      %3142 = vmatpush1.bf16.msra.mxu0 0
      %3143 = vmatprep.subr.bf16.mxu0 0
      %3144 = vmatpush1.bf16.msra.mxu0 0
      %3145 = vmatprep.subr.bf16.mxu0 0
      %3146 = vmatpush1.bf16.msra.mxu0 0
      %3147 = vmatprep.subr.bf16.mxu0 0
      %3148 = vmatpush1.bf16.msra.mxu0 0
      %3149 = vmatprep.subr.bf16.mxu0 0
      %3150 = vmatpush1.bf16.msra.mxu0 0
      %3151 = vmatprep.subr.bf16.mxu0 0
      %3152 = vmatpush1.bf16.msra.mxu0 0
      %3153 = vmatprep.subr.bf16.mxu0 0
      %3154 = vmatpush1.bf16.msra.mxu0 0
      %3155 = vmatprep.subr.bf16.mxu0 0
      %3156 = vmatpush1.bf16.msra.mxu0 0
      %3157 = vmatprep.mubr.bf16.mxu0 0
      %3158 = vmatmul.mubr.bf16.gmra.mrb[0].mxu0 %v2949
      %v3159 = vpop.f32.mrb[0].mxu0
      %v3160 = vadd.f32 %v2727, %v3159
      %v3161 = vpop.f32.mrb[0].mxu0
      %v3162 = vadd.f32 %v2731, %v3161
      %v3163 = vpop.f32.mrb[0].mxu0
      %v3164 = vadd.f32 %v2727, %v3163
      %v3165 = vpop.f32.mrb[0].mxu0
      %v3166 = vadd.f32 %v2731, %v3165
      %3167 = vmatprep.mubr.bf16.mxu0 0
      %3168 = vmatmul.mubr.bf16.gmra.mrb[0].mxu0 %v2952
      %v3169 = vpop.f32.mrb[0].mxu0
      %v3170 = vadd.f32 %v2727, %v3169
      %v3171 = vpop.f32.mrb[0].mxu0
      %v3172 = vadd.f32 %v2731, %v3171
      %v3173 = vpop.f32.mrb[0].mxu0
      %v3174 = vadd.f32 %v2727, %v3173
      %v3175 = vpop.f32.mrb[0].mxu0
      %v3176 = vadd.f32 %v2731, %v3175
      %3177 = vmatprep.mubr.bf16.mxu0 0
      %3178 = vmatmul.mubr.bf16.gmra.mrb[0].mxu0 %v2955
      %v3179 = vpop.f32.mrb[0].mxu0
      %v3180 = vadd.f32 %v2727, %v3179
      %v3181 = vpop.f32.mrb[0].mxu0
      %v3182 = vadd.f32 %v2731, %v3181
      %v3183 = vpop.f32.mrb[0].mxu0
      %v3184 = vadd.f32 %v2727, %v3183
      %v3185 = vpop.f32.mrb[0].mxu0
      %v3186 = vadd.f32 %v2731, %v3185
      %3187 = vmatprep.mubr.bf16.mxu0 0
      %3188 = vmatmul.mubr.bf16.gmra.mrb[0].mxu0 %v2958
      %v3189 = vpop.f32.mrb[0].mxu0
      %v3190 = vadd.f32 %v2727, %v3189
      %v3191 = vpop.f32.mrb[0].mxu0
      %v3192 = vadd.f32 %v2731, %v3191
      %v3193 = vpop.f32.mrb[0].mxu0
      %v3194 = vadd.f32 %v2727, %v3193
      %v3195 = vpop.f32.mrb[0].mxu0
      %v3196 = vadd.f32 %v2731, %v3195
      %3197 = vmatprep.mubr.bf16.mxu0 0
      %3198 = vmatmul.mubr.bf16.gmra.mrb[0].mxu0 %v2961
      %v3199 = vpop.f32.mrb[0].mxu0
      %v3200 = vadd.f32 %v2727, %v3199
      %v3201 = vpop.f32.mrb[0].mxu0
      %v3202 = vadd.f32 %v2731, %v3201
      %v3203 = vpop.f32.mrb[0].mxu0
      %v3204 = vpop.f32.mrb[0].mxu0
      %3205 = vdwg.mxu0
      %3206 = vmatprep.subr.bf16.mxu0 %v2891
      %3207 = vmatpush1.bf16.msra.mxu0 %v2890
      %3208 = vmatprep.subr.bf16.mxu0 %v2907
      %3209 = vmatpush1.bf16.msra.mxu0 %v2906
      %3210 = vmatprep.subr.bf16.mxu0 0
      %3211 = vmatpush1.bf16.msra.mxu0 0
      %3212 = vmatprep.subr.bf16.mxu0 0
      %3213 = vmatpush1.bf16.msra.mxu0 0
      %3214 = vmatprep.subr.bf16.mxu0 0
      %3215 = vmatpush1.bf16.msra.mxu0 0
      %3216 = vmatprep.subr.bf16.mxu0 0
      %3217 = vmatpush1.bf16.msra.mxu0 0
      %3218 = vmatprep.subr.bf16.mxu0 0
      %3219 = vmatpush1.bf16.msra.mxu0 0
      %3220 = vmatprep.subr.bf16.mxu0 0
      %3221 = vmatpush1.bf16.msra.mxu0 0
      %3222 = vmatprep.subr.bf16.mxu0 0
      %3223 = vmatpush1.bf16.msra.mxu0 0
      %3224 = vmatprep.subr.bf16.mxu0 0
      %3225 = vmatpush1.bf16.msra.mxu0 0
      %3226 = vmatprep.subr.bf16.mxu0 0
      %3227 = vmatpush1.bf16.msra.mxu0 0
      %3228 = vmatprep.subr.bf16.mxu0 0
      %3229 = vmatpush1.bf16.msra.mxu0 0
      %3230 = vmatprep.subr.bf16.mxu0 0
      %3231 = vmatpush1.bf16.msra.mxu0 0
      %3232 = vmatprep.subr.bf16.mxu0 0
      %3233 = vmatpush1.bf16.msra.mxu0 0
      %3234 = vmatprep.subr.bf16.mxu0 0
      %3235 = vmatpush1.bf16.msra.mxu0 0
      %3236 = vmatprep.subr.bf16.mxu0 0
      %3237 = vmatpush1.bf16.msra.mxu0 0
      %3238 = vmatprep.mubr.bf16.mxu0 0
      %3239 = vmatmul.mubr.bf16.gmra.mrb[0].mxu0 %v2949
      %v3240 = vpop.f32.mrb[0].mxu0
      %v3241 = vadd.f32 %v2735, %v3240
      %v3242 = vpop.f32.mrb[0].mxu0
      %v3243 = vadd.f32 %v2739, %v3242
      %v3244 = vpop.f32.mrb[0].mxu0
      %v3245 = vadd.f32 %v2735, %v3244
      %v3246 = vpop.f32.mrb[0].mxu0
      %v3247 = vadd.f32 %v2739, %v3246
      %3248 = vmatprep.mubr.bf16.mxu0 0
      %3249 = vmatmul.mubr.bf16.gmra.mrb[0].mxu0 %v2952
      %v3250 = vpop.f32.mrb[0].mxu0
      %v3251 = vadd.f32 %v2735, %v3250
      %v3252 = vpop.f32.mrb[0].mxu0
      %v3253 = vadd.f32 %v2739, %v3252
      %v3254 = vpop.f32.mrb[0].mxu0
      %v3255 = vadd.f32 %v2735, %v3254
      %v3256 = vpop.f32.mrb[0].mxu0
      %v3257 = vadd.f32 %v2739, %v3256
      %3258 = vmatprep.mubr.bf16.mxu0 0
      %3259 = vmatmul.mubr.bf16.gmra.mrb[0].mxu0 %v2955
      %v3260 = vpop.f32.mrb[0].mxu0
      %v3261 = vadd.f32 %v2735, %v3260
      %v3262 = vpop.f32.mrb[0].mxu0
      %v3263 = vadd.f32 %v2739, %v3262
      %v3264 = vpop.f32.mrb[0].mxu0
      %v3265 = vadd.f32 %v2735, %v3264
      %v3266 = vpop.f32.mrb[0].mxu0
      %v3267 = vadd.f32 %v2739, %v3266
      %3268 = vmatprep.mubr.bf16.mxu0 0
      %3269 = vmatmul.mubr.bf16.gmra.mrb[0].mxu0 %v2958
      %v3270 = vpop.f32.mrb[0].mxu0
      %v3271 = vadd.f32 %v2735, %v3270
      %v3272 = vpop.f32.mrb[0].mxu0
      %v3273 = vadd.f32 %v2739, %v3272
      %v3274 = vpop.f32.mrb[0].mxu0
      %v3275 = vadd.f32 %v2735, %v3274
      %v3276 = vpop.f32.mrb[0].mxu0
      %v3277 = vadd.f32 %v2739, %v3276
      %3278 = vmatprep.mubr.bf16.mxu0 0
      %3279 = vmatmul.mubr.bf16.gmra.mrb[0].mxu0 %v2961
      %v3280 = vpop.f32.mrb[0].mxu0
      %v3281 = vadd.f32 %v2735, %v3280
      %v3282 = vpop.f32.mrb[0].mxu0
      %v3283 = vadd.f32 %v2739, %v3282
      %v3284 = vpop.f32.mrb[0].mxu0
      %v3285 = vpop.f32.mrb[0].mxu0
      %3286 = vdwg.mxu0
      %3287 = vmatprep.subr.bf16.mxu0 %v2893
      %3288 = vmatpush1.bf16.msra.mxu0 %v2892
      %3289 = vmatprep.subr.bf16.mxu0 %v2909
      %3290 = vmatpush1.bf16.msra.mxu0 %v2908
      %3291 = vmatprep.subr.bf16.mxu0 0
      %3292 = vmatpush1.bf16.msra.mxu0 0
      %3293 = vmatprep.subr.bf16.mxu0 0
      %3294 = vmatpush1.bf16.msra.mxu0 0
      %3295 = vmatprep.subr.bf16.mxu0 0
      %3296 = vmatpush1.bf16.msra.mxu0 0
      %3297 = vmatprep.subr.bf16.mxu0 0
      %3298 = vmatpush1.bf16.msra.mxu0 0
      %3299 = vmatprep.subr.bf16.mxu0 0
      %3300 = vmatpush1.bf16.msra.mxu0 0
      %3301 = vmatprep.subr.bf16.mxu0 0
      %3302 = vmatpush1.bf16.msra.mxu0 0
      %3303 = vmatprep.subr.bf16.mxu0 0
      %3304 = vmatpush1.bf16.msra.mxu0 0
      %3305 = vmatprep.subr.bf16.mxu0 0
      %3306 = vmatpush1.bf16.msra.mxu0 0
      %3307 = vmatprep.subr.bf16.mxu0 0
      %3308 = vmatpush1.bf16.msra.mxu0 0
      %3309 = vmatprep.subr.bf16.mxu0 0
      %3310 = vmatpush1.bf16.msra.mxu0 0
      %3311 = vmatprep.subr.bf16.mxu0 0
      %3312 = vmatpush1.bf16.msra.mxu0 0
      %3313 = vmatprep.subr.bf16.mxu0 0
      %3314 = vmatpush1.bf16.msra.mxu0 0
      %3315 = vmatprep.subr.bf16.mxu0 0
      %3316 = vmatpush1.bf16.msra.mxu0 0
      %3317 = vmatprep.subr.bf16.mxu0 0
      %3318 = vmatpush1.bf16.msra.mxu0 0
      %3319 = vmatprep.mubr.bf16.mxu0 0
      %3320 = vmatmul.mubr.bf16.gmra.mrb[0].mxu0 %v2949
      %v3321 = vpop.f32.mrb[0].mxu0
      %v3322 = vadd.f32 %v2743, %v3321
      %v3323 = vpop.f32.mrb[0].mxu0
      %v3324 = vadd.f32 %v2747, %v3323
      %v3325 = vpop.f32.mrb[0].mxu0
      %v3326 = vadd.f32 %v2743, %v3325
      %v3327 = vpop.f32.mrb[0].mxu0
      %v3328 = vadd.f32 %v2747, %v3327
      %3329 = vmatprep.mubr.bf16.mxu0 0
      %3330 = vmatmul.mubr.bf16.gmra.mrb[0].mxu0 %v2952
      %v3331 = vpop.f32.mrb[0].mxu0
      %v3332 = vadd.f32 %v2743, %v3331
      %v3333 = vpop.f32.mrb[0].mxu0
      %v3334 = vadd.f32 %v2747, %v3333
      %v3335 = vpop.f32.mrb[0].mxu0
      %v3336 = vadd.f32 %v2743, %v3335
      %v3337 = vpop.f32.mrb[0].mxu0
      %v3338 = vadd.f32 %v2747, %v3337
      %3339 = vmatprep.mubr.bf16.mxu0 0
      %3340 = vmatmul.mubr.bf16.gmra.mrb[0].mxu0 %v2955
      %v3341 = vpop.f32.mrb[0].mxu0
      %v3342 = vadd.f32 %v2743, %v3341
      %v3343 = vpop.f32.mrb[0].mxu0
      %v3344 = vadd.f32 %v2747, %v3343
      %v3345 = vpop.f32.mrb[0].mxu0
      %v3346 = vadd.f32 %v2743, %v3345
      %v3347 = vpop.f32.mrb[0].mxu0
      %v3348 = vadd.f32 %v2747, %v3347
      %3349 = vmatprep.mubr.bf16.mxu0 0
      %3350 = vmatmul.mubr.bf16.gmra.mrb[0].mxu0 %v2958
      %v3351 = vpop.f32.mrb[0].mxu0
      %v3352 = vadd.f32 %v2743, %v3351
      %v3353 = vpop.f32.mrb[0].mxu0
      %v3354 = vadd.f32 %v2747, %v3353
      %v3355 = vpop.f32.mrb[0].mxu0
      %v3356 = vadd.f32 %v2743, %v3355
      %v3357 = vpop.f32.mrb[0].mxu0
      %v3358 = vadd.f32 %v2747, %v3357
      %3359 = vmatprep.mubr.bf16.mxu0 0
      %3360 = vmatmul.mubr.bf16.gmra.mrb[0].mxu0 %v2961
      %v3361 = vpop.f32.mrb[0].mxu0
      %v3362 = vadd.f32 %v2743, %v3361
      %v3363 = vpop.f32.mrb[0].mxu0
      %v3364 = vadd.f32 %v2747, %v3363
      %v3365 = vpop.f32.mrb[0].mxu0
      %v3366 = vpop.f32.mrb[0].mxu0
      %3367 = vdwg.mxu0
      %3368 = vmatprep.subr.bf16.mxu0 %v2895
      %3369 = vmatpush1.bf16.msra.mxu0 %v2894
      %3370 = vmatprep.subr.bf16.mxu0 %v2911
      %3371 = vmatpush1.bf16.msra.mxu0 %v2910
      %3372 = vmatprep.subr.bf16.mxu0 0
      %3373 = vmatpush1.bf16.msra.mxu0 0
      %3374 = vmatprep.subr.bf16.mxu0 0
      %3375 = vmatpush1.bf16.msra.mxu0 0
      %3376 = vmatprep.subr.bf16.mxu0 0
      %3377 = vmatpush1.bf16.msra.mxu0 0
      %3378 = vmatprep.subr.bf16.mxu0 0
      %3379 = vmatpush1.bf16.msra.mxu0 0
      %3380 = vmatprep.subr.bf16.mxu0 0
      %3381 = vmatpush1.bf16.msra.mxu0 0
      %3382 = vmatprep.subr.bf16.mxu0 0
      %3383 = vmatpush1.bf16.msra.mxu0 0
      %3384 = vmatprep.subr.bf16.mxu0 0
      %3385 = vmatpush1.bf16.msra.mxu0 0
      %3386 = vmatprep.subr.bf16.mxu0 0
      %3387 = vmatpush1.bf16.msra.mxu0 0
      %3388 = vmatprep.subr.bf16.mxu0 0
      %3389 = vmatpush1.bf16.msra.mxu0 0
      %3390 = vmatprep.subr.bf16.mxu0 0
      %3391 = vmatpush1.bf16.msra.mxu0 0
      %3392 = vmatprep.subr.bf16.mxu0 0
      %3393 = vmatpush1.bf16.msra.mxu0 0
      %3394 = vmatprep.subr.bf16.mxu0 0
      %3395 = vmatpush1.bf16.msra.mxu0 0
      %3396 = vmatprep.subr.bf16.mxu0 0
      %3397 = vmatpush1.bf16.msra.mxu0 0
      %3398 = vmatprep.subr.bf16.mxu0 0
      %3399 = vmatpush1.bf16.msra.mxu0 0
      %3400 = vmatprep.mubr.bf16.mxu0 0
      %3401 = vmatmul.mubr.bf16.gmra.mrb[0].mxu0 %v2949
      %v3402 = vpop.f32.mrb[0].mxu0
      %v3403 = vadd.f32 %v2751, %v3402
      %v3404 = vpop.f32.mrb[0].mxu0
      %v3405 = vadd.f32 %v2755, %v3404
      %v3406 = vpop.f32.mrb[0].mxu0
      %v3407 = vadd.f32 %v2751, %v3406
      %v3408 = vpop.f32.mrb[0].mxu0
      %v3409 = vadd.f32 %v2755, %v3408
      %3410 = vmatprep.mubr.bf16.mxu0 0
      %3411 = vmatmul.mubr.bf16.gmra.mrb[0].mxu0 %v2952
      %v3412 = vpop.f32.mrb[0].mxu0
      %v3413 = vadd.f32 %v2751, %v3412
      %v3414 = vpop.f32.mrb[0].mxu0
      %v3415 = vadd.f32 %v2755, %v3414
      %v3416 = vpop.f32.mrb[0].mxu0
      %v3417 = vadd.f32 %v2751, %v3416
      %v3418 = vpop.f32.mrb[0].mxu0
      %v3419 = vadd.f32 %v2755, %v3418
      %3420 = vmatprep.mubr.bf16.mxu0 0
      %3421 = vmatmul.mubr.bf16.gmra.mrb[0].mxu0 %v2955
      %v3422 = vpop.f32.mrb[0].mxu0
      %v3423 = vadd.f32 %v2751, %v3422
      %v3424 = vpop.f32.mrb[0].mxu0
      %v3425 = vadd.f32 %v2755, %v3424
      %v3426 = vpop.f32.mrb[0].mxu0
      %v3427 = vadd.f32 %v2751, %v3426
      %v3428 = vpop.f32.mrb[0].mxu0
      %v3429 = vadd.f32 %v2755, %v3428
      %3430 = vmatprep.mubr.bf16.mxu0 0
      %3431 = vmatmul.mubr.bf16.gmra.mrb[0].mxu0 %v2958
      %v3432 = vpop.f32.mrb[0].mxu0
      %v3433 = vadd.f32 %v2751, %v3432
      %v3434 = vpop.f32.mrb[0].mxu0
      %v3435 = vadd.f32 %v2755, %v3434
      %v3436 = vpop.f32.mrb[0].mxu0
      %v3437 = vadd.f32 %v2751, %v3436
      %v3438 = vpop.f32.mrb[0].mxu0
      %v3439 = vadd.f32 %v2755, %v3438
      %3440 = vmatprep.mubr.bf16.mxu0 0
      %3441 = vmatmul.mubr.bf16.gmra.mrb[0].mxu0 %v2961
      %v3442 = vpop.f32.mrb[0].mxu0
      %v3443 = vadd.f32 %v2751, %v3442
      %v3444 = vpop.f32.mrb[0].mxu0
      %v3445 = vadd.f32 %v2755, %v3444
      %v3446 = vpop.f32.mrb[0].mxu0
      %v3447 = vpop.f32.mrb[0].mxu0
      %3448 = vdwg.mxu0
      %3449 = vmatprep.subr.bf16.mxu0 %v2897
      %3450 = vmatpush1.bf16.msra.mxu0 %v2896
      %3451 = vmatprep.subr.bf16.mxu0 %v2913
      %3452 = vmatpush1.bf16.msra.mxu0 %v2912
      %3453 = vmatprep.subr.bf16.mxu0 0
      %3454 = vmatpush1.bf16.msra.mxu0 0
      %3455 = vmatprep.subr.bf16.mxu0 0
      %3456 = vmatpush1.bf16.msra.mxu0 0
      %3457 = vmatprep.subr.bf16.mxu0 0
      %3458 = vmatpush1.bf16.msra.mxu0 0
      %3459 = vmatprep.subr.bf16.mxu0 0
      %3460 = vmatpush1.bf16.msra.mxu0 0
      %3461 = vmatprep.subr.bf16.mxu0 0
      %3462 = vmatpush1.bf16.msra.mxu0 0
      %3463 = vmatprep.subr.bf16.mxu0 0
      %3464 = vmatpush1.bf16.msra.mxu0 0
      %3465 = vmatprep.subr.bf16.mxu0 0
      %3466 = vmatpush1.bf16.msra.mxu0 0
      %3467 = vmatprep.subr.bf16.mxu0 0
      %3468 = vmatpush1.bf16.msra.mxu0 0
      %3469 = vmatprep.subr.bf16.mxu0 0
      %3470 = vmatpush1.bf16.msra.mxu0 0
      %3471 = vmatprep.subr.bf16.mxu0 0
      %3472 = vmatpush1.bf16.msra.mxu0 0
      %3473 = vmatprep.subr.bf16.mxu0 0
      %3474 = vmatpush1.bf16.msra.mxu0 0
      %3475 = vmatprep.subr.bf16.mxu0 0
      %3476 = vmatpush1.bf16.msra.mxu0 0
      %3477 = vmatprep.subr.bf16.mxu0 0
      %3478 = vmatpush1.bf16.msra.mxu0 0
      %3479 = vmatprep.subr.bf16.mxu0 0
      %3480 = vmatpush1.bf16.msra.mxu0 0
      %3481 = vmatprep.mubr.bf16.mxu0 0
      %3482 = vmatmul.mubr.bf16.gmra.mrb[0].mxu0 %v2949
      %v3483 = vpop.f32.mrb[0].mxu0
      %v3484 = vadd.f32 %v2759, %v3483
      %v3485 = vpop.f32.mrb[0].mxu0
      %v3486 = vadd.f32 %v2763, %v3485
      %v3487 = vpop.f32.mrb[0].mxu0
      %v3488 = vadd.f32 %v2759, %v3487
      %v3489 = vpop.f32.mrb[0].mxu0
      %v3490 = vadd.f32 %v2763, %v3489
      %3491 = vmatprep.mubr.bf16.mxu0 0
      %3492 = vmatmul.mubr.bf16.gmra.mrb[0].mxu0 %v2952
      %v3493 = vpop.f32.mrb[0].mxu0
      %v3494 = vadd.f32 %v2759, %v3493
      %v3495 = vpop.f32.mrb[0].mxu0
      %v3496 = vadd.f32 %v2763, %v3495
      %v3497 = vpop.f32.mrb[0].mxu0
      %v3498 = vadd.f32 %v2759, %v3497
      %v3499 = vpop.f32.mrb[0].mxu0
      %v3500 = vadd.f32 %v2763, %v3499
      %3501 = vmatprep.mubr.bf16.mxu0 0
      %3502 = vmatmul.mubr.bf16.gmra.mrb[0].mxu0 %v2955
      %v3503 = vpop.f32.mrb[0].mxu0
      %v3504 = vadd.f32 %v2759, %v3503
      %v3505 = vpop.f32.mrb[0].mxu0
      %v3506 = vadd.f32 %v2763, %v3505
      %v3507 = vpop.f32.mrb[0].mxu0
      %v3508 = vadd.f32 %v2759, %v3507
      %v3509 = vpop.f32.mrb[0].mxu0
      %v3510 = vadd.f32 %v2763, %v3509
      %3511 = vmatprep.mubr.bf16.mxu0 0
      %3512 = vmatmul.mubr.bf16.gmra.mrb[0].mxu0 %v2958
      %v3513 = vpop.f32.mrb[0].mxu0
      %v3514 = vadd.f32 %v2759, %v3513
      %v3515 = vpop.f32.mrb[0].mxu0
      %v3516 = vadd.f32 %v2763, %v3515
      %v3517 = vpop.f32.mrb[0].mxu0
      %v3518 = vadd.f32 %v2759, %v3517
      %v3519 = vpop.f32.mrb[0].mxu0
      %v3520 = vadd.f32 %v2763, %v3519
      %3521 = vmatprep.mubr.bf16.mxu0 0
      %3522 = vmatmul.mubr.bf16.gmra.mrb[0].mxu0 %v2961
      %v3523 = vpop.f32.mrb[0].mxu0
      %v3524 = vadd.f32 %v2759, %v3523
      %v3525 = vpop.f32.mrb[0].mxu0
      %v3526 = vadd.f32 %v2763, %v3525
      %v3527 = vpop.f32.mrb[0].mxu0
      %v3528 = vpop.f32.mrb[0].mxu0
      %3529 = vdwg.mxu0
      %3530 = vmatprep.subr.bf16.mxu0 %v2899
      %3531 = vmatpush1.bf16.msra.mxu0 %v2898
      %3532 = vmatprep.subr.bf16.mxu0 %v2915
      %3533 = vmatpush1.bf16.msra.mxu0 %v2914
      %3534 = vmatprep.subr.bf16.mxu0 0
      %3535 = vmatpush1.bf16.msra.mxu0 0
      %3536 = vmatprep.subr.bf16.mxu0 0
      %3537 = vmatpush1.bf16.msra.mxu0 0
      %3538 = vmatprep.subr.bf16.mxu0 0
      %3539 = vmatpush1.bf16.msra.mxu0 0
      %3540 = vmatprep.subr.bf16.mxu0 0
      %3541 = vmatpush1.bf16.msra.mxu0 0
      %3542 = vmatprep.subr.bf16.mxu0 0
      %3543 = vmatpush1.bf16.msra.mxu0 0
      %3544 = vmatprep.subr.bf16.mxu0 0
      %3545 = vmatpush1.bf16.msra.mxu0 0
      %3546 = vmatprep.subr.bf16.mxu0 0
      %3547 = vmatpush1.bf16.msra.mxu0 0
      %3548 = vmatprep.subr.bf16.mxu0 0
      %3549 = vmatpush1.bf16.msra.mxu0 0
      %3550 = vmatprep.subr.bf16.mxu0 0
      %3551 = vmatpush1.bf16.msra.mxu0 0
      %3552 = vmatprep.subr.bf16.mxu0 0
      %3553 = vmatpush1.bf16.msra.mxu0 0
      %3554 = vmatprep.subr.bf16.mxu0 0
      %3555 = vmatpush1.bf16.msra.mxu0 0
      %3556 = vmatprep.subr.bf16.mxu0 0
      %3557 = vmatpush1.bf16.msra.mxu0 0
      %3558 = vmatprep.subr.bf16.mxu0 0
      %3559 = vmatpush1.bf16.msra.mxu0 0
      %3560 = vmatprep.subr.bf16.mxu0 0
      %3561 = vmatpush1.bf16.msra.mxu0 0
      %3562 = vmatprep.mubr.bf16.mxu0 0
      %3563 = vmatmul.mubr.bf16.gmra.mrb[0].mxu0 %v2949
      %v3564 = vpop.f32.mrb[0].mxu0
      %v3565 = vadd.f32 %v2767, %v3564
      %v3566 = vpop.f32.mrb[0].mxu0
      %v3567 = vadd.f32 %v2771, %v3566
      %v3568 = vpop.f32.mrb[0].mxu0
      %v3569 = vadd.f32 %v2767, %v3568
      %v3570 = vpop.f32.mrb[0].mxu0
      %v3571 = vadd.f32 %v2771, %v3570
      %3572 = vmatprep.mubr.bf16.mxu0 0
      %3573 = vmatmul.mubr.bf16.gmra.mrb[0].mxu0 %v2952
      %v3574 = vpop.f32.mrb[0].mxu0
      %v3575 = vadd.f32 %v2767, %v3574
      %v3576 = vpop.f32.mrb[0].mxu0
      %v3577 = vadd.f32 %v2771, %v3576
      %v3578 = vpop.f32.mrb[0].mxu0
      %v3579 = vadd.f32 %v2767, %v3578
      %v3580 = vpop.f32.mrb[0].mxu0
      %v3581 = vadd.f32 %v2771, %v3580
      %3582 = vmatprep.mubr.bf16.mxu0 0
      %3583 = vmatmul.mubr.bf16.gmra.mrb[0].mxu0 %v2955
      %v3584 = vpop.f32.mrb[0].mxu0
      %v3585 = vadd.f32 %v2767, %v3584
      %v3586 = vpop.f32.mrb[0].mxu0
      %v3587 = vadd.f32 %v2771, %v3586
      %v3588 = vpop.f32.mrb[0].mxu0
      %v3589 = vadd.f32 %v2767, %v3588
      %v3590 = vpop.f32.mrb[0].mxu0
      %v3591 = vadd.f32 %v2771, %v3590
      %3592 = vmatprep.mubr.bf16.mxu0 0
      %3593 = vmatmul.mubr.bf16.gmra.mrb[0].mxu0 %v2958
      %v3594 = vpop.f32.mrb[0].mxu0
      %v3595 = vadd.f32 %v2767, %v3594
      %v3596 = vpop.f32.mrb[0].mxu0
      %v3597 = vadd.f32 %v2771, %v3596
      %v3598 = vpop.f32.mrb[0].mxu0
      %v3599 = vadd.f32 %v2767, %v3598
      %v3600 = vpop.f32.mrb[0].mxu0
      %v3601 = vadd.f32 %v2771, %v3600
      %3602 = vmatprep.mubr.bf16.mxu0 0
      %3603 = vmatmul.mubr.bf16.gmra.mrb[0].mxu0 %v2961
      %v3604 = vpop.f32.mrb[0].mxu0
      %v3605 = vadd.f32 %v2767, %v3604
      %v3606 = vpop.f32.mrb[0].mxu0
      %v3607 = vadd.f32 %v2771, %v3606
      %v3608 = vpop.f32.mrb[0].mxu0
      %v3609 = vpop.f32.mrb[0].mxu0
      %3610 = vdwg.mxu0
      %v3611 = vmax.f32 %v2998, 0.0
      %v3612 = vmax.f32 %v3000, 0.0
      %v3613 = vmax.f32 %v3079, 0.0
      %v3614 = vmax.f32 %v3081, 0.0
      %v3615 = vmax.f32 %v3160, 0.0
      %v3616 = vmax.f32 %v3162, 0.0
      %v3617 = vmax.f32 %v3241, 0.0
      %v3618 = vmax.f32 %v3243, 0.0
      %v3619 = vmax.f32 %v3322, 0.0
      %v3620 = vmax.f32 %v3324, 0.0
      %v3621 = vmax.f32 %v3403, 0.0
      %v3622 = vmax.f32 %v3405, 0.0
      %v3623 = vmax.f32 %v3484, 0.0
      %v3624 = vmax.f32 %v3486, 0.0
      %v3625 = vmax.f32 %v3565, 0.0
      %v3626 = vmax.f32 %v3567, 0.0
      %v3627 = vmax.f32 %v3002, 0.0
      %v3628 = vmax.f32 %v3004, 0.0
      %v3629 = vmax.f32 %v3083, 0.0
      %v3630 = vmax.f32 %v3085, 0.0
      %v3631 = vmax.f32 %v3164, 0.0
      %v3632 = vmax.f32 %v3166, 0.0
      %v3633 = vmax.f32 %v3245, 0.0
      %v3634 = vmax.f32 %v3247, 0.0
      %v3635 = vmax.f32 %v3326, 0.0
      %v3636 = vmax.f32 %v3328, 0.0
      %v3637 = vmax.f32 %v3407, 0.0
      %v3638 = vmax.f32 %v3409, 0.0
      %v3639 = vmax.f32 %v3488, 0.0
      %v3640 = vmax.f32 %v3490, 0.0
      %v3641 = vmax.f32 %v3569, 0.0
      %v3642 = vmax.f32 %v3571, 0.0
      %v3643 = vmax.f32 %v3008, 0.0
      %v3644 = vmax.f32 %v3010, 0.0
      %v3645 = vmax.f32 %v3089, 0.0
      %v3646 = vmax.f32 %v3091, 0.0
      %v3647 = vmax.f32 %v3170, 0.0
      %v3648 = vmax.f32 %v3172, 0.0
      %v3649 = vmax.f32 %v3251, 0.0
      %v3650 = vmax.f32 %v3253, 0.0
      %v3651 = vmax.f32 %v3332, 0.0
      %v3652 = vmax.f32 %v3334, 0.0
      %v3653 = vmax.f32 %v3413, 0.0
      %v3654 = vmax.f32 %v3415, 0.0
      %v3655 = vmax.f32 %v3494, 0.0
      %v3656 = vmax.f32 %v3496, 0.0
      %v3657 = vmax.f32 %v3575, 0.0
      %v3658 = vmax.f32 %v3577, 0.0
      %v3659 = vmax.f32 %v3012, 0.0
      %v3660 = vmax.f32 %v3014, 0.0
      %v3661 = vmax.f32 %v3093, 0.0
      %v3662 = vmax.f32 %v3095, 0.0
      %v3663 = vmax.f32 %v3174, 0.0
      %v3664 = vmax.f32 %v3176, 0.0
      %v3665 = vmax.f32 %v3255, 0.0
      %v3666 = vmax.f32 %v3257, 0.0
      %v3667 = vmax.f32 %v3336, 0.0
      %v3668 = vmax.f32 %v3338, 0.0
      %v3669 = vmax.f32 %v3417, 0.0
      %v3670 = vmax.f32 %v3419, 0.0
      %v3671 = vmax.f32 %v3498, 0.0
      %v3672 = vmax.f32 %v3500, 0.0
      %v3673 = vmax.f32 %v3579, 0.0
      %v3674 = vmax.f32 %v3581, 0.0
      %v3675 = vmax.f32 %v3018, 0.0
      %v3676 = vmax.f32 %v3020, 0.0
      %v3677 = vmax.f32 %v3099, 0.0
      %v3678 = vmax.f32 %v3101, 0.0
      %v3679 = vmax.f32 %v3180, 0.0
      %v3680 = vmax.f32 %v3182, 0.0
      %v3681 = vmax.f32 %v3261, 0.0
      %v3682 = vmax.f32 %v3263, 0.0
      %v3683 = vmax.f32 %v3342, 0.0
      %v3684 = vmax.f32 %v3344, 0.0
      %v3685 = vmax.f32 %v3423, 0.0
      %v3686 = vmax.f32 %v3425, 0.0
      %v3687 = vmax.f32 %v3504, 0.0
      %v3688 = vmax.f32 %v3506, 0.0
      %v3689 = vmax.f32 %v3585, 0.0
      %v3690 = vmax.f32 %v3587, 0.0
      %v3691 = vmax.f32 %v3022, 0.0
      %v3692 = vmax.f32 %v3024, 0.0
      %v3693 = vmax.f32 %v3103, 0.0
      %v3694 = vmax.f32 %v3105, 0.0
      %v3695 = vmax.f32 %v3184, 0.0
      %v3696 = vmax.f32 %v3186, 0.0
      %v3697 = vmax.f32 %v3265, 0.0
      %v3698 = vmax.f32 %v3267, 0.0
      %v3699 = vmax.f32 %v3346, 0.0
      %v3700 = vmax.f32 %v3348, 0.0
      %v3701 = vmax.f32 %v3427, 0.0
      %v3702 = vmax.f32 %v3429, 0.0
      %v3703 = vmax.f32 %v3508, 0.0
      %v3704 = vmax.f32 %v3510, 0.0
      %v3705 = vmax.f32 %v3589, 0.0
      %v3706 = vmax.f32 %v3591, 0.0
      %v3707 = vmax.f32 %v3028, 0.0
      %v3708 = vmax.f32 %v3030, 0.0
      %v3709 = vmax.f32 %v3109, 0.0
      %v3710 = vmax.f32 %v3111, 0.0
      %v3711 = vmax.f32 %v3190, 0.0
      %v3712 = vmax.f32 %v3192, 0.0
      %v3713 = vmax.f32 %v3271, 0.0
      %v3714 = vmax.f32 %v3273, 0.0
      %v3715 = vmax.f32 %v3352, 0.0
      %v3716 = vmax.f32 %v3354, 0.0
      %v3717 = vmax.f32 %v3433, 0.0
      %v3718 = vmax.f32 %v3435, 0.0
      %v3719 = vmax.f32 %v3514, 0.0
      %v3720 = vmax.f32 %v3516, 0.0
      %v3721 = vmax.f32 %v3595, 0.0
      %v3722 = vmax.f32 %v3597, 0.0
      %v3723 = vmax.f32 %v3032, 0.0
      %v3724 = vmax.f32 %v3034, 0.0
      %v3725 = vmax.f32 %v3113, 0.0
      %v3726 = vmax.f32 %v3115, 0.0
      %v3727 = vmax.f32 %v3194, 0.0
      %v3728 = vmax.f32 %v3196, 0.0
      %v3729 = vmax.f32 %v3275, 0.0
      %v3730 = vmax.f32 %v3277, 0.0
      %v3731 = vmax.f32 %v3356, 0.0
      %v3732 = vmax.f32 %v3358, 0.0
      %v3733 = vmax.f32 %v3437, 0.0
      %v3734 = vmax.f32 %v3439, 0.0
      %v3735 = vmax.f32 %v3518, 0.0
      %v3736 = vmax.f32 %v3520, 0.0
      %v3737 = vmax.f32 %v3599, 0.0
      %v3738 = vmax.f32 %v3601, 0.0
      %v3739 = vmax.f32 %v3038, 0.0
      %v3740 = vmax.f32 %v3040, 0.0
      %v3741 = vmax.f32 %v3119, 0.0
      %v3742 = vmax.f32 %v3121, 0.0
      %v3743 = vmax.f32 %v3200, 0.0
      %v3744 = vmax.f32 %v3202, 0.0
      %v3745 = vmax.f32 %v3281, 0.0
      %v3746 = vmax.f32 %v3283, 0.0
      %v3747 = vmax.f32 %v3362, 0.0
      %v3748 = vmax.f32 %v3364, 0.0
      %v3749 = vmax.f32 %v3443, 0.0
      %v3750 = vmax.f32 %v3445, 0.0
      %v3751 = vmax.f32 %v3524, 0.0
      %v3752 = vmax.f32 %v3526, 0.0
      %v3753 = vmax.f32 %v3605, 0.0
      %v3754 = vmax.f32 %v3607, 0.0
      %v3755 = vpack.c.bf16 %v3627, %v3611
      %v3756 = vpack.c.bf16 %v3628, %v3612
      %v3757 = vpack.c.bf16 %v3629, %v3613
      %v3758 = vpack.c.bf16 %v3630, %v3614
      %v3759 = vpack.c.bf16 %v3631, %v3615
      %v3760 = vpack.c.bf16 %v3632, %v3616
      %v3761 = vpack.c.bf16 %v3633, %v3617
      %v3762 = vpack.c.bf16 %v3634, %v3618
      %v3763 = vpack.c.bf16 %v3635, %v3619
      %v3764 = vpack.c.bf16 %v3636, %v3620
      %v3765 = vpack.c.bf16 %v3637, %v3621
      %v3766 = vpack.c.bf16 %v3638, %v3622
      %v3767 = vpack.c.bf16 %v3639, %v3623
      %v3768 = vpack.c.bf16 %v3640, %v3624
      %v3769 = vpack.c.bf16 %v3641, %v3625
      %v3770 = vpack.c.bf16 %v3642, %v3626
      %v3771 = vpack.c.bf16 %v3659, %v3643
      %v3772 = vpack.c.bf16 %v3660, %v3644
      %v3773 = vpack.c.bf16 %v3661, %v3645
      %v3774 = vpack.c.bf16 %v3662, %v3646
      %v3775 = vpack.c.bf16 %v3663, %v3647
      %v3776 = vpack.c.bf16 %v3664, %v3648
      %v3777 = vpack.c.bf16 %v3665, %v3649
      %v3778 = vpack.c.bf16 %v3666, %v3650
      %v3779 = vpack.c.bf16 %v3667, %v3651
      %v3780 = vpack.c.bf16 %v3668, %v3652
      %v3781 = vpack.c.bf16 %v3669, %v3653
      %v3782 = vpack.c.bf16 %v3670, %v3654
      %v3783 = vpack.c.bf16 %v3671, %v3655
      %v3784 = vpack.c.bf16 %v3672, %v3656
      %v3785 = vpack.c.bf16 %v3673, %v3657
      %v3786 = vpack.c.bf16 %v3674, %v3658
      %v3787 = vpack.c.bf16 %v3691, %v3675
      %v3788 = vpack.c.bf16 %v3692, %v3676
      %v3789 = vpack.c.bf16 %v3693, %v3677
      %v3790 = vpack.c.bf16 %v3694, %v3678
      %v3791 = vpack.c.bf16 %v3695, %v3679
      %v3792 = vpack.c.bf16 %v3696, %v3680
      %v3793 = vpack.c.bf16 %v3697, %v3681
      %v3794 = vpack.c.bf16 %v3698, %v3682
      %v3795 = vpack.c.bf16 %v3699, %v3683
      %v3796 = vpack.c.bf16 %v3700, %v3684
      %v3797 = vpack.c.bf16 %v3701, %v3685
      %v3798 = vpack.c.bf16 %v3702, %v3686
      %v3799 = vpack.c.bf16 %v3703, %v3687
      %v3800 = vpack.c.bf16 %v3704, %v3688
      %v3801 = vpack.c.bf16 %v3705, %v3689
      %v3802 = vpack.c.bf16 %v3706, %v3690
      %v3803 = vpack.c.bf16 %v3723, %v3707
      %v3804 = vpack.c.bf16 %v3724, %v3708
      %v3805 = vpack.c.bf16 %v3725, %v3709
      %v3806 = vpack.c.bf16 %v3726, %v3710
      %v3807 = vpack.c.bf16 %v3727, %v3711
      %v3808 = vpack.c.bf16 %v3728, %v3712
      %v3809 = vpack.c.bf16 %v3729, %v3713
      %v3810 = vpack.c.bf16 %v3730, %v3714
      %v3811 = vpack.c.bf16 %v3731, %v3715
      %v3812 = vpack.c.bf16 %v3732, %v3716
      %v3813 = vpack.c.bf16 %v3733, %v3717
      %v3814 = vpack.c.bf16 %v3734, %v3718
      %v3815 = vpack.c.bf16 %v3735, %v3719
      %v3816 = vpack.c.bf16 %v3736, %v3720
      %v3817 = vpack.c.bf16 %v3737, %v3721
      %v3818 = vpack.c.bf16 %v3738, %v3722
      %v3819 = vpack.c.bf16 %v3739, %v3739
      %v3820 = vpack.c.bf16 %v3740, %v3740
      %v3821 = vpack.c.bf16 %v3741, %v3741
      %v3822 = vpack.c.bf16 %v3742, %v3742
      %v3823 = vpack.c.bf16 %v3743, %v3743
      %v3824 = vpack.c.bf16 %v3744, %v3744
      %v3825 = vpack.c.bf16 %v3745, %v3745
      %v3826 = vpack.c.bf16 %v3746, %v3746
      %v3827 = vpack.c.bf16 %v3747, %v3747
      %v3828 = vpack.c.bf16 %v3748, %v3748
      %v3829 = vpack.c.bf16 %v3749, %v3749
      %v3830 = vpack.c.bf16 %v3750, %v3750
      %v3831 = vpack.c.bf16 %v3751, %v3751
      %v3832 = vpack.c.bf16 %v3752, %v3752
      %v3833 = vpack.c.bf16 %v3753, %v3753
      %v3834 = vpack.c.bf16 %v3754, %v3754
      %v3835 = vlaneseq
      %v3836 = vshrl.u32 %v3835, 7
      %v3837 = vsub.s32 3, %v3836
      %v3838 = vrot.slane %v859, %v3837
      %v4095 = vunpack.c.l.b16 %v600
      %v4096 = vunpack.c.l.b16 %v601
      %v4097 = vunpack.c.l.b16 %v602
      %v4098 = vunpack.c.l.b16 %v603
      %v4099 = vunpack.c.l.b16 %v604
      %v4100 = vunpack.c.l.b16 %v605
      %v4101 = vunpack.c.l.b16 %v606
      %v4102 = vunpack.c.l.b16 %v607
      %v4103 = vunpack.c.l.b16 %v608
      %v4104 = vunpack.c.l.b16 %v609
      %v4105 = vunpack.c.l.b16 %v610
      %v4106 = vunpack.c.l.b16 %v611
      %v4107 = vunpack.c.l.b16 %v612
      %v4108 = vunpack.c.l.b16 %v613
      %v4109 = vunpack.c.l.b16 %v614
      %v4110 = vunpack.c.l.b16 %v615
      %v4111 = vunpack.c.l.b16 %v616
      %v4112 = vunpack.c.l.b16 %v617
      %v4113 = vunpack.c.l.b16 %v618
      %v4114 = vunpack.c.l.b16 %v619
      %v4115 = vunpack.c.l.b16 %v620
      %v4116 = vunpack.c.l.b16 %v621
      %v4117 = vunpack.c.l.b16 %v622
      %v4118 = vunpack.c.l.b16 %v623
      %v4119 = vunpack.c.l.b16 %v624
      %v4120 = vunpack.c.l.b16 %v625
      %v4121 = vunpack.c.l.b16 %v626
      %v4122 = vunpack.c.l.b16 %v627
      %v4123 = vunpack.c.l.b16 %v628
      %v4124 = vunpack.c.l.b16 %v629
      %v4125 = vunpack.c.l.b16 %v630
      %v4126 = vunpack.c.l.b16 %v631
      %v4127 = vunpack.c.l.b16 %v632
      %v4128 = vunpack.c.l.b16 %v633
      %v4129 = vunpack.c.l.b16 %v634
      %v4130 = vunpack.c.l.b16 %v635
      %v4131 = vunpack.c.l.b16 %v636
      %v4132 = vunpack.c.l.b16 %v637
      %v4133 = vunpack.c.l.b16 %v638
      %v4134 = vunpack.c.l.b16 %v639
      %v4135 = vunpack.c.l.b16 %v640
      %v4136 = vunpack.c.l.b16 %v641
      %v4137 = vunpack.c.l.b16 %v642
      %v4138 = vunpack.c.l.b16 %v643
      %v4139 = vunpack.c.l.b16 %v644
      %v4140 = vunpack.c.l.b16 %v645
      %v4141 = vunpack.c.l.b16 %v646
      %v4142 = vunpack.c.l.b16 %v647
      %v4143 = vunpack.c.l.b16 %v648
      %v4144 = vunpack.c.l.b16 %v649
      %v4145 = vunpack.c.l.b16 %v650
      %v4146 = vunpack.c.l.b16 %v651
      %v4147 = vunpack.c.l.b16 %v652
      %v4148 = vunpack.c.l.b16 %v653
      %v4149 = vunpack.c.l.b16 %v654
      %v4150 = vunpack.c.l.b16 %v655
      %v4151 = vunpack.c.l.b16 %v656
      %v4152 = vunpack.c.l.b16 %v657
      %v4153 = vunpack.c.l.b16 %v658
      %v4154 = vunpack.c.l.b16 %v659
      %v4155 = vunpack.c.l.b16 %v660
      %v4156 = vunpack.c.l.b16 %v661
      %v4157 = vunpack.c.l.b16 %v662
      %v4158 = vunpack.c.l.b16 %v663
      %v4159 = vunpack.c.l.b16 %v664
      %v4160 = vunpack.c.l.b16 %v665
      %v4161 = vunpack.c.l.b16 %v666
      %v4162 = vunpack.c.l.b16 %v667
      %v4163 = vunpack.c.l.b16 %v668
      %v4164 = vunpack.c.l.b16 %v669
      %v4165 = vunpack.c.l.b16 %v670
      %v4166 = vunpack.c.l.b16 %v671
      %v4167 = vunpack.c.l.b16 %v672
      %v4168 = vunpack.c.l.b16 %v673
      %v4169 = vunpack.c.l.b16 %v674
      %v4170 = vunpack.c.l.b16 %v675
      %v4171 = vunpack.c.l.b16 %v676
      %v4172 = vunpack.c.l.b16 %v677
      %v4173 = vunpack.c.l.b16 %v678
      %v4174 = vunpack.c.l.b16 %v679
      %v4175 = vunpack.c.l.b16 %v680
      %v4176 = vunpack.c.l.b16 %v681
      %v4177 = vunpack.c.l.b16 %v682
      %v4178 = vunpack.c.l.b16 %v683
      %v4179 = vunpack.c.l.b16 %v684
      %v4180 = vunpack.c.l.b16 %v685
      %v4181 = vunpack.c.l.b16 %v686
      %v4182 = vunpack.c.l.b16 %v687
      %v4183 = vunpack.c.l.b16 %v688
      %v4184 = vunpack.c.l.b16 %v689
      %v4185 = vunpack.c.l.b16 %v690
      %v4186 = vunpack.c.l.b16 %v691
      %v4187 = vunpack.c.l.b16 %v692
      %v4188 = vunpack.c.l.b16 %v693
      %v4189 = vunpack.c.l.b16 %v694
      %v4190 = vunpack.c.l.b16 %v695
      %v4191 = vunpack.c.l.b16 %v696
      %v4192 = vunpack.c.l.b16 %v697
      %v4193 = vunpack.c.l.b16 %v698
      %v4194 = vunpack.c.l.b16 %v699
      %v4195 = vunpack.c.l.b16 %v700
      %v4196 = vunpack.c.l.b16 %v701
      %v4197 = vunpack.c.l.b16 %v702
      %v4198 = vunpack.c.l.b16 %v703
      %v4199 = vunpack.c.l.b16 %v704
      %v4200 = vunpack.c.l.b16 %v705
      %v4201 = vunpack.c.l.b16 %v706
      %v4202 = vunpack.c.l.b16 %v707
      %v4203 = vunpack.c.l.b16 %v708
      %v4204 = vunpack.c.l.b16 %v709
      %v4205 = vunpack.c.l.b16 %v710
      %v4206 = vunpack.c.l.b16 %v711
      %v4207 = vunpack.c.l.b16 %v712
      %v4208 = vunpack.c.l.b16 %v713
      %v4209 = vunpack.c.l.b16 %v714
      %v4210 = vunpack.c.l.b16 %v715
      %v4211 = vunpack.c.l.b16 %v716
      %v4212 = vunpack.c.l.b16 %v717
      %v4213 = vunpack.c.l.b16 %v718
      %v4214 = vunpack.c.l.b16 %v719
      %v4215 = vunpack.c.l.b16 %v720
      %v4216 = vunpack.c.l.b16 %v721
      %v4217 = vunpack.c.l.b16 %v722
      %v4218 = vunpack.c.l.b16 %v723
      %v4219 = vunpack.c.l.b16 %v724
      %v4220 = vunpack.c.l.b16 %v725
      %v4221 = vunpack.c.l.b16 %v726
      %v4222 = vunpack.c.l.b16 %v727
      %v4223 = vunpack.c.l.b16 %v728
      %v4224 = vunpack.c.l.b16 %v729
      %v4225 = vunpack.c.l.b16 %v730
      %v4226 = vunpack.c.l.b16 %v731
      %v4227 = vunpack.c.l.b16 %v732
      %v4228 = vunpack.c.l.b16 %v733
      %v4229 = vunpack.c.l.b16 %v734
      %v4230 = vunpack.c.l.b16 %v735
      %v4231 = vunpack.c.l.b16 %v736
      %v4232 = vunpack.c.l.b16 %v737
      %v4233 = vunpack.c.l.b16 %v738
      %v4234 = vunpack.c.l.b16 %v739
      %v4235 = vunpack.c.l.b16 %v740
      %v4236 = vunpack.c.l.b16 %v741
      %v4237 = vunpack.c.l.b16 %v742
      %v4238 = vunpack.c.l.b16 %v743
      %v4239 = vunpack.c.l.b16 %v744
      %v4240 = vunpack.c.l.b16 %v745
      %v4241 = vunpack.c.l.b16 %v746
      %v4242 = vunpack.c.l.b16 %v747
      %v4243 = vunpack.c.l.b16 %v748
      %v4244 = vunpack.c.l.b16 %v749
      %v4245 = vunpack.c.l.b16 %v750
      %v4246 = vunpack.c.l.b16 %v751
      %v4247 = vunpack.c.l.b16 %v752
      %v4248 = vunpack.c.l.b16 %v753
      %v4249 = vunpack.c.l.b16 %v754
      %v4250 = vunpack.c.l.b16 %v755
      %v4251 = vunpack.c.l.b16 %v756
      %v4252 = vunpack.c.l.b16 %v757
      %v4253 = vunpack.c.l.b16 %v758
      %v4254 = vunpack.c.l.b16 %v759
      %v4255 = vunpack.c.l.b16 %v760
      %v4256 = vunpack.c.l.b16 %v761
      %v4257 = vunpack.c.l.b16 %v762
      %v4258 = vunpack.c.l.b16 %v763
      %v4259 = vunpack.c.l.b16 %v764
      %v4260 = vunpack.c.l.b16 %v765
      %v4261 = vunpack.c.l.b16 %v766
      %v4262 = vunpack.c.l.b16 %v767
      %v4263 = vunpack.c.l.b16 %v768
      %v4264 = vunpack.c.l.b16 %v769
      %v4265 = vunpack.c.l.b16 %v770
      %v4266 = vunpack.c.l.b16 %v771
      %v4267 = vunpack.c.l.b16 %v772
      %v4268 = vunpack.c.l.b16 %v773
      %v4269 = vunpack.c.l.b16 %v774
      %v4270 = vunpack.c.l.b16 %v775
      %v4271 = vunpack.c.l.b16 %v776
      %v4272 = vunpack.c.l.b16 %v777
      %v4273 = vunpack.c.l.b16 %v778
      %v4274 = vunpack.c.l.b16 %v779
      %v4275 = vunpack.c.l.b16 %v780
      %v4276 = vunpack.c.l.b16 %v781
      %v4277 = vunpack.c.l.b16 %v782
      %v4278 = vunpack.c.l.b16 %v783
      %v4279 = vunpack.c.l.b16 %v784
      %v4280 = vunpack.c.l.b16 %v785
      %v4281 = vunpack.c.l.b16 %v786
      %v4282 = vunpack.c.l.b16 %v787
      %v4283 = vunpack.c.l.b16 %v788
      %v4284 = vunpack.c.l.b16 %v789
      %v4285 = vunpack.c.l.b16 %v790
      %v4286 = vunpack.c.l.b16 %v791
      %v4287 = vunpack.c.l.b16 %v792
      %v4288 = vunpack.c.l.b16 %v793
      %v4289 = vunpack.c.l.b16 %v794
      %v4290 = vunpack.c.l.b16 %v795
      %v4291 = vunpack.c.l.b16 %v796
      %v4292 = vunpack.c.l.b16 %v797
      %v4293 = vunpack.c.l.b16 %v798
      %v4294 = vunpack.c.l.b16 %v799
      %v4295 = vunpack.c.l.b16 %v800
      %v4296 = vunpack.c.l.b16 %v801
      %v4297 = vunpack.c.l.b16 %v802
      %v4298 = vunpack.c.l.b16 %v803
      %v4299 = vunpack.c.l.b16 %v804
      %v4300 = vunpack.c.l.b16 %v805
      %v4301 = vunpack.c.l.b16 %v806
      %v4302 = vunpack.c.l.b16 %v807
      %v4303 = vunpack.c.l.b16 %v808
      %v4304 = vunpack.c.l.b16 %v809
      %v4305 = vunpack.c.l.b16 %v810
      %v4306 = vunpack.c.l.b16 %v811
      %v4307 = vunpack.c.l.b16 %v812
      %v4308 = vunpack.c.l.b16 %v813
      %v4309 = vunpack.c.l.b16 %v814
      %v4310 = vunpack.c.l.b16 %v815
      %v4311 = vunpack.c.l.b16 %v816
      %v4312 = vunpack.c.l.b16 %v817
      %v4313 = vunpack.c.l.b16 %v818
      %v4314 = vunpack.c.l.b16 %v819
      %v4315 = vunpack.c.l.b16 %v820
      %v4316 = vunpack.c.l.b16 %v821
      %v4317 = vunpack.c.l.b16 %v822
      %v4318 = vunpack.c.l.b16 %v823
      %v4319 = vunpack.c.l.b16 %v824
      %v4320 = vunpack.c.l.b16 %v825
      %v4321 = vunpack.c.l.b16 %v826
      %v4322 = vunpack.c.l.b16 %v827
      %v4323 = vunpack.c.l.b16 %v828
      %v4324 = vunpack.c.l.b16 %v829
      %v4325 = vunpack.c.l.b16 %v830
      %v4326 = vunpack.c.l.b16 %v831
      %v4327 = vunpack.c.l.b16 %v832
      %v4328 = vunpack.c.l.b16 %v833
      %v4329 = vunpack.c.l.b16 %v834
      %v4330 = vunpack.c.l.b16 %v835
      %v4331 = vunpack.c.l.b16 %v836
      %v4332 = vunpack.c.l.b16 %v837
      %v4333 = vunpack.c.l.b16 %v838
      %v4334 = vunpack.c.l.b16 %v839
      %v4335 = vunpack.c.l.b16 %v840
      %v4336 = vunpack.c.l.b16 %v841
      %v4337 = vunpack.c.l.b16 %v842
      %v4338 = vunpack.c.l.b16 %v843
      %v4339 = vunpack.c.l.b16 %v844
      %v4340 = vunpack.c.l.b16 %v845
      %v4341 = vunpack.c.l.b16 %v846
      %v4342 = vunpack.c.l.b16 %v847
      %v4343 = vunpack.c.l.b16 %v848
      %v4344 = vunpack.c.l.b16 %v849
      %v4345 = vunpack.c.l.b16 %v850
      %v4346 = vunpack.c.l.b16 %v851
      %v4347 = vunpack.c.l.b16 %v852
      %v4348 = vunpack.c.l.b16 %v853
      %v4349 = vunpack.c.l.b16 %v854
      %v4350 = vunpack.c.l.b16 %v855
      %v4351 = vpack.c.b16 %v4096, %v4095
      %v4352 = vpack.c.b16 %v4098, %v4097
      %v4353 = vpack.c.b16 %v4100, %v4099
      %v4354 = vpack.c.b16 %v4102, %v4101
      %v4355 = vpack.c.b16 %v4104, %v4103
      %v4356 = vpack.c.b16 %v4106, %v4105
      %v4357 = vpack.c.b16 %v4108, %v4107
      %v4358 = vpack.c.b16 %v4110, %v4109
      %v4359 = vpack.c.b16 %v4112, %v4111
      %v4360 = vpack.c.b16 %v4114, %v4113
      %v4361 = vpack.c.b16 %v4116, %v4115
      %v4362 = vpack.c.b16 %v4118, %v4117
      %v4363 = vpack.c.b16 %v4120, %v4119
      %v4364 = vpack.c.b16 %v4122, %v4121
      %v4365 = vpack.c.b16 %v4124, %v4123
      %v4366 = vpack.c.b16 %v4126, %v4125
      %v4367 = vpack.c.b16 %v4128, %v4127
      %v4368 = vpack.c.b16 %v4130, %v4129
      %v4369 = vpack.c.b16 %v4132, %v4131
      %v4370 = vpack.c.b16 %v4134, %v4133
      %v4371 = vpack.c.b16 %v4136, %v4135
      %v4372 = vpack.c.b16 %v4138, %v4137
      %v4373 = vpack.c.b16 %v4140, %v4139
      %v4374 = vpack.c.b16 %v4142, %v4141
      %v4375 = vpack.c.b16 %v4144, %v4143
      %v4376 = vpack.c.b16 %v4146, %v4145
      %v4377 = vpack.c.b16 %v4148, %v4147
      %v4378 = vpack.c.b16 %v4150, %v4149
      %v4379 = vpack.c.b16 %v4152, %v4151
      %v4380 = vpack.c.b16 %v4154, %v4153
      %v4381 = vpack.c.b16 %v4156, %v4155
      %v4382 = vpack.c.b16 %v4158, %v4157
      %v4383 = vpack.c.b16 %v4160, %v4159
      %v4384 = vpack.c.b16 %v4162, %v4161
      %v4385 = vpack.c.b16 %v4164, %v4163
      %v4386 = vpack.c.b16 %v4166, %v4165
      %v4387 = vpack.c.b16 %v4168, %v4167
      %v4388 = vpack.c.b16 %v4170, %v4169
      %v4389 = vpack.c.b16 %v4172, %v4171
      %v4390 = vpack.c.b16 %v4174, %v4173
      %v4391 = vpack.c.b16 %v4176, %v4175
      %v4392 = vpack.c.b16 %v4178, %v4177
      %v4393 = vpack.c.b16 %v4180, %v4179
      %v4394 = vpack.c.b16 %v4182, %v4181
      %v4395 = vpack.c.b16 %v4184, %v4183
      %v4396 = vpack.c.b16 %v4186, %v4185
      %v4397 = vpack.c.b16 %v4188, %v4187
      %v4398 = vpack.c.b16 %v4190, %v4189
      %v4399 = vpack.c.b16 %v4192, %v4191
      %v4400 = vpack.c.b16 %v4194, %v4193
      %v4401 = vpack.c.b16 %v4196, %v4195
      %v4402 = vpack.c.b16 %v4198, %v4197
      %v4403 = vpack.c.b16 %v4200, %v4199
      %v4404 = vpack.c.b16 %v4202, %v4201
      %v4405 = vpack.c.b16 %v4204, %v4203
      %v4406 = vpack.c.b16 %v4206, %v4205
      %v4407 = vpack.c.b16 %v4208, %v4207
      %v4408 = vpack.c.b16 %v4210, %v4209
      %v4409 = vpack.c.b16 %v4212, %v4211
      %v4410 = vpack.c.b16 %v4214, %v4213
      %v4411 = vpack.c.b16 %v4216, %v4215
      %v4412 = vpack.c.b16 %v4218, %v4217
      %v4413 = vpack.c.b16 %v4220, %v4219
      %v4414 = vpack.c.b16 %v4222, %v4221
      %v4415 = vpack.c.b16 %v4224, %v4223
      %v4416 = vpack.c.b16 %v4226, %v4225
      %v4417 = vpack.c.b16 %v4228, %v4227
      %v4418 = vpack.c.b16 %v4230, %v4229
      %v4419 = vpack.c.b16 %v4232, %v4231
      %v4420 = vpack.c.b16 %v4234, %v4233
      %v4421 = vpack.c.b16 %v4236, %v4235
      %v4422 = vpack.c.b16 %v4238, %v4237
      %v4423 = vpack.c.b16 %v4240, %v4239
      %v4424 = vpack.c.b16 %v4242, %v4241
      %v4425 = vpack.c.b16 %v4244, %v4243
      %v4426 = vpack.c.b16 %v4246, %v4245
      %v4427 = vpack.c.b16 %v4248, %v4247
      %v4428 = vpack.c.b16 %v4250, %v4249
      %v4429 = vpack.c.b16 %v4252, %v4251
      %v4430 = vpack.c.b16 %v4254, %v4253
      %v4431 = vpack.c.b16 %v4256, %v4255
      %v4432 = vpack.c.b16 %v4258, %v4257
      %v4433 = vpack.c.b16 %v4260, %v4259
      %v4434 = vpack.c.b16 %v4262, %v4261
      %v4435 = vpack.c.b16 %v4264, %v4263
      %v4436 = vpack.c.b16 %v4266, %v4265
      %v4437 = vpack.c.b16 %v4268, %v4267
      %v4438 = vpack.c.b16 %v4270, %v4269
      %v4439 = vpack.c.b16 %v4272, %v4271
      %v4440 = vpack.c.b16 %v4274, %v4273
      %v4441 = vpack.c.b16 %v4276, %v4275
      %v4442 = vpack.c.b16 %v4278, %v4277
      %v4443 = vpack.c.b16 %v4280, %v4279
      %v4444 = vpack.c.b16 %v4282, %v4281
      %v4445 = vpack.c.b16 %v4284, %v4283
      %v4446 = vpack.c.b16 %v4286, %v4285
      %v4447 = vpack.c.b16 %v4288, %v4287
      %v4448 = vpack.c.b16 %v4290, %v4289
      %v4449 = vpack.c.b16 %v4292, %v4291
      %v4450 = vpack.c.b16 %v4294, %v4293
      %v4451 = vpack.c.b16 %v4296, %v4295
      %v4452 = vpack.c.b16 %v4298, %v4297
      %v4453 = vpack.c.b16 %v4300, %v4299
      %v4454 = vpack.c.b16 %v4302, %v4301
      %v4455 = vpack.c.b16 %v4304, %v4303
      %v4456 = vpack.c.b16 %v4306, %v4305
      %v4457 = vpack.c.b16 %v4308, %v4307
      %v4458 = vpack.c.b16 %v4310, %v4309
      %v4459 = vpack.c.b16 %v4312, %v4311
      %v4460 = vpack.c.b16 %v4314, %v4313
      %v4461 = vpack.c.b16 %v4316, %v4315
      %v4462 = vpack.c.b16 %v4318, %v4317
      %v4463 = vpack.c.b16 %v4320, %v4319
      %v4464 = vpack.c.b16 %v4322, %v4321
      %v4465 = vpack.c.b16 %v4324, %v4323
      %v4466 = vpack.c.b16 %v4326, %v4325
      %v4467 = vpack.c.b16 %v4328, %v4327
      %v4468 = vpack.c.b16 %v4330, %v4329
      %v4469 = vpack.c.b16 %v4332, %v4331
      %v4470 = vpack.c.b16 %v4334, %v4333
      %v4471 = vpack.c.b16 %v4336, %v4335
      %v4472 = vpack.c.b16 %v4338, %v4337
      %v4473 = vpack.c.b16 %v4340, %v4339
      %v4474 = vpack.c.b16 %v4342, %v4341
      %v4475 = vpack.c.b16 %v4344, %v4343
      %v4476 = vpack.c.b16 %v4346, %v4345
      %v4477 = vpack.c.b16 %v4348, %v4347
      %v4478 = vpack.c.b16 %v4350, %v4349
      %4607 = vmatprep.subr.bf16.mxu0 0
      %4608 = vmatpush1.bf16.msra.mxu0 %v4351
      %4609 = vmatprep.subr.bf16.mxu0 0
      %4610 = vmatpush1.bf16.msra.mxu0 %v4352
      %4611 = vmatprep.subr.bf16.mxu0 0
      %4612 = vmatpush1.bf16.msra.mxu0 %v4353
      %4613 = vmatprep.subr.bf16.mxu0 0
      %4614 = vmatpush1.bf16.msra.mxu0 %v4354
      %4615 = vmatprep.subr.bf16.mxu0 0
      %4616 = vmatpush1.bf16.msra.mxu0 %v4355
      %4617 = vmatprep.subr.bf16.mxu0 0
      %4618 = vmatpush1.bf16.msra.mxu0 %v4356
      %4619 = vmatprep.subr.bf16.mxu0 0
      %4620 = vmatpush1.bf16.msra.mxu0 %v4357
      %4621 = vmatprep.subr.bf16.mxu0 0
      %4622 = vmatpush1.bf16.msra.mxu0 %v4358
      %4623 = vmatprep.subr.bf16.mxu0 0
      %4624 = vmatpush1.bf16.msra.mxu0 %v4359
      %4625 = vmatprep.subr.bf16.mxu0 0
      %4626 = vmatpush1.bf16.msra.mxu0 %v4360
      %4627 = vmatprep.subr.bf16.mxu0 0
      %4628 = vmatpush1.bf16.msra.mxu0 %v4361
      %4629 = vmatprep.subr.bf16.mxu0 0
      %4630 = vmatpush1.bf16.msra.mxu0 %v4362
      %4631 = vmatprep.subr.bf16.mxu0 0
      %4632 = vmatpush1.bf16.msra.mxu0 %v4363
      %4633 = vmatprep.subr.bf16.mxu0 0
      %4634 = vmatpush1.bf16.msra.mxu0 %v4364
      %4635 = vmatprep.subr.bf16.mxu0 0
      %4636 = vmatpush1.bf16.msra.mxu0 %v4365
      %4637 = vmatprep.subr.bf16.mxu0 0
      %4638 = vmatpush1.bf16.msra.mxu0 %v4366
      %4639 = vmatprep.mubr.bf16.mxu0 %v3756
      %4640 = vmatmul.mubr.bf16.gmra.mrb[0].mxu0 %v3755
      %v4641 = vpop.f32.mrb[0].mxu0
      %v4642 = vadd.f32 %v3838, %v4641
      %v4643 = vpop.f32.mrb[0].mxu0
      %v4644 = vpop.f32.mrb[0].mxu0
      %v4645 = vadd.f32 %v3838, %v4644
      %v4646 = vpop.f32.mrb[0].mxu0
      %4647 = vmatprep.mubr.bf16.mxu0 %v3772
      %4648 = vmatmul.mubr.bf16.gmra.mrb[0].mxu0 %v3771
      %v4649 = vpop.f32.mrb[0].mxu0
      %v4650 = vadd.f32 %v3838, %v4649
      %v4651 = vpop.f32.mrb[0].mxu0
      %v4652 = vpop.f32.mrb[0].mxu0
      %v4653 = vadd.f32 %v3838, %v4652
      %v4654 = vpop.f32.mrb[0].mxu0
      %4655 = vmatprep.mubr.bf16.mxu0 %v3788
      %4656 = vmatmul.mubr.bf16.gmra.mrb[0].mxu0 %v3787
      %v4657 = vpop.f32.mrb[0].mxu0
      %v4658 = vadd.f32 %v3838, %v4657
      %v4659 = vpop.f32.mrb[0].mxu0
      %v4660 = vpop.f32.mrb[0].mxu0
      %v4661 = vadd.f32 %v3838, %v4660
      %v4662 = vpop.f32.mrb[0].mxu0
      %4663 = vmatprep.mubr.bf16.mxu0 %v3804
      %4664 = vmatmul.mubr.bf16.gmra.mrb[0].mxu0 %v3803
      %v4665 = vpop.f32.mrb[0].mxu0
      %v4666 = vadd.f32 %v3838, %v4665
      %v4667 = vpop.f32.mrb[0].mxu0
      %v4668 = vpop.f32.mrb[0].mxu0
      %v4669 = vadd.f32 %v3838, %v4668
      %v4670 = vpop.f32.mrb[0].mxu0
      %4671 = vmatprep.mubr.bf16.mxu0 %v3820
      %4672 = vmatmul.mubr.bf16.gmra.mrb[0].mxu0 %v3819
      %v4673 = vpop.f32.mrb[0].mxu0
      %v4674 = vadd.f32 %v3838, %v4673
      %v4675 = vpop.f32.mrb[0].mxu0
      %v4676 = vpop.f32.mrb[0].mxu0
      %v4677 = vpop.f32.mrb[0].mxu0
      %4678 = vdwg.mxu0
      %4679 = vmatprep.subr.bf16.mxu0 0
      %4680 = vmatpush1.bf16.msra.mxu0 %v4367
      %4681 = vmatprep.subr.bf16.mxu0 0
      %4682 = vmatpush1.bf16.msra.mxu0 %v4368
      %4683 = vmatprep.subr.bf16.mxu0 0
      %4684 = vmatpush1.bf16.msra.mxu0 %v4369
      %4685 = vmatprep.subr.bf16.mxu0 0
      %4686 = vmatpush1.bf16.msra.mxu0 %v4370
      %4687 = vmatprep.subr.bf16.mxu0 0
      %4688 = vmatpush1.bf16.msra.mxu0 %v4371
      %4689 = vmatprep.subr.bf16.mxu0 0
      %4690 = vmatpush1.bf16.msra.mxu0 %v4372
      %4691 = vmatprep.subr.bf16.mxu0 0
      %4692 = vmatpush1.bf16.msra.mxu0 %v4373
      %4693 = vmatprep.subr.bf16.mxu0 0
      %4694 = vmatpush1.bf16.msra.mxu0 %v4374
      %4695 = vmatprep.subr.bf16.mxu0 0
      %4696 = vmatpush1.bf16.msra.mxu0 %v4375
      %4697 = vmatprep.subr.bf16.mxu0 0
      %4698 = vmatpush1.bf16.msra.mxu0 %v4376
      %4699 = vmatprep.subr.bf16.mxu0 0
      %4700 = vmatpush1.bf16.msra.mxu0 %v4377
      %4701 = vmatprep.subr.bf16.mxu0 0
      %4702 = vmatpush1.bf16.msra.mxu0 %v4378
      %4703 = vmatprep.subr.bf16.mxu0 0
      %4704 = vmatpush1.bf16.msra.mxu0 %v4379
      %4705 = vmatprep.subr.bf16.mxu0 0
      %4706 = vmatpush1.bf16.msra.mxu0 %v4380
      %4707 = vmatprep.subr.bf16.mxu0 0
      %4708 = vmatpush1.bf16.msra.mxu0 %v4381
      %4709 = vmatprep.subr.bf16.mxu0 0
      %4710 = vmatpush1.bf16.msra.mxu0 %v4382
      %4711 = vmatprep.mubr.bf16.mxu0 %v3758
      %4712 = vmatmul.mubr.bf16.gmra.mrb[0].mxu0 %v3757
      %v4713 = vpop.f32.mrb[0].mxu0
      %v4714 = vadd.f32 %v4642, %v4713
      %v4715 = vpop.f32.mrb[0].mxu0
      %v4716 = vpop.f32.mrb[0].mxu0
      %v4717 = vadd.f32 %v4645, %v4716
      %v4718 = vpop.f32.mrb[0].mxu0
      %4719 = vmatprep.mubr.bf16.mxu0 %v3774
      %4720 = vmatmul.mubr.bf16.gmra.mrb[0].mxu0 %v3773
      %v4721 = vpop.f32.mrb[0].mxu0
      %v4722 = vadd.f32 %v4650, %v4721
      %v4723 = vpop.f32.mrb[0].mxu0
      %v4724 = vpop.f32.mrb[0].mxu0
      %v4725 = vadd.f32 %v4653, %v4724
      %v4726 = vpop.f32.mrb[0].mxu0
      %4727 = vmatprep.mubr.bf16.mxu0 %v3790
      %4728 = vmatmul.mubr.bf16.gmra.mrb[0].mxu0 %v3789
      %v4729 = vpop.f32.mrb[0].mxu0
      %v4730 = vadd.f32 %v4658, %v4729
      %v4731 = vpop.f32.mrb[0].mxu0
      %v4732 = vpop.f32.mrb[0].mxu0
      %v4733 = vadd.f32 %v4661, %v4732
      %v4734 = vpop.f32.mrb[0].mxu0
      %4735 = vmatprep.mubr.bf16.mxu0 %v3806
      %4736 = vmatmul.mubr.bf16.gmra.mrb[0].mxu0 %v3805
      %v4737 = vpop.f32.mrb[0].mxu0
      %v4738 = vadd.f32 %v4666, %v4737
      %v4739 = vpop.f32.mrb[0].mxu0
      %v4740 = vpop.f32.mrb[0].mxu0
      %v4741 = vadd.f32 %v4669, %v4740
      %v4742 = vpop.f32.mrb[0].mxu0
      %4743 = vmatprep.mubr.bf16.mxu0 %v3822
      %4744 = vmatmul.mubr.bf16.gmra.mrb[0].mxu0 %v3821
      %v4745 = vpop.f32.mrb[0].mxu0
      %v4746 = vadd.f32 %v4674, %v4745
      %v4747 = vpop.f32.mrb[0].mxu0
      %v4748 = vpop.f32.mrb[0].mxu0
      %v4749 = vpop.f32.mrb[0].mxu0
      %4750 = vdwg.mxu0
      %4751 = vmatprep.subr.bf16.mxu0 0
      %4752 = vmatpush1.bf16.msra.mxu0 %v4383
      %4753 = vmatprep.subr.bf16.mxu0 0
      %4754 = vmatpush1.bf16.msra.mxu0 %v4384
      %4755 = vmatprep.subr.bf16.mxu0 0
      %4756 = vmatpush1.bf16.msra.mxu0 %v4385
      %4757 = vmatprep.subr.bf16.mxu0 0
      %4758 = vmatpush1.bf16.msra.mxu0 %v4386
      %4759 = vmatprep.subr.bf16.mxu0 0
      %4760 = vmatpush1.bf16.msra.mxu0 %v4387
      %4761 = vmatprep.subr.bf16.mxu0 0
      %4762 = vmatpush1.bf16.msra.mxu0 %v4388
      %4763 = vmatprep.subr.bf16.mxu0 0
      %4764 = vmatpush1.bf16.msra.mxu0 %v4389
      %4765 = vmatprep.subr.bf16.mxu0 0
      %4766 = vmatpush1.bf16.msra.mxu0 %v4390
      %4767 = vmatprep.subr.bf16.mxu0 0
      %4768 = vmatpush1.bf16.msra.mxu0 %v4391
      %4769 = vmatprep.subr.bf16.mxu0 0
      %4770 = vmatpush1.bf16.msra.mxu0 %v4392
      %4771 = vmatprep.subr.bf16.mxu0 0
      %4772 = vmatpush1.bf16.msra.mxu0 %v4393
      %4773 = vmatprep.subr.bf16.mxu0 0
      %4774 = vmatpush1.bf16.msra.mxu0 %v4394
      %4775 = vmatprep.subr.bf16.mxu0 0
      %4776 = vmatpush1.bf16.msra.mxu0 %v4395
      %4777 = vmatprep.subr.bf16.mxu0 0
      %4778 = vmatpush1.bf16.msra.mxu0 %v4396
      %4779 = vmatprep.subr.bf16.mxu0 0
      %4780 = vmatpush1.bf16.msra.mxu0 %v4397
      %4781 = vmatprep.subr.bf16.mxu0 0
      %4782 = vmatpush1.bf16.msra.mxu0 %v4398
      %4783 = vmatprep.mubr.bf16.mxu0 %v3760
      %4784 = vmatmul.mubr.bf16.gmra.mrb[0].mxu0 %v3759
      %v4785 = vpop.f32.mrb[0].mxu0
      %v4786 = vadd.f32 %v4714, %v4785
      %v4787 = vpop.f32.mrb[0].mxu0
      %v4788 = vpop.f32.mrb[0].mxu0
      %v4789 = vadd.f32 %v4717, %v4788
      %v4790 = vpop.f32.mrb[0].mxu0
      %4791 = vmatprep.mubr.bf16.mxu0 %v3776
      %4792 = vmatmul.mubr.bf16.gmra.mrb[0].mxu0 %v3775
      %v4793 = vpop.f32.mrb[0].mxu0
      %v4794 = vadd.f32 %v4722, %v4793
      %v4795 = vpop.f32.mrb[0].mxu0
      %v4796 = vpop.f32.mrb[0].mxu0
      %v4797 = vadd.f32 %v4725, %v4796
      %v4798 = vpop.f32.mrb[0].mxu0
      %4799 = vmatprep.mubr.bf16.mxu0 %v3792
      %4800 = vmatmul.mubr.bf16.gmra.mrb[0].mxu0 %v3791
      %v4801 = vpop.f32.mrb[0].mxu0
      %v4802 = vadd.f32 %v4730, %v4801
      %v4803 = vpop.f32.mrb[0].mxu0
      %v4804 = vpop.f32.mrb[0].mxu0
      %v4805 = vadd.f32 %v4733, %v4804
      %v4806 = vpop.f32.mrb[0].mxu0
      %4807 = vmatprep.mubr.bf16.mxu0 %v3808
      %4808 = vmatmul.mubr.bf16.gmra.mrb[0].mxu0 %v3807
      %v4809 = vpop.f32.mrb[0].mxu0
      %v4810 = vadd.f32 %v4738, %v4809
      %v4811 = vpop.f32.mrb[0].mxu0
      %v4812 = vpop.f32.mrb[0].mxu0
      %v4813 = vadd.f32 %v4741, %v4812
      %v4814 = vpop.f32.mrb[0].mxu0
      %4815 = vmatprep.mubr.bf16.mxu0 %v3824
      %4816 = vmatmul.mubr.bf16.gmra.mrb[0].mxu0 %v3823
      %v4817 = vpop.f32.mrb[0].mxu0
      %v4818 = vadd.f32 %v4746, %v4817
      %v4819 = vpop.f32.mrb[0].mxu0
      %v4820 = vpop.f32.mrb[0].mxu0
      %v4821 = vpop.f32.mrb[0].mxu0
      %4822 = vdwg.mxu0
      %4823 = vmatprep.subr.bf16.mxu0 0
      %4824 = vmatpush1.bf16.msra.mxu0 %v4399
      %4825 = vmatprep.subr.bf16.mxu0 0
      %4826 = vmatpush1.bf16.msra.mxu0 %v4400
      %4827 = vmatprep.subr.bf16.mxu0 0
      %4828 = vmatpush1.bf16.msra.mxu0 %v4401
      %4829 = vmatprep.subr.bf16.mxu0 0
      %4830 = vmatpush1.bf16.msra.mxu0 %v4402
      %4831 = vmatprep.subr.bf16.mxu0 0
      %4832 = vmatpush1.bf16.msra.mxu0 %v4403
      %4833 = vmatprep.subr.bf16.mxu0 0
      %4834 = vmatpush1.bf16.msra.mxu0 %v4404
      %4835 = vmatprep.subr.bf16.mxu0 0
      %4836 = vmatpush1.bf16.msra.mxu0 %v4405
      %4837 = vmatprep.subr.bf16.mxu0 0
      %4838 = vmatpush1.bf16.msra.mxu0 %v4406
      %4839 = vmatprep.subr.bf16.mxu0 0
      %4840 = vmatpush1.bf16.msra.mxu0 %v4407
      %4841 = vmatprep.subr.bf16.mxu0 0
      %4842 = vmatpush1.bf16.msra.mxu0 %v4408
      %4843 = vmatprep.subr.bf16.mxu0 0
      %4844 = vmatpush1.bf16.msra.mxu0 %v4409
      %4845 = vmatprep.subr.bf16.mxu0 0
      %4846 = vmatpush1.bf16.msra.mxu0 %v4410
      %4847 = vmatprep.subr.bf16.mxu0 0
      %4848 = vmatpush1.bf16.msra.mxu0 %v4411
      %4849 = vmatprep.subr.bf16.mxu0 0
      %4850 = vmatpush1.bf16.msra.mxu0 %v4412
      %4851 = vmatprep.subr.bf16.mxu0 0
      %4852 = vmatpush1.bf16.msra.mxu0 %v4413
      %4853 = vmatprep.subr.bf16.mxu0 0
      %4854 = vmatpush1.bf16.msra.mxu0 %v4414
      %4855 = vmatprep.mubr.bf16.mxu0 %v3762
      %4856 = vmatmul.mubr.bf16.gmra.mrb[0].mxu0 %v3761
      %v4857 = vpop.f32.mrb[0].mxu0
      %v4858 = vadd.f32 %v4786, %v4857
      %v4859 = vpop.f32.mrb[0].mxu0
      %v4860 = vpop.f32.mrb[0].mxu0
      %v4861 = vadd.f32 %v4789, %v4860
      %v4862 = vpop.f32.mrb[0].mxu0
      %4863 = vmatprep.mubr.bf16.mxu0 %v3778
      %4864 = vmatmul.mubr.bf16.gmra.mrb[0].mxu0 %v3777
      %v4865 = vpop.f32.mrb[0].mxu0
      %v4866 = vadd.f32 %v4794, %v4865
      %v4867 = vpop.f32.mrb[0].mxu0
      %v4868 = vpop.f32.mrb[0].mxu0
      %v4869 = vadd.f32 %v4797, %v4868
      %v4870 = vpop.f32.mrb[0].mxu0
      %4871 = vmatprep.mubr.bf16.mxu0 %v3794
      %4872 = vmatmul.mubr.bf16.gmra.mrb[0].mxu0 %v3793
      %v4873 = vpop.f32.mrb[0].mxu0
      %v4874 = vadd.f32 %v4802, %v4873
      %v4875 = vpop.f32.mrb[0].mxu0
      %v4876 = vpop.f32.mrb[0].mxu0
      %v4877 = vadd.f32 %v4805, %v4876
      %v4878 = vpop.f32.mrb[0].mxu0
      %4879 = vmatprep.mubr.bf16.mxu0 %v3810
      %4880 = vmatmul.mubr.bf16.gmra.mrb[0].mxu0 %v3809
      %v4881 = vpop.f32.mrb[0].mxu0
      %v4882 = vadd.f32 %v4810, %v4881
      %v4883 = vpop.f32.mrb[0].mxu0
      %v4884 = vpop.f32.mrb[0].mxu0
      %v4885 = vadd.f32 %v4813, %v4884
      %v4886 = vpop.f32.mrb[0].mxu0
      %4887 = vmatprep.mubr.bf16.mxu0 %v3826
      %4888 = vmatmul.mubr.bf16.gmra.mrb[0].mxu0 %v3825
      %v4889 = vpop.f32.mrb[0].mxu0
      %v4890 = vadd.f32 %v4818, %v4889
      %v4891 = vpop.f32.mrb[0].mxu0
      %v4892 = vpop.f32.mrb[0].mxu0
      %v4893 = vpop.f32.mrb[0].mxu0
      %4894 = vdwg.mxu0
      %4895 = vmatprep.subr.bf16.mxu0 0
      %4896 = vmatpush1.bf16.msra.mxu0 %v4415
      %4897 = vmatprep.subr.bf16.mxu0 0
      %4898 = vmatpush1.bf16.msra.mxu0 %v4416
      %4899 = vmatprep.subr.bf16.mxu0 0
      %4900 = vmatpush1.bf16.msra.mxu0 %v4417
      %4901 = vmatprep.subr.bf16.mxu0 0
      %4902 = vmatpush1.bf16.msra.mxu0 %v4418
      %4903 = vmatprep.subr.bf16.mxu0 0
      %4904 = vmatpush1.bf16.msra.mxu0 %v4419
      %4905 = vmatprep.subr.bf16.mxu0 0
      %4906 = vmatpush1.bf16.msra.mxu0 %v4420
      %4907 = vmatprep.subr.bf16.mxu0 0
      %4908 = vmatpush1.bf16.msra.mxu0 %v4421
      %4909 = vmatprep.subr.bf16.mxu0 0
      %4910 = vmatpush1.bf16.msra.mxu0 %v4422
      %4911 = vmatprep.subr.bf16.mxu0 0
      %4912 = vmatpush1.bf16.msra.mxu0 %v4423
      %4913 = vmatprep.subr.bf16.mxu0 0
      %4914 = vmatpush1.bf16.msra.mxu0 %v4424
      %4915 = vmatprep.subr.bf16.mxu0 0
      %4916 = vmatpush1.bf16.msra.mxu0 %v4425
      %4917 = vmatprep.subr.bf16.mxu0 0
      %4918 = vmatpush1.bf16.msra.mxu0 %v4426
      %4919 = vmatprep.subr.bf16.mxu0 0
      %4920 = vmatpush1.bf16.msra.mxu0 %v4427
      %4921 = vmatprep.subr.bf16.mxu0 0
      %4922 = vmatpush1.bf16.msra.mxu0 %v4428
      %4923 = vmatprep.subr.bf16.mxu0 0
      %4924 = vmatpush1.bf16.msra.mxu0 %v4429
      %4925 = vmatprep.subr.bf16.mxu0 0
      %4926 = vmatpush1.bf16.msra.mxu0 %v4430
      %4927 = vmatprep.mubr.bf16.mxu0 %v3764
      %4928 = vmatmul.mubr.bf16.gmra.mrb[0].mxu0 %v3763
      %v4929 = vpop.f32.mrb[0].mxu0
      %v4930 = vadd.f32 %v4858, %v4929
      %v4931 = vpop.f32.mrb[0].mxu0
      %v4932 = vpop.f32.mrb[0].mxu0
      %v4933 = vadd.f32 %v4861, %v4932
      %v4934 = vpop.f32.mrb[0].mxu0
      %4935 = vmatprep.mubr.bf16.mxu0 %v3780
      %4936 = vmatmul.mubr.bf16.gmra.mrb[0].mxu0 %v3779
      %v4937 = vpop.f32.mrb[0].mxu0
      %v4938 = vadd.f32 %v4866, %v4937
      %v4939 = vpop.f32.mrb[0].mxu0
      %v4940 = vpop.f32.mrb[0].mxu0
      %v4941 = vadd.f32 %v4869, %v4940
      %v4942 = vpop.f32.mrb[0].mxu0
      %4943 = vmatprep.mubr.bf16.mxu0 %v3796
      %4944 = vmatmul.mubr.bf16.gmra.mrb[0].mxu0 %v3795
      %v4945 = vpop.f32.mrb[0].mxu0
      %v4946 = vadd.f32 %v4874, %v4945
      %v4947 = vpop.f32.mrb[0].mxu0
      %v4948 = vpop.f32.mrb[0].mxu0
      %v4949 = vadd.f32 %v4877, %v4948
      %v4950 = vpop.f32.mrb[0].mxu0
      %4951 = vmatprep.mubr.bf16.mxu0 %v3812
      %4952 = vmatmul.mubr.bf16.gmra.mrb[0].mxu0 %v3811
      %v4953 = vpop.f32.mrb[0].mxu0
      %v4954 = vadd.f32 %v4882, %v4953
      %v4955 = vpop.f32.mrb[0].mxu0
      %v4956 = vpop.f32.mrb[0].mxu0
      %v4957 = vadd.f32 %v4885, %v4956
      %v4958 = vpop.f32.mrb[0].mxu0
      %4959 = vmatprep.mubr.bf16.mxu0 %v3828
      %4960 = vmatmul.mubr.bf16.gmra.mrb[0].mxu0 %v3827
      %v4961 = vpop.f32.mrb[0].mxu0
      %v4962 = vadd.f32 %v4890, %v4961
      %v4963 = vpop.f32.mrb[0].mxu0
      %v4964 = vpop.f32.mrb[0].mxu0
      %v4965 = vpop.f32.mrb[0].mxu0
      %4966 = vdwg.mxu0
      %4967 = vmatprep.subr.bf16.mxu0 0
      %4968 = vmatpush1.bf16.msra.mxu0 %v4431
      %4969 = vmatprep.subr.bf16.mxu0 0
      %4970 = vmatpush1.bf16.msra.mxu0 %v4432
      %4971 = vmatprep.subr.bf16.mxu0 0
      %4972 = vmatpush1.bf16.msra.mxu0 %v4433
      %4973 = vmatprep.subr.bf16.mxu0 0
      %4974 = vmatpush1.bf16.msra.mxu0 %v4434
      %4975 = vmatprep.subr.bf16.mxu0 0
      %4976 = vmatpush1.bf16.msra.mxu0 %v4435
      %4977 = vmatprep.subr.bf16.mxu0 0
      %4978 = vmatpush1.bf16.msra.mxu0 %v4436
      %4979 = vmatprep.subr.bf16.mxu0 0
      %4980 = vmatpush1.bf16.msra.mxu0 %v4437
      %4981 = vmatprep.subr.bf16.mxu0 0
      %4982 = vmatpush1.bf16.msra.mxu0 %v4438
      %4983 = vmatprep.subr.bf16.mxu0 0
      %4984 = vmatpush1.bf16.msra.mxu0 %v4439
      %4985 = vmatprep.subr.bf16.mxu0 0
      %4986 = vmatpush1.bf16.msra.mxu0 %v4440
      %4987 = vmatprep.subr.bf16.mxu0 0
      %4988 = vmatpush1.bf16.msra.mxu0 %v4441
      %4989 = vmatprep.subr.bf16.mxu0 0
      %4990 = vmatpush1.bf16.msra.mxu0 %v4442
      %4991 = vmatprep.subr.bf16.mxu0 0
      %4992 = vmatpush1.bf16.msra.mxu0 %v4443
      %4993 = vmatprep.subr.bf16.mxu0 0
      %4994 = vmatpush1.bf16.msra.mxu0 %v4444
      %4995 = vmatprep.subr.bf16.mxu0 0
      %4996 = vmatpush1.bf16.msra.mxu0 %v4445
      %4997 = vmatprep.subr.bf16.mxu0 0
      %4998 = vmatpush1.bf16.msra.mxu0 %v4446
      %4999 = vmatprep.mubr.bf16.mxu0 %v3766
      %5000 = vmatmul.mubr.bf16.gmra.mrb[0].mxu0 %v3765
      %v5001 = vpop.f32.mrb[0].mxu0
      %v5002 = vadd.f32 %v4930, %v5001
      %v5003 = vpop.f32.mrb[0].mxu0
      %v5004 = vpop.f32.mrb[0].mxu0
      %v5005 = vadd.f32 %v4933, %v5004
      %v5006 = vpop.f32.mrb[0].mxu0
      %5007 = vmatprep.mubr.bf16.mxu0 %v3782
      %5008 = vmatmul.mubr.bf16.gmra.mrb[0].mxu0 %v3781
      %v5009 = vpop.f32.mrb[0].mxu0
      %v5010 = vadd.f32 %v4938, %v5009
      %v5011 = vpop.f32.mrb[0].mxu0
      %v5012 = vpop.f32.mrb[0].mxu0
      %v5013 = vadd.f32 %v4941, %v5012
      %v5014 = vpop.f32.mrb[0].mxu0
      %5015 = vmatprep.mubr.bf16.mxu0 %v3798
      %5016 = vmatmul.mubr.bf16.gmra.mrb[0].mxu0 %v3797
      %v5017 = vpop.f32.mrb[0].mxu0
      %v5018 = vadd.f32 %v4946, %v5017
      %v5019 = vpop.f32.mrb[0].mxu0
      %v5020 = vpop.f32.mrb[0].mxu0
      %v5021 = vadd.f32 %v4949, %v5020
      %v5022 = vpop.f32.mrb[0].mxu0
      %5023 = vmatprep.mubr.bf16.mxu0 %v3814
      %5024 = vmatmul.mubr.bf16.gmra.mrb[0].mxu0 %v3813
      %v5025 = vpop.f32.mrb[0].mxu0
      %v5026 = vadd.f32 %v4954, %v5025
      %v5027 = vpop.f32.mrb[0].mxu0
      %v5028 = vpop.f32.mrb[0].mxu0
      %v5029 = vadd.f32 %v4957, %v5028
      %v5030 = vpop.f32.mrb[0].mxu0
      %5031 = vmatprep.mubr.bf16.mxu0 %v3830
      %5032 = vmatmul.mubr.bf16.gmra.mrb[0].mxu0 %v3829
      %v5033 = vpop.f32.mrb[0].mxu0
      %v5034 = vadd.f32 %v4962, %v5033
      %v5035 = vpop.f32.mrb[0].mxu0
      %v5036 = vpop.f32.mrb[0].mxu0
      %v5037 = vpop.f32.mrb[0].mxu0
      %5038 = vdwg.mxu0
      %5039 = vmatprep.subr.bf16.mxu0 0
      %5040 = vmatpush1.bf16.msra.mxu0 %v4447
      %5041 = vmatprep.subr.bf16.mxu0 0
      %5042 = vmatpush1.bf16.msra.mxu0 %v4448
      %5043 = vmatprep.subr.bf16.mxu0 0
      %5044 = vmatpush1.bf16.msra.mxu0 %v4449
      %5045 = vmatprep.subr.bf16.mxu0 0
      %5046 = vmatpush1.bf16.msra.mxu0 %v4450
      %5047 = vmatprep.subr.bf16.mxu0 0
      %5048 = vmatpush1.bf16.msra.mxu0 %v4451
      %5049 = vmatprep.subr.bf16.mxu0 0
      %5050 = vmatpush1.bf16.msra.mxu0 %v4452
      %5051 = vmatprep.subr.bf16.mxu0 0
      %5052 = vmatpush1.bf16.msra.mxu0 %v4453
      %5053 = vmatprep.subr.bf16.mxu0 0
      %5054 = vmatpush1.bf16.msra.mxu0 %v4454
      %5055 = vmatprep.subr.bf16.mxu0 0
      %5056 = vmatpush1.bf16.msra.mxu0 %v4455
      %5057 = vmatprep.subr.bf16.mxu0 0
      %5058 = vmatpush1.bf16.msra.mxu0 %v4456
      %5059 = vmatprep.subr.bf16.mxu0 0
      %5060 = vmatpush1.bf16.msra.mxu0 %v4457
      %5061 = vmatprep.subr.bf16.mxu0 0
      %5062 = vmatpush1.bf16.msra.mxu0 %v4458
      %5063 = vmatprep.subr.bf16.mxu0 0
      %5064 = vmatpush1.bf16.msra.mxu0 %v4459
      %5065 = vmatprep.subr.bf16.mxu0 0
      %5066 = vmatpush1.bf16.msra.mxu0 %v4460
      %5067 = vmatprep.subr.bf16.mxu0 0
      %5068 = vmatpush1.bf16.msra.mxu0 %v4461
      %5069 = vmatprep.subr.bf16.mxu0 0
      %5070 = vmatpush1.bf16.msra.mxu0 %v4462
      %5071 = vmatprep.mubr.bf16.mxu0 %v3768
      %5072 = vmatmul.mubr.bf16.gmra.mrb[0].mxu0 %v3767
      %v5073 = vpop.f32.mrb[0].mxu0
      %v5074 = vadd.f32 %v5002, %v5073
      %v5075 = vpop.f32.mrb[0].mxu0
      %v5076 = vpop.f32.mrb[0].mxu0
      %v5077 = vadd.f32 %v5005, %v5076
      %v5078 = vpop.f32.mrb[0].mxu0
      %5079 = vmatprep.mubr.bf16.mxu0 %v3784
      %5080 = vmatmul.mubr.bf16.gmra.mrb[0].mxu0 %v3783
      %v5081 = vpop.f32.mrb[0].mxu0
      %v5082 = vadd.f32 %v5010, %v5081
      %v5083 = vpop.f32.mrb[0].mxu0
      %v5084 = vpop.f32.mrb[0].mxu0
      %v5085 = vadd.f32 %v5013, %v5084
      %v5086 = vpop.f32.mrb[0].mxu0
      %5087 = vmatprep.mubr.bf16.mxu0 %v3800
      %5088 = vmatmul.mubr.bf16.gmra.mrb[0].mxu0 %v3799
      %v5089 = vpop.f32.mrb[0].mxu0
      %v5090 = vadd.f32 %v5018, %v5089
      %v5091 = vpop.f32.mrb[0].mxu0
      %v5092 = vpop.f32.mrb[0].mxu0
      %v5093 = vadd.f32 %v5021, %v5092
      %v5094 = vpop.f32.mrb[0].mxu0
      %5095 = vmatprep.mubr.bf16.mxu0 %v3816
      %5096 = vmatmul.mubr.bf16.gmra.mrb[0].mxu0 %v3815
      %v5097 = vpop.f32.mrb[0].mxu0
      %v5098 = vadd.f32 %v5026, %v5097
      %v5099 = vpop.f32.mrb[0].mxu0
      %v5100 = vpop.f32.mrb[0].mxu0
      %v5101 = vadd.f32 %v5029, %v5100
      %v5102 = vpop.f32.mrb[0].mxu0
      %5103 = vmatprep.mubr.bf16.mxu0 %v3832
      %5104 = vmatmul.mubr.bf16.gmra.mrb[0].mxu0 %v3831
      %v5105 = vpop.f32.mrb[0].mxu0
      %v5106 = vadd.f32 %v5034, %v5105
      %v5107 = vpop.f32.mrb[0].mxu0
      %v5108 = vpop.f32.mrb[0].mxu0
      %v5109 = vpop.f32.mrb[0].mxu0
      %5110 = vdwg.mxu0
      %5111 = vmatprep.subr.bf16.mxu0 0
      %5112 = vmatpush1.bf16.msra.mxu0 %v4463
      %5113 = vmatprep.subr.bf16.mxu0 0
      %5114 = vmatpush1.bf16.msra.mxu0 %v4464
      %5115 = vmatprep.subr.bf16.mxu0 0
      %5116 = vmatpush1.bf16.msra.mxu0 %v4465
      %5117 = vmatprep.subr.bf16.mxu0 0
      %5118 = vmatpush1.bf16.msra.mxu0 %v4466
      %5119 = vmatprep.subr.bf16.mxu0 0
      %5120 = vmatpush1.bf16.msra.mxu0 %v4467
      %5121 = vmatprep.subr.bf16.mxu0 0
      %5122 = vmatpush1.bf16.msra.mxu0 %v4468
      %5123 = vmatprep.subr.bf16.mxu0 0
      %5124 = vmatpush1.bf16.msra.mxu0 %v4469
      %5125 = vmatprep.subr.bf16.mxu0 0
      %5126 = vmatpush1.bf16.msra.mxu0 %v4470
      %5127 = vmatprep.subr.bf16.mxu0 0
      %5128 = vmatpush1.bf16.msra.mxu0 %v4471
      %5129 = vmatprep.subr.bf16.mxu0 0
      %5130 = vmatpush1.bf16.msra.mxu0 %v4472
      %5131 = vmatprep.subr.bf16.mxu0 0
      %5132 = vmatpush1.bf16.msra.mxu0 %v4473
      %5133 = vmatprep.subr.bf16.mxu0 0
      %5134 = vmatpush1.bf16.msra.mxu0 %v4474
      %5135 = vmatprep.subr.bf16.mxu0 0
      %5136 = vmatpush1.bf16.msra.mxu0 %v4475
      %5137 = vmatprep.subr.bf16.mxu0 0
      %5138 = vmatpush1.bf16.msra.mxu0 %v4476
      %5139 = vmatprep.subr.bf16.mxu0 0
      %5140 = vmatpush1.bf16.msra.mxu0 %v4477
      %5141 = vmatprep.subr.bf16.mxu0 0
      %5142 = vmatpush1.bf16.msra.mxu0 %v4478
      %5143 = vmatprep.mubr.bf16.mxu0 %v3770
      %5144 = vmatmul.mubr.bf16.gmra.mrb[0].mxu0 %v3769
      %v5145 = vpop.f32.mrb[0].mxu0
      %v5146 = vadd.f32 %v5074, %v5145
      %v5147 = vpop.f32.mrb[0].mxu0
      %v5148 = vpop.f32.mrb[0].mxu0
      %v5149 = vadd.f32 %v5077, %v5148
      %v5150 = vpop.f32.mrb[0].mxu0
      %5151 = vmatprep.mubr.bf16.mxu0 %v3786
      %5152 = vmatmul.mubr.bf16.gmra.mrb[0].mxu0 %v3785
      %v5153 = vpop.f32.mrb[0].mxu0
      %v5154 = vadd.f32 %v5082, %v5153
      %v5155 = vpop.f32.mrb[0].mxu0
      %v5156 = vpop.f32.mrb[0].mxu0
      %v5157 = vadd.f32 %v5085, %v5156
      %v5158 = vpop.f32.mrb[0].mxu0
      %5159 = vmatprep.mubr.bf16.mxu0 %v3802
      %5160 = vmatmul.mubr.bf16.gmra.mrb[0].mxu0 %v3801
      %v5161 = vpop.f32.mrb[0].mxu0
      %v5162 = vadd.f32 %v5090, %v5161
      %v5163 = vpop.f32.mrb[0].mxu0
      %v5164 = vpop.f32.mrb[0].mxu0
      %v5165 = vadd.f32 %v5093, %v5164
      %v5166 = vpop.f32.mrb[0].mxu0
      %5167 = vmatprep.mubr.bf16.mxu0 %v3818
      %5168 = vmatmul.mubr.bf16.gmra.mrb[0].mxu0 %v3817
      %v5169 = vpop.f32.mrb[0].mxu0
      %v5170 = vadd.f32 %v5098, %v5169
      %v5171 = vpop.f32.mrb[0].mxu0
      %v5172 = vpop.f32.mrb[0].mxu0
      %v5173 = vadd.f32 %v5101, %v5172
      %v5174 = vpop.f32.mrb[0].mxu0
      %5175 = vmatprep.mubr.bf16.mxu0 %v3834
      %5176 = vmatmul.mubr.bf16.gmra.mrb[0].mxu0 %v3833
      %v5177 = vpop.f32.mrb[0].mxu0
      %v5178 = vadd.f32 %v5106, %v5177
      %v5179 = vpop.f32.mrb[0].mxu0
      %v5180 = vpop.f32.mrb[0].mxu0
      %v5181 = vpop.f32.mrb[0].mxu0
      %5182 = vdwg.mxu0
      %v5183 = vadd.f32 %v2692, %v5146
      %v5184 = vadd.f32 %v2693, %v5149
      %v5185 = vadd.f32 %v2694, %v5154
      %v5186 = vadd.f32 %v2695, %v5157
      %v5187 = vadd.f32 %v2696, %v5162
      %v5188 = vadd.f32 %v2697, %v5165
      %v5189 = vadd.f32 %v2698, %v5170
      %v5190 = vadd.f32 %v2699, %v5173
      %v5191 = vadd.f32 %v2700, %v5178
      %v5192 = vsel %vm883, %v5183, 0.0
      %5193 = vadd.xlane.f32.xlu0 %v5192
      %v5194 = vpop.xlane.xlu0 %5193
      %v5195 = vsel %vm883, %v5184, 0.0
      %5196 = vadd.xlane.f32.xlu0 %v5195
      %v5197 = vpop.xlane.xlu0 %5196
      %v5198 = vsel %vm883, %v5185, 0.0
      %5199 = vadd.xlane.f32.xlu0 %v5198
      %v5200 = vpop.xlane.xlu0 %5199
      %v5201 = vsel %vm883, %v5186, 0.0
      %5202 = vadd.xlane.f32.xlu0 %v5201
      %v5203 = vpop.xlane.xlu0 %5202
      %v5204 = vsel %vm883, %v5187, 0.0
      %5205 = vadd.xlane.f32.xlu0 %v5204
      %v5206 = vpop.xlane.xlu0 %5205
      %v5207 = vsel %vm883, %v5188, 0.0
      %5208 = vadd.xlane.f32.xlu0 %v5207
      %v5209 = vpop.xlane.xlu0 %5208
      %v5210 = vsel %vm883, %v5189, 0.0
      %5211 = vadd.xlane.f32.xlu0 %v5210
      %v5212 = vpop.xlane.xlu0 %5211
      %v5213 = vsel %vm883, %v5190, 0.0
      %5214 = vadd.xlane.f32.xlu0 %v5213
      %v5215 = vpop.xlane.xlu0 %5214
      %v5216 = vsel %vm883, %v5191, 0.0
      %5217 = vadd.xlane.f32.xlu0 %v5216
      %v5218 = vpop.xlane.xlu0 %5217
      %v5219 = vmul.f32 %v5194, %v2584
      %v5220 = vmul.f32 %v5197, %v2584
      %v5221 = vmul.f32 %v5200, %v2584
      %v5222 = vmul.f32 %v5203, %v2584
      %v5223 = vmul.f32 %v5206, %v2584
      %v5224 = vmul.f32 %v5209, %v2584
      %v5225 = vmul.f32 %v5212, %v2584
      %v5226 = vmul.f32 %v5215, %v2584
      %v5227 = vmul.f32 %v5218, %v2584
      %v5228 = vsub.f32 %v5183, %v5219
      %v5229 = vsub.f32 %v5184, %v5220
      %v5230 = vsub.f32 %v5185, %v5221
      %v5231 = vsub.f32 %v5186, %v5222
      %v5232 = vsub.f32 %v5187, %v5223
      %v5233 = vsub.f32 %v5188, %v5224
      %v5234 = vsub.f32 %v5189, %v5225
      %v5235 = vsub.f32 %v5190, %v5226
      %v5236 = vsub.f32 %v5191, %v5227
      %v5237 = vmul.f32 %v5228, %v5228
      %v5238 = vmul.f32 %v5229, %v5229
      %v5239 = vmul.f32 %v5230, %v5230
      %v5240 = vmul.f32 %v5231, %v5231
      %v5241 = vmul.f32 %v5232, %v5232
      %v5242 = vmul.f32 %v5233, %v5233
      %v5243 = vmul.f32 %v5234, %v5234
      %v5244 = vmul.f32 %v5235, %v5235
      %v5245 = vmul.f32 %v5236, %v5236
      %v5246 = vsel %vm883, %v5237, 0.0
      %5247 = vadd.xlane.f32.xlu0 %v5246
      %v5248 = vpop.xlane.xlu0 %5247
      %v5249 = vsel %vm883, %v5238, 0.0
      %5250 = vadd.xlane.f32.xlu0 %v5249
      %v5251 = vpop.xlane.xlu0 %5250
      %v5252 = vsel %vm883, %v5239, 0.0
      %5253 = vadd.xlane.f32.xlu0 %v5252
      %v5254 = vpop.xlane.xlu0 %5253
      %v5255 = vsel %vm883, %v5240, 0.0
      %5256 = vadd.xlane.f32.xlu0 %v5255
      %v5257 = vpop.xlane.xlu0 %5256
      %v5258 = vsel %vm883, %v5241, 0.0
      %5259 = vadd.xlane.f32.xlu0 %v5258
      %v5260 = vpop.xlane.xlu0 %5259
      %v5261 = vsel %vm883, %v5242, 0.0
      %5262 = vadd.xlane.f32.xlu0 %v5261
      %v5263 = vpop.xlane.xlu0 %5262
      %v5264 = vsel %vm883, %v5243, 0.0
      %5265 = vadd.xlane.f32.xlu0 %v5264
      %v5266 = vpop.xlane.xlu0 %5265
      %v5267 = vsel %vm883, %v5244, 0.0
      %5268 = vadd.xlane.f32.xlu0 %v5267
      %v5269 = vpop.xlane.xlu0 %5268
      %v5270 = vsel %vm883, %v5245, 0.0
      %5271 = vadd.xlane.f32.xlu0 %v5270
      %v5272 = vpop.xlane.xlu0 %5271
      %v5273 = vmul.f32 %v5248, %v2584
      %v5274 = vmul.f32 %v5251, %v2584
      %v5275 = vmul.f32 %v5254, %v2584
      %v5276 = vmul.f32 %v5257, %v2584
      %v5277 = vmul.f32 %v5260, %v2584
      %v5278 = vmul.f32 %v5263, %v2584
      %v5279 = vmul.f32 %v5266, %v2584
      %v5280 = vmul.f32 %v5269, %v2584
      %v5281 = vmul.f32 %v5272, %v2584
      %v5282 = vadd.f32 %v5273, 1e-05
      %v5283 = vadd.f32 %v5274, 1e-05
      %v5284 = vadd.f32 %v5275, 1e-05
      %v5285 = vadd.f32 %v5276, 1e-05
      %v5286 = vadd.f32 %v5277, 1e-05
      %v5287 = vadd.f32 %v5278, 1e-05
      %v5288 = vadd.f32 %v5279, 1e-05
      %v5289 = vadd.f32 %v5280, 1e-05
      %v5290 = vadd.f32 %v5281, 1e-05
      %v5291 = vrsqrt.pop %v5282
      %v5292 = vrsqrt.pop %v5283
      %v5293 = vrsqrt.pop %v5284
      %v5294 = vrsqrt.pop %v5285
      %v5295 = vrsqrt.pop %v5286
      %v5296 = vrsqrt.pop %v5287
      %v5297 = vrsqrt.pop %v5288
      %v5298 = vrsqrt.pop %v5289
      %v5299 = vrsqrt.pop %v5290
      %v5300 = vmul.f32 %v5228, %v5291
      %v5301 = vmul.f32 %v5229, %v5292
      %v5302 = vmul.f32 %v5230, %v5293
      %v5303 = vmul.f32 %v5231, %v5294
      %v5304 = vmul.f32 %v5232, %v5295
      %v5305 = vmul.f32 %v5233, %v5296
      %v5306 = vmul.f32 %v5234, %v5297
      %v5307 = vmul.f32 %v5235, %v5298
      %v5308 = vmul.f32 %v5236, %v5299
      %v5309 = vlaneseq
      %v5310 = vshrl.u32 %v5309, 7
      %v5311 = vsub.s32 4, %v5310
      %v5312 = vrot.slane %v859, %v5311
      %v5313 = vmul.f32 %v5300, %v5312
      %v5314 = vmul.f32 %v5301, %v5312
      %v5315 = vmul.f32 %v5302, %v5312
      %v5316 = vmul.f32 %v5303, %v5312
      %v5317 = vmul.f32 %v5304, %v5312
      %v5318 = vmul.f32 %v5305, %v5312
      %v5319 = vmul.f32 %v5306, %v5312
      %v5320 = vmul.f32 %v5307, %v5312
      %v5321 = vmul.f32 %v5308, %v5312
      %v5322 = vlaneseq
      %v5323 = vshrl.u32 %v5322, 7
      %v5324 = vsub.s32 5, %v5323
      %v5325 = vrot.slane %v859, %v5324
      %v5326 = vadd.f32 %v5313, %v5325
      %v5327 = vadd.f32 %v5314, %v5325
      %v5328 = vadd.f32 %v5315, %v5325
      %v5329 = vadd.f32 %v5316, %v5325
      %v5330 = vadd.f32 %v5317, %v5325
      %v5331 = vadd.f32 %v5318, %v5325
      %v5332 = vadd.f32 %v5319, %v5325
      %v5333 = vadd.f32 %v5320, %v5325
      %v5334 = vadd.f32 %v5321, %v5325
      %5335 = vst.msk [vmem:[#allocation2] sm:$0xff] %vm883, %v5326
      %5336 = vst.msk [vmem:[#allocation2 + $0x8] sm:$0xff] %vm883, %v5327
      %5337 = vst.msk [vmem:[#allocation2 + $0x10] sm:$0xff] %vm883, %v5328
      %5338 = vst.msk [vmem:[#allocation2 + $0x18] sm:$0xff] %vm883, %v5329
      %5339 = vst.msk [vmem:[#allocation2 + $0x20] sm:$0xff] %vm883, %v5330
      %5340 = vst.msk [vmem:[#allocation2 + $0x28] sm:$0xff] %vm883, %v5331
      %5341 = vst.msk [vmem:[#allocation2 + $0x30] sm:$0xff] %vm883, %v5332
      %5342 = vst.msk [vmem:[#allocation2 + $0x38] sm:$0xff] %vm883, %v5333
      %5343 = vst.msk [vmem:[#allocation2 + $0x40] sm:$0xff] %vm883, %v5334
      %p5344 = scmp.eq.s32.totalorder %s27, 1
      // Predicated region
      $region69: #{temporal_transformer_forward.1} parent=63 // pred_check
        %p5345 = pneg %p5344
      $region70: #{temporal_transformer_forward.1} parent=63 // pred_check_branch
        %5347 = sbr.rel (%p5345) target = $region72
      $region71: #{temporal_transformer_forward.1} parent=63 // pred_region
        %v5348 = vld [vmem:[%s10] sm:$0xff]
        %v5350 = vsel %vm1142, %v5348, 0
        %5352 = vmatprep.subr.mxu0 0.0
        %5353 = vmatpush1.msra.mxu0 %v5326
        %5354 = vmatprep.subr.mxu0 0.0
        %5355 = vmatpush1.msra.mxu0 %v5327
        %5356 = vmatprep.subr.mxu0 0.0
        %5357 = vmatpush1.msra.mxu0 %v5328
        %5358 = vmatprep.subr.mxu0 0.0
        %5359 = vmatpush1.msra.mxu0 %v5329
        %5360 = vmatprep.subr.mxu0 0.0
        %5361 = vmatpush1.msra.mxu0 %v5330
        %5362 = vmatprep.subr.mxu0 0.0
        %5363 = vmatpush1.msra.mxu0 %v5331
        %5364 = vmatprep.subr.mxu0 0.0
        %5365 = vmatpush1.msra.mxu0 %v5332
        %5366 = vmatprep.subr.mxu0 0.0
        %5367 = vmatpush1.msra.mxu0 %v5333
        %5368 = vmatprep.subr.mxu0 0.0
        %5369 = vmatpush1.msra.mxu0 %v5334
        %5370 = vmatprep.subr.mxu0 0.0
        %5371 = vmatpush1.msra.mxu0 0.0
        %5372 = vmatprep.subr.mxu0 0.0
        %5373 = vmatpush1.msra.mxu0 0.0
        %5374 = vmatprep.subr.mxu0 0.0
        %5375 = vmatpush1.msra.mxu0 0.0
        %5376 = vmatprep.subr.mxu0 0.0
        %5377 = vmatpush1.msra.mxu0 0.0
        %5378 = vmatprep.subr.mxu0 0.0
        %5379 = vmatpush1.msra.mxu0 0.0
        %5380 = vmatprep.subr.mxu0 0.0
        %5381 = vmatpush1.msra.mxu0 0.0
        %5382 = vmatprep.subr.mxu0 0.0
        %5383 = vmatpush1.msra.mxu0 0.0
        %5384 = vmatprep.subr.mxu0 0.0
        %5385 = vmatpush1.msra.mxu0 0.0
        %5386 = vmatprep.subr.mxu0 0.0
        %5387 = vmatpush1.msra.mxu0 0.0
        %5388 = vmatprep.subr.mxu0 0.0
        %5389 = vmatpush1.msra.mxu0 0.0
        %5390 = vmatprep.subr.mxu0 0.0
        %5391 = vmatpush1.msra.mxu0 0.0
        %5392 = vmatprep.subr.mxu0 0.0
        %5393 = vmatpush1.msra.mxu0 0.0
        %5394 = vmatprep.subr.mxu0 0.0
        %5395 = vmatpush1.msra.mxu0 0.0
        %5396 = vmatprep.subr.mxu0 0.0
        %5397 = vmatpush1.msra.mxu0 0.0
        %5398 = vmatprep.subr.mxu0 0.0
        %5399 = vmatpush1.msra.mxu0 0.0
        %5400 = vmatprep.subr.mxu0 0.0
        %5401 = vmatpush1.msra.mxu0 0.0
        %5402 = vmatprep.subr.mxu0 0.0
        %5403 = vmatpush1.msra.mxu0 0.0
        %5404 = vmatprep.subr.mxu0 0.0
        %5405 = vmatpush1.msra.mxu0 0.0
        %5406 = vmatprep.subr.mxu0 0.0
        %5407 = vmatpush1.msra.mxu0 0.0
        %5408 = vmatprep.subr.mxu0 0.0
        %5409 = vmatpush1.msra.mxu0 0.0
        %5410 = vmatprep.subr.mxu0 0.0
        %5411 = vmatpush1.msra.mxu0 0.0
        %5412 = vmatprep.subr.mxu0 0.0
        %5413 = vmatpush1.msra.mxu0 0.0
        %5414 = vmatprep.subr.mxu0 0.0
        %5415 = vmatpush1.msra.mxu0 0.0
        %5416 = vmatprep.mubr.f32.mxu0 0.0
        %5417 = vmatmul.mubr.f32.gmra.mrb[0].mxu0 %v5350
        %v5418 = vpop.f32.mrb[0].mxu0
        %v5419 = vadd.f32 0.0, %v5418
        %v5420 = vpop.f32.mrb[0].mxu0
        %5421 = vdwg.mxu0
        %5422 = vst.msk [vmem:[%s526] sm:$0xff] %vm883, %v5419
      $region72: #{temporal_transformer_forward.1} parent=63 // pred_fallthru
        _
      %p5423 = scmp.lt.s32.totalorder %s26, 1
      %s5424 = scalar_select %p5423, %s26, 1
      %s5425 = smul.addr %s5424, 8
      %s5426 = scalar_lea.vmem %s11, %s5425
      // Predicated region
      $region73: #{temporal_transformer_forward.1} parent=63 // pred_check
        %p5427 = pneg %p323
      $region74: #{temporal_transformer_forward.1} parent=63 // pred_check_branch
        %5429 = sbr.rel (%p5427) target = $region76
      $region75: #{temporal_transformer_forward.1} parent=63 // pred_region
        _
      $region76: #{temporal_transformer_forward.1} parent=63 // pred_fallthru
        _
    $region64: #{temporal_transformer_forward.1} parent=5 // pred_fallthru
      _
    %p5430 = scmp.le.s32.totalorder 2, %s17
    // Predicated region
    $region77: #{temporal_transformer_forward.1} parent=5 // pred_check
      %p5431 = pneg %p5430
    $region78: #{temporal_transformer_forward.1} parent=5 // pred_check_branch
      %5433 = sbr.rel (%p5431) target = $region80
    $region79: #{temporal_transformer_forward.1} parent=5 // pred_region
      %s5434 = ssub.s32 %s17, 2
      // Predicated region
      $region81: #{temporal_transformer_forward.1} parent=79 // pred_check
        %p5435 = pneg %p329
      $region82: #{temporal_transformer_forward.1} parent=79 // pred_check_branch
        %5437 = sbr.rel (%p5435) target = $region84
      $region83: #{temporal_transformer_forward.1} parent=79 // pred_region
        %p5438 = scmp.lt.s32.totalorder %s28, 1
        %s5439 = scalar_select %p5438, %s28, 1
        %s5440 = smul.addr %s5439, 8
        %s5441 = scalar_lea.vmem %s11, %s5440
      $region84: #{temporal_transformer_forward.1} parent=79 // pred_fallthru
        _
    $region80: #{temporal_transformer_forward.1} parent=5 // pred_fallthru
      _
  $region6: #{temporal_transformer_forward.1} parent=0 // loop_footer
    %s21 = sadd.s32 1, %s17
  $region7: #{temporal_transformer_forward.1} parent=0 // loop_footer_branch
    %16 = sbr.rel target = $region3
  $region8: #{temporal_transformer_forward.1} parent=0 // loop_exit
    _

</llo_original>
